<compile_context>
chip_gen: v7x
topology: tpu7x:2x2x1
jax: 0.10.0
libtpu: 0.0.40
codegen_flags: <defaults>
</compile_context>

<pallas_src>
import functools
import math

import jax
import jax.numpy as jnp
from jax.experimental import pallas as pl
from jax.experimental.pallas import tpu as pltpu

HIDDEN_SIZE = 100        # logical hidden size (matches the PyTorch module)
HIDDEN_PAD = 128         # lane-tile aligned hidden size used inside the kernel
NSTATES_PAD = 128        # lane-dense padded class dimension for the output slab
NUM_LAYERS = 1           # only 1 layer is implemented (matches the module)
FREQ_SPACING = 32        # forward() hard-reshapes to chunks of 32
BATCH_TILE = 8           # one f32 sublane tile worth of batch rows


# ----------------------------------------------------------------------------
# Pallas kernel: full forward (input proj -> LSTM recurrence -> ReLU/FC head)
# in a single invocation, everything VMEM resident.
# ----------------------------------------------------------------------------
def _fused_lstm_kernel(x_ref, wi_ref, wh_ref, b_ref, wfc_ref, bfc_ref,
                       out_ref, gx_ref, h_all_ref, *, seq_len, batch_pad,
                       hid_pad):
    Hp = hid_pad
    Bp = batch_pad

    # Stage 1: input projection for ALL time steps at once (off the serial
    # critical path).  gx[t, :, :] = x_t @ W_ih^T + (b_ih + b_hh)
    # x is bf16, W_ih is bf16; accumulate in f32.
    gx = (jnp.dot(x_ref[...], wi_ref[...], preferred_element_type=jnp.float32)
          + b_ref[...])
    gx_ref[...] = gx.reshape(seq_len, Bp, 4 * Hp)

    # Stage 2: time recurrence.  h/c carried as f32 values (vregs); only the
    # h @ W_hh^T matmul + gate activations sit on the serial chain.
    # All per-step accesses (gx_ref[t], h_all_ref[t]) are full (8,128)-aligned
    # tiles -> unmasked vld/vst.
    h = jnp.zeros((Bp, Hp), jnp.float32)
    c = jnp.zeros((Bp, Hp), jnp.float32)
    for t in range(seq_len):                       # static unroll, T is small
        gates = (gx_ref[t]
                 + jnp.dot(h.astype(jnp.bfloat16), wh_ref[...],
                           preferred_element_type=jnp.float32))
        # Packed gate ordering (repacked in make_params): input, forget,
        # output, cell(g).  The three sigmoid gates are contiguous -> one EUP
        # sigmoid over 3 lane tiles + one tanh over the last tile.
        sig = jax.nn.sigmoid(gates[:, 0:3 * Hp])
        i_g = sig[:, 0 * Hp:1 * Hp]
        f_g = sig[:, 1 * Hp:2 * Hp]
        o_g = sig[:, 2 * Hp:3 * Hp]
        g_g = jnp.tanh(gates[:, 3 * Hp:4 * Hp])
        c = f_g * c + i_g * g_g
        h = o_g * jnp.tanh(c)
        h_all_ref[t] = h

    # Stage 3: ReLU -> Linear head, batched over all (T*Bp) rows, single
    # lane-dense (., 128) output store.
    h_all = jnp.maximum(h_all_ref[...].reshape(seq_len * Bp, Hp), 0.0)
    out_ref[...] = (
        jnp.dot(h_all.astype(jnp.bfloat16), wfc_ref[...],
                preferred_element_type=jnp.float32)
        + bfc_ref[...])


# ----------------------------------------------------------------------------
# Wrapper
# ----------------------------------------------------------------------------
def signal_aware_lstm_forward(rx, params, n_states, phase="val"):
    """rx: float32 [B, transmission_length]  (transmission_length % 32 == 0)"""
    B, L = rx.shape
    assert L % FREQ_SPACING == 0, "transmission_length must be a multiple of 32"
    T = L // FREQ_SPACING
    Bp = max(BATCH_TILE, ((B + BATCH_TILE - 1) // BATCH_TILE) * BATCH_TILE)

    x = rx.reshape(B, T, FREQ_SPACING)                      # (B, T, 32)
    # time-major rows, t-major / b-minor: row t*Bp + b  <->  (t, b);
    # batch rows padded with zeros up to one sublane tile (Bp).
    x_tb = jnp.transpose(x, (1, 0, 2))                      # (T, B, 32)
    x_tb = jnp.pad(x_tb, ((0, 0), (0, Bp - B), (0, 0)))     # (T, Bp, 32)
    x_flat = x_tb.reshape(T * Bp, FREQ_SPACING).astype(jnp.bfloat16)

    wi = params["w_ih_t"]          # (32, 4*Hp)   bf16
    wh = params["w_hh_t"]          # (Hp, 4*Hp)   bf16
    b = params["b_gates"]          # (1, 4*Hp)    f32
    wfc = params["w_fc_t"]         # (Hp, NSp)    bf16
    bfc = params["b_fc"]           # (1, NSp)     f32

    Hp = wh.shape[0]
    NSp = wfc.shape[1]

    kernel = functools.partial(
        _fused_lstm_kernel, seq_len=T, batch_pad=Bp, hid_pad=Hp)

    vmem = pl.BlockSpec(memory_space=pltpu.MemorySpace.VMEM)
    out_flat = pl.pallas_call(
        kernel,
        out_shape=jax.ShapeDtypeStruct((T * Bp, NSp), jnp.float32),
        in_specs=[vmem] * 6,
        out_specs=vmem,
        scratch_shapes=[
            pltpu.VMEM((T, Bp, 4 * Hp), jnp.float32),   # gx (input projection)
            pltpu.VMEM((T, Bp, Hp), jnp.float32),       # h states (head input)
        ],
    )(x_flat, wi, wh, b, wfc, bfc)

    # (T*Bp, NSp) -> (B, T, n_states); padded batch rows and padded class
    # columns are dropped before any argmax.
    out = (out_flat.reshape(T, Bp, NSp)[:, :B, :n_states]
           .transpose(1, 0, 2))                             # (B, T, n_states)

    if phase == "training":
        return out

    # val path: argmax over classes + binary bit decomposition (glue in JAX)
    assert n_states & (n_states - 1) == 0 and n_states > 1, \
        "n_states must be a power of two for the bit decomposition"
    states = jnp.argmax(out, axis=2)                        # (B, T) int
    bits = int(math.log2(n_states))
    mask = (2 ** jnp.arange(bits)).astype(states.dtype)     # (bits,)
    detected = (jnp.bitwise_and(states[..., None], mask) != 0).astype(jnp.uint8)
    return detected                                          # (B, T, bits)


# ----------------------------------------------------------------------------
# Deterministic parameter construction (synthetic; PyTorch-style uniform init)
# with per-gate zero padding H=100 -> Hp=128, n_states -> 128, gate reorder
# (i,f,g,o) -> (i,f,o,g), and bf16 weight storage (biases stay f32).
# ----------------------------------------------------------------------------
def make_params(key, n_states):
    H = HIDDEN_SIZE
    Hp = HIDDEN_PAD
    NSp = NSTATES_PAD
    k_lstm = 1.0 / math.sqrt(H)
    k_fc = 1.0 / math.sqrt(H)
    keys = jax.random.split(key, 6)
    w_ih = jax.random.uniform(keys[0], (4 * H, FREQ_SPACING),
                              minval=-k_lstm, maxval=k_lstm, dtype=jnp.float32)
    w_hh = jax.random.uniform(keys[1], (4 * H, H),
                              minval=-k_lstm, maxval=k_lstm, dtype=jnp.float32)
    b_ih = jax.random.uniform(keys[2], (4 * H,),
                              minval=-k_lstm, maxval=k_lstm, dtype=jnp.float32)
    b_hh = jax.random.uniform(keys[3], (4 * H,),
                              minval=-k_lstm, maxval=k_lstm, dtype=jnp.float32)
    w_fc = jax.random.uniform(keys[4], (n_states, H),
                              minval=-k_fc, maxval=k_fc, dtype=jnp.float32)
    b_fc = jax.random.uniform(keys[5], (n_states,),
                              minval=-k_fc, maxval=k_fc, dtype=jnp.float32)

    def pack_gates(w):
        # PyTorch packs gate rows as (i, f, g, o); repack to (i, f, o, g) so
        # the sigmoid gates are contiguous, zero-padding each block H -> Hp.
        order = (0, 1, 3, 2)
        blocks = []
        for g in order:
            blk = w[g * H:(g + 1) * H]
            pad_width = ((0, Hp - H),) + ((0, 0),) * (w.ndim - 1)
            blocks.append(jnp.pad(blk, pad_width))
        return jnp.concatenate(blocks, axis=0)

    w_ih_p = pack_gates(w_ih)                                   # (4Hp, 32)
    w_hh_p = jnp.pad(pack_gates(w_hh), ((0, 0), (0, Hp - H)))   # (4Hp, Hp)
    b_p = pack_gates((b_ih + b_hh)[:, None])[:, 0]              # (4Hp,)
    w_fc_p = jnp.pad(jnp.transpose(w_fc),
                     ((0, Hp - H), (0, NSp - n_states)))        # (Hp, NSp)
    b_fc_p = jnp.pad(b_fc, (0, NSp - n_states))                 # (NSp,)

    return {
        "w_ih_t": jnp.transpose(w_ih_p).astype(jnp.bfloat16),   # (32, 4Hp)
        "w_hh_t": jnp.transpose(w_hh_p).astype(jnp.bfloat16),   # (Hp, 4Hp)
        "b_gates": b_p.reshape(1, 4 * Hp),                      # (1, 4Hp) f32
        "w_fc_t": w_fc_p.astype(jnp.bfloat16),                  # (Hp, NSp)
        "b_fc": b_fc_p.reshape(1, NSp),                         # (1, NSp) f32
        # raw (unpadded, f32) weights, only for the pure-JAX reference checks
        "raw": (w_ih, w_hh, b_ih, b_hh, w_fc, b_fc),
    }


# ----------------------------------------------------------------------------
# Pure-JAX reference (unpadded), for correctness checks.
# cast_dtype=None        -> exact f32 PyTorch-equivalent path
# cast_dtype=jnp.bfloat16-> mirrors the kernel's bf16-weight / f32-accumulate
#                           numerics (tight tolerance check)
# ----------------------------------------------------------------------------
def reference_logits(rx, raw, n_states, cast_dtype=None):
    w_ih, w_hh, b_ih, b_hh, w_fc, b_fc = raw
    H = HIDDEN_SIZE
    B = rx.shape[0]

    def q(a):
        if cast_dtype is None:
            return a
        return a.astype(cast_dtype).astype(jnp.float32)

    w_ih_q, w_hh_q, w_fc_q = q(w_ih), q(w_hh), q(w_fc)
    x = jnp.transpose(rx.reshape(B, -1, FREQ_SPACING), (1, 0, 2))  # (T, B, 32)

    def step(carry, x_t):
        h, c = carry
        gates = q(x_t) @ w_ih_q.T + q(h) @ w_hh_q.T + b_ih + b_hh
        i = jax.nn.sigmoid(gates[:, 0 * H:1 * H])
        f = jax.nn.sigmoid(gates[:, 1 * H:2 * H])
        g = jnp.tanh(gates[:, 2 * H:3 * H])
        o = jax.nn.sigmoid(gates[:, 3 * H:4 * H])
        c = f * c + i * g
        h = o * jnp.tanh(c)
        return (h, c), h

    init = (jnp.zeros((B, H), jnp.float32), jnp.zeros((B, H), jnp.float32))
    _, hs = jax.lax.scan(step, init, x)                    # (T, B, H)
    hs = jnp.transpose(hs, (1, 0, 2))                      # (B, T, H)
    return q(jnp.maximum(hs, 0.0)) @ w_fc_q.T + b_fc       # (B, T, n_states)


if __name__ == "__main__":
    key = jax.random.PRNGKey(0)
    k_param, k_rx = jax.random.split(key)

    n_states = 8                    # power of 2 -> bits = 3
    batch = 2
    transmission_length = 256       # -> seq len T = 256 / 32 = 8

    params = make_params(k_param, n_states)
    rx = jax.random.normal(k_rx, (batch, transmission_length), dtype=jnp.float32)

    # training phase: raw logits [B, T, n_states]
    logits = signal_aware_lstm_forward(rx, params, n_states, phase="training")
    logits = jax.block_until_ready(logits)
    T = transmission_length // FREQ_SPACING
    assert logits.shape == (batch, T, n_states)

    # Tight check against a bf16-weight / f32-accumulate JAX reference
    # (mirrors the kernel's matmul numerics exactly up to summation order).
    ref_bf16 = jax.block_until_ready(
        reference_logits(rx, params["raw"], n_states, cast_dtype=jnp.bfloat16))
    assert jnp.allclose(logits, ref_bf16, atol=2e-3, rtol=2e-3), \
        float(jnp.max(jnp.abs(logits - ref_bf16)))

    # Loose check against the exact f32 PyTorch-equivalent reference
    # (quantifies the bf16-weight drift through 8 recurrent steps).
    ref_f32 = jax.block_until_ready(
        reference_logits(rx, params["raw"], n_states, cast_dtype=None))
    assert jnp.allclose(logits, ref_f32, atol=5e-2, rtol=5e-2), \
        float(jnp.max(jnp.abs(logits - ref_f32)))

    # val phase (default): detected words as bit tensor [B, T, bits]
    detected = signal_aware_lstm_forward(rx, params, n_states, phase="val")
    detected = jax.block_until_ready(detected)
    assert detected.shape == (batch, T, int(math.log2(n_states)))
    assert detected.dtype == jnp.uint8

    print("KERNEL_OK")
</pallas_src>

<mosaic_0001>
module attributes {stable_mosaic.version = 11 : i64} {
  func.func @_fused_lstm_kernel(%arg0: memref<64x32xbf16, #tpu.memory_space<vmem>>, %arg1: memref<32x512xbf16, #tpu.memory_space<vmem>>, %arg2: memref<128x512xbf16, #tpu.memory_space<vmem>>, %arg3: memref<1x512xf32, #tpu.memory_space<vmem>>, %arg4: memref<128x128xbf16, #tpu.memory_space<vmem>>, %arg5: memref<1x128xf32, #tpu.memory_space<vmem>>, %arg6: memref<64x128xf32, #tpu.memory_space<vmem>>, %arg7: memref<8x8x512xf32, #tpu.memory_space<vmem>>, %arg8: memref<8x8x128xf32, #tpu.memory_space<vmem>>) attributes {dimension_semantics = [], scalar_prefetch = 0 : i64, scratch_operands = 2 : i64, tpu.core_type = #tpu.core_type<tc>} {
    %c0 = arith.constant 0 : index
    %c0_0 = arith.constant 0 : index
    %0 = vector.load %arg0[%c0, %c0_0] : memref<64x32xbf16, #tpu.memory_space<vmem>>, vector<64x32xbf16>
    %c0_1 = arith.constant 0 : index
    %c0_2 = arith.constant 0 : index
    %1 = vector.load %arg1[%c0_1, %c0_2] : memref<32x512xbf16, #tpu.memory_space<vmem>>, vector<32x512xbf16>
    %cst = arith.constant dense<0.000000e+00> : vector<64x512xf32>
    %2 = tpu.matmul %0, %1, %cst {dimension_numbers = #tpu.dot_dimension_numbers<[1], [0], [0], [1], [0, 0, 1, 1], [], []>} : vector<64x32xbf16>, vector<32x512xbf16>, vector<64x512xf32> -> vector<64x512xf32>
    %c0_3 = arith.constant 0 : index
    %c0_4 = arith.constant 0 : index
    %3 = vector.load %arg3[%c0_3, %c0_4] : memref<1x512xf32, #tpu.memory_space<vmem>>, vector<1x512xf32>
    %4 = vector.broadcast %3 : vector<1x512xf32> to vector<64x512xf32>
    %5 = arith.addf %2, %4 : vector<64x512xf32>
    %6 = vector.shape_cast %5 : vector<64x512xf32> to vector<8x8x512xf32>
    %c0_5 = arith.constant 0 : index
    %c0_6 = arith.constant 0 : index
    %c0_7 = arith.constant 0 : index
    %7 = vector.load %arg7[%c0_5, %c0_6, %c0_7] : memref<8x8x512xf32, #tpu.memory_space<vmem>>, vector<8x8x512xf32>
    tpu.vector_store %arg7[%c0_5, %c0_6, %c0_7], %6 {strides = array<i32>} : memref<8x8x512xf32, #tpu.memory_space<vmem>>, vector<8x8x512xf32>,
    %cst_8 = arith.constant 0.000000e+00 : f32
    %8 = vector.broadcast %cst_8 : f32 to vector<8x128xf32>
    %cst_9 = arith.constant 0.000000e+00 : f32
    %9 = vector.broadcast %cst_9 : f32 to vector<8x128xf32>
    %c0_10 = arith.constant 0 : index
    %c0_11 = arith.constant 0 : index
    %c0_12 = arith.constant 0 : index
    %10 = vector.load %arg7[%c0_10, %c0_11, %c0_12] : memref<8x8x512xf32, #tpu.memory_space<vmem>>, vector<1x8x512xf32>
    %11 = vector.shape_cast %10 : vector<1x8x512xf32> to vector<8x512xf32>
    %12 = arith.truncf %8 : vector<8x128xf32> to vector<8x128xbf16>
    %c0_13 = arith.constant 0 : index
    %c0_14 = arith.constant 0 : index
    %13 = vector.load %arg2[%c0_13, %c0_14] : memref<128x512xbf16, #tpu.memory_space<vmem>>, vector<128x512xbf16>
    %cst_15 = arith.constant dense<0.000000e+00> : vector<8x512xf32>
    %14 = tpu.matmul %12, %13, %cst_15 {dimension_numbers = #tpu.dot_dimension_numbers<[1], [0], [0], [1], [0, 0, 1, 1], [], []>} : vector<8x128xbf16>, vector<128x512xbf16>, vector<8x512xf32> -> vector<8x512xf32>
    %15 = arith.addf %11, %14 : vector<8x512xf32>
    %16 = vector.extract_strided_slice %15 {offsets = [0, 0], sizes = [8, 384], strides = [1, 1]} : vector<8x512xf32> to vector<8x384xf32>
    %17 = arith.negf %16 : vector<8x384xf32>
    %18 = math.exp %17 : vector<8x384xf32>
    %cst_16 = arith.constant 1.000000e+00 : f32
    %19 = vector.broadcast %cst_16 : f32 to vector<8x384xf32>
    %20 = arith.addf %19, %18 : vector<8x384xf32>
    %21 = arith.divf %19, %20 : vector<8x384xf32>
    %22 = vector.extract_strided_slice %21 {offsets = [0, 0], sizes = [8, 128], strides = [1, 1]} : vector<8x384xf32> to vector<8x128xf32>
    %23 = vector.extract_strided_slice %21 {offsets = [0, 128], sizes = [8, 128], strides = [1, 1]} : vector<8x384xf32> to vector<8x128xf32>
    %24 = vector.extract_strided_slice %21 {offsets = [0, 256], sizes = [8, 128], strides = [1, 1]} : vector<8x384xf32> to vector<8x128xf32>
    %25 = vector.extract_strided_slice %15 {offsets = [0, 384], sizes = [8, 128], strides = [1, 1]} : vector<8x512xf32> to vector<8x128xf32>
    %26 = math.tanh %25 : vector<8x128xf32>
    %27 = arith.mulf %23, %9 : vector<8x128xf32>
    %28 = arith.mulf %22, %26 : vector<8x128xf32>
    %29 = arith.addf %27, %28 : vector<8x128xf32>
    %30 = math.tanh %29 : vector<8x128xf32>
    %31 = arith.mulf %24, %30 : vector<8x128xf32>
    %c0_17 = arith.constant 0 : index
    %c0_18 = arith.constant 0 : index
    %c0_19 = arith.constant 0 : index
    %32 = vector.load %arg8[%c0_17, %c0_18, %c0_19] : memref<8x8x128xf32, #tpu.memory_space<vmem>>, vector<1x8x128xf32>
    %33 = vector.shape_cast %32 : vector<1x8x128xf32> to vector<8x128xf32>
    %34 = vector.shape_cast %31 : vector<8x128xf32> to vector<1x8x128xf32>
    tpu.vector_store %arg8[%c0_17, %c0_18, %c0_19], %34 {strides = array<i32>} : memref<8x8x128xf32, #tpu.memory_space<vmem>>, vector<1x8x128xf32>,
    %c1 = arith.constant 1 : index
    %c0_20 = arith.constant 0 : index
    %c0_21 = arith.constant 0 : index
    %35 = vector.load %arg7[%c1, %c0_20, %c0_21] : memref<8x8x512xf32, #tpu.memory_space<vmem>>, vector<1x8x512xf32>
    %36 = vector.shape_cast %35 : vector<1x8x512xf32> to vector<8x512xf32>
    %37 = arith.truncf %31 : vector<8x128xf32> to vector<8x128xbf16>
    %c0_22 = arith.constant 0 : index
    %c0_23 = arith.constant 0 : index
    %38 = vector.load %arg2[%c0_22, %c0_23] : memref<128x512xbf16, #tpu.memory_space<vmem>>, vector<128x512xbf16>
    %cst_24 = arith.constant dense<0.000000e+00> : vector<8x512xf32>
    %39 = tpu.matmul %37, %38, %cst_24 {dimension_numbers = #tpu.dot_dimension_numbers<[1], [0], [0], [1], [0, 0, 1, 1], [], []>} : vector<8x128xbf16>, vector<128x512xbf16>, vector<8x512xf32> -> vector<8x512xf32>
    %40 = arith.addf %36, %39 : vector<8x512xf32>
    %41 = vector.extract_strided_slice %40 {offsets = [0, 0], sizes = [8, 384], strides = [1, 1]} : vector<8x512xf32> to vector<8x384xf32>
    %42 = arith.negf %41 : vector<8x384xf32>
    %43 = math.exp %42 : vector<8x384xf32>
    %cst_25 = arith.constant 1.000000e+00 : f32
    %44 = vector.broadcast %cst_25 : f32 to vector<8x384xf32>
    %45 = arith.addf %44, %43 : vector<8x384xf32>
    %46 = arith.divf %44, %45 : vector<8x384xf32>
    %47 = vector.extract_strided_slice %46 {offsets = [0, 0], sizes = [8, 128], strides = [1, 1]} : vector<8x384xf32> to vector<8x128xf32>
    %48 = vector.extract_strided_slice %46 {offsets = [0, 128], sizes = [8, 128], strides = [1, 1]} : vector<8x384xf32> to vector<8x128xf32>
    %49 = vector.extract_strided_slice %46 {offsets = [0, 256], sizes = [8, 128], strides = [1, 1]} : vector<8x384xf32> to vector<8x128xf32>
    %50 = vector.extract_strided_slice %40 {offsets = [0, 384], sizes = [8, 128], strides = [1, 1]} : vector<8x512xf32> to vector<8x128xf32>
    %51 = math.tanh %50 : vector<8x128xf32>
    %52 = arith.mulf %48, %29 : vector<8x128xf32>
    %53 = arith.mulf %47, %51 : vector<8x128xf32>
    %54 = arith.addf %52, %53 : vector<8x128xf32>
    %55 = math.tanh %54 : vector<8x128xf32>
    %56 = arith.mulf %49, %55 : vector<8x128xf32>
    %c1_26 = arith.constant 1 : index
    %c0_27 = arith.constant 0 : index
    %c0_28 = arith.constant 0 : index
    %57 = vector.load %arg8[%c1_26, %c0_27, %c0_28] : memref<8x8x128xf32, #tpu.memory_space<vmem>>, vector<1x8x128xf32>
    %58 = vector.shape_cast %57 : vector<1x8x128xf32> to vector<8x128xf32>
    %59 = vector.shape_cast %56 : vector<8x128xf32> to vector<1x8x128xf32>
    tpu.vector_store %arg8[%c1_26, %c0_27, %c0_28], %59 {strides = array<i32>} : memref<8x8x128xf32, #tpu.memory_space<vmem>>, vector<1x8x128xf32>,
    %c2 = arith.constant 2 : index
    %c0_29 = arith.constant 0 : index
    %c0_30 = arith.constant 0 : index
    %60 = vector.load %arg7[%c2, %c0_29, %c0_30] : memref<8x8x512xf32, #tpu.memory_space<vmem>>, vector<1x8x512xf32>
    %61 = vector.shape_cast %60 : vector<1x8x512xf32> to vector<8x512xf32>
    %62 = arith.truncf %56 : vector<8x128xf32> to vector<8x128xbf16>
    %c0_31 = arith.constant 0 : index
    %c0_32 = arith.constant 0 : index
    %63 = vector.load %arg2[%c0_31, %c0_32] : memref<128x512xbf16, #tpu.memory_space<vmem>>, vector<128x512xbf16>
    %cst_33 = arith.constant dense<0.000000e+00> : vector<8x512xf32>
    %64 = tpu.matmul %62, %63, %cst_33 {dimension_numbers = #tpu.dot_dimension_numbers<[1], [0], [0], [1], [0, 0, 1, 1], [], []>} : vector<8x128xbf16>, vector<128x512xbf16>, vector<8x512xf32> -> vector<8x512xf32>
    %65 = arith.addf %61, %64 : vector<8x512xf32>
    %66 = vector.extract_strided_slice %65 {offsets = [0, 0], sizes = [8, 384], strides = [1, 1]} : vector<8x512xf32> to vector<8x384xf32>
    %67 = arith.negf %66 : vector<8x384xf32>
    %68 = math.exp %67 : vector<8x384xf32>
    %cst_34 = arith.constant 1.000000e+00 : f32
    %69 = vector.broadcast %cst_34 : f32 to vector<8x384xf32>
    %70 = arith.addf %69, %68 : vector<8x384xf32>
    %71 = arith.divf %69, %70 : vector<8x384xf32>
    %72 = vector.extract_strided_slice %71 {offsets = [0, 0], sizes = [8, 128], strides = [1, 1]} : vector<8x384xf32> to vector<8x128xf32>
    %73 = vector.extract_strided_slice %71 {offsets = [0, 128], sizes = [8, 128], strides = [1, 1]} : vector<8x384xf32> to vector<8x128xf32>
    %74 = vector.extract_strided_slice %71 {offsets = [0, 256], sizes = [8, 128], strides = [1, 1]} : vector<8x384xf32> to vector<8x128xf32>
    %75 = vector.extract_strided_slice %65 {offsets = [0, 384], sizes = [8, 128], strides = [1, 1]} : vector<8x512xf32> to vector<8x128xf32>
    %76 = math.tanh %75 : vector<8x128xf32>
    %77 = arith.mulf %73, %54 : vector<8x128xf32>
    %78 = arith.mulf %72, %76 : vector<8x128xf32>
    %79 = arith.addf %77, %78 : vector<8x128xf32>
    %80 = math.tanh %79 : vector<8x128xf32>
    %81 = arith.mulf %74, %80 : vector<8x128xf32>
    %c2_35 = arith.constant 2 : index
    %c0_36 = arith.constant 0 : index
    %c0_37 = arith.constant 0 : index
    %82 = vector.load %arg8[%c2_35, %c0_36, %c0_37] : memref<8x8x128xf32, #tpu.memory_space<vmem>>, vector<1x8x128xf32>
    %83 = vector.shape_cast %82 : vector<1x8x128xf32> to vector<8x128xf32>
    %84 = vector.shape_cast %81 : vector<8x128xf32> to vector<1x8x128xf32>
    tpu.vector_store %arg8[%c2_35, %c0_36, %c0_37], %84 {strides = array<i32>} : memref<8x8x128xf32, #tpu.memory_space<vmem>>, vector<1x8x128xf32>,
    %c3 = arith.constant 3 : index
    %c0_38 = arith.constant 0 : index
    %c0_39 = arith.constant 0 : index
    %85 = vector.load %arg7[%c3, %c0_38, %c0_39] : memref<8x8x512xf32, #tpu.memory_space<vmem>>, vector<1x8x512xf32>
    %86 = vector.shape_cast %85 : vector<1x8x512xf32> to vector<8x512xf32>
    %87 = arith.truncf %81 : vector<8x128xf32> to vector<8x128xbf16>
    %c0_40 = arith.constant 0 : index
    %c0_41 = arith.constant 0 : index
    %88 = vector.load %arg2[%c0_40, %c0_41] : memref<128x512xbf16, #tpu.memory_space<vmem>>, vector<128x512xbf16>
    %cst_42 = arith.constant dense<0.000000e+00> : vector<8x512xf32>
    %89 = tpu.matmul %87, %88, %cst_42 {dimension_numbers = #tpu.dot_dimension_numbers<[1], [0], [0], [1], [0, 0, 1, 1], [], []>} : vector<8x128xbf16>, vector<128x512xbf16>, vector<8x512xf32> -> vector<8x512xf32>
    %90 = arith.addf %86, %89 : vector<8x512xf32>
    %91 = vector.extract_strided_slice %90 {offsets = [0, 0], sizes = [8, 384], strides = [1, 1]} : vector<8x512xf32> to vector<8x384xf32>
    %92 = arith.negf %91 : vector<8x384xf32>
    %93 = math.exp %92 : vector<8x384xf32>
    %cst_43 = arith.constant 1.000000e+00 : f32
    %94 = vector.broadcast %cst_43 : f32 to vector<8x384xf32>
    %95 = arith.addf %94, %93 : vector<8x384xf32>
    %96 = arith.divf %94, %95 : vector<8x384xf32>
    %97 = vector.extract_strided_slice %96 {offsets = [0, 0], sizes = [8, 128], strides = [1, 1]} : vector<8x384xf32> to vector<8x128xf32>
    %98 = vector.extract_strided_slice %96 {offsets = [0, 128], sizes = [8, 128], strides = [1, 1]} : vector<8x384xf32> to vector<8x128xf32>
    %99 = vector.extract_strided_slice %96 {offsets = [0, 256], sizes = [8, 128], strides = [1, 1]} : vector<8x384xf32> to vector<8x128xf32>
    %100 = vector.extract_strided_slice %90 {offsets = [0, 384], sizes = [8, 128], strides = [1, 1]} : vector<8x512xf32> to vector<8x128xf32>
    %101 = math.tanh %100 : vector<8x128xf32>
    %102 = arith.mulf %98, %79 : vector<8x128xf32>
    %103 = arith.mulf %97, %101 : vector<8x128xf32>
    %104 = arith.addf %102, %103 : vector<8x128xf32>
    %105 = math.tanh %104 : vector<8x128xf32>
    %106 = arith.mulf %99, %105 : vector<8x128xf32>
    %c3_44 = arith.constant 3 : index
    %c0_45 = arith.constant 0 : index
    %c0_46 = arith.constant 0 : index
    %107 = vector.load %arg8[%c3_44, %c0_45, %c0_46] : memref<8x8x128xf32, #tpu.memory_space<vmem>>, vector<1x8x128xf32>
    %108 = vector.shape_cast %107 : vector<1x8x128xf32> to vector<8x128xf32>
    %109 = vector.shape_cast %106 : vector<8x128xf32> to vector<1x8x128xf32>
    tpu.vector_store %arg8[%c3_44, %c0_45, %c0_46], %109 {strides = array<i32>} : memref<8x8x128xf32, #tpu.memory_space<vmem>>, vector<1x8x128xf32>,
    %c4 = arith.constant 4 : index
    %c0_47 = arith.constant 0 : index
    %c0_48 = arith.constant 0 : index
    %110 = vector.load %arg7[%c4, %c0_47, %c0_48] : memref<8x8x512xf32, #tpu.memory_space<vmem>>, vector<1x8x512xf32>
    %111 = vector.shape_cast %110 : vector<1x8x512xf32> to vector<8x512xf32>
    %112 = arith.truncf %106 : vector<8x128xf32> to vector<8x128xbf16>
    %c0_49 = arith.constant 0 : index
    %c0_50 = arith.constant 0 : index
    %113 = vector.load %arg2[%c0_49, %c0_50] : memref<128x512xbf16, #tpu.memory_space<vmem>>, vector<128x512xbf16>
    %cst_51 = arith.constant dense<0.000000e+00> : vector<8x512xf32>
    %114 = tpu.matmul %112, %113, %cst_51 {dimension_numbers = #tpu.dot_dimension_numbers<[1], [0], [0], [1], [0, 0, 1, 1], [], []>} : vector<8x128xbf16>, vector<128x512xbf16>, vector<8x512xf32> -> vector<8x512xf32>
    %115 = arith.addf %111, %114 : vector<8x512xf32>
    %116 = vector.extract_strided_slice %115 {offsets = [0, 0], sizes = [8, 384], strides = [1, 1]} : vector<8x512xf32> to vector<8x384xf32>
    %117 = arith.negf %116 : vector<8x384xf32>
    %118 = math.exp %117 : vector<8x384xf32>
    %cst_52 = arith.constant 1.000000e+00 : f32
    %119 = vector.broadcast %cst_52 : f32 to vector<8x384xf32>
    %120 = arith.addf %119, %118 : vector<8x384xf32>
    %121 = arith.divf %119, %120 : vector<8x384xf32>
    %122 = vector.extract_strided_slice %121 {offsets = [0, 0], sizes = [8, 128], strides = [1, 1]} : vector<8x384xf32> to vector<8x128xf32>
    %123 = vector.extract_strided_slice %121 {offsets = [0, 128], sizes = [8, 128], strides = [1, 1]} : vector<8x384xf32> to vector<8x128xf32>
    %124 = vector.extract_strided_slice %121 {offsets = [0, 256], sizes = [8, 128], strides = [1, 1]} : vector<8x384xf32> to vector<8x128xf32>
    %125 = vector.extract_strided_slice %115 {offsets = [0, 384], sizes = [8, 128], strides = [1, 1]} : vector<8x512xf32> to vector<8x128xf32>
    %126 = math.tanh %125 : vector<8x128xf32>
    %127 = arith.mulf %123, %104 : vector<8x128xf32>
    %128 = arith.mulf %122, %126 : vector<8x128xf32>
    %129 = arith.addf %127, %128 : vector<8x128xf32>
    %130 = math.tanh %129 : vector<8x128xf32>
    %131 = arith.mulf %124, %130 : vector<8x128xf32>
    %c4_53 = arith.constant 4 : index
    %c0_54 = arith.constant 0 : index
    %c0_55 = arith.constant 0 : index
    %132 = vector.load %arg8[%c4_53, %c0_54, %c0_55] : memref<8x8x128xf32, #tpu.memory_space<vmem>>, vector<1x8x128xf32>
    %133 = vector.shape_cast %132 : vector<1x8x128xf32> to vector<8x128xf32>
    %134 = vector.shape_cast %131 : vector<8x128xf32> to vector<1x8x128xf32>
    tpu.vector_store %arg8[%c4_53, %c0_54, %c0_55], %134 {strides = array<i32>} : memref<8x8x128xf32, #tpu.memory_space<vmem>>, vector<1x8x128xf32>,
    %c5 = arith.constant 5 : index
    %c0_56 = arith.constant 0 : index
    %c0_57 = arith.constant 0 : index
    %135 = vector.load %arg7[%c5, %c0_56, %c0_57] : memref<8x8x512xf32, #tpu.memory_space<vmem>>, vector<1x8x512xf32>
    %136 = vector.shape_cast %135 : vector<1x8x512xf32> to vector<8x512xf32>
    %137 = arith.truncf %131 : vector<8x128xf32> to vector<8x128xbf16>
    %c0_58 = arith.constant 0 : index
    %c0_59 = arith.constant 0 : index
    %138 = vector.load %arg2[%c0_58, %c0_59] : memref<128x512xbf16, #tpu.memory_space<vmem>>, vector<128x512xbf16>
    %cst_60 = arith.constant dense<0.000000e+00> : vector<8x512xf32>
    %139 = tpu.matmul %137, %138, %cst_60 {dimension_numbers = #tpu.dot_dimension_numbers<[1], [0], [0], [1], [0, 0, 1, 1], [], []>} : vector<8x128xbf16>, vector<128x512xbf16>, vector<8x512xf32> -> vector<8x512xf32>
    %140 = arith.addf %136, %139 : vector<8x512xf32>
    %141 = vector.extract_strided_slice %140 {offsets = [0, 0], sizes = [8, 384], strides = [1, 1]} : vector<8x512xf32> to vector<8x384xf32>
    %142 = arith.negf %141 : vector<8x384xf32>
    %143 = math.exp %142 : vector<8x384xf32>
    %cst_61 = arith.constant 1.000000e+00 : f32
    %144 = vector.broadcast %cst_61 : f32 to vector<8x384xf32>
    %145 = arith.addf %144, %143 : vector<8x384xf32>
    %146 = arith.divf %144, %145 : vector<8x384xf32>
    %147 = vector.extract_strided_slice %146 {offsets = [0, 0], sizes = [8, 128], strides = [1, 1]} : vector<8x384xf32> to vector<8x128xf32>
    %148 = vector.extract_strided_slice %146 {offsets = [0, 128], sizes = [8, 128], strides = [1, 1]} : vector<8x384xf32> to vector<8x128xf32>
    %149 = vector.extract_strided_slice %146 {offsets = [0, 256], sizes = [8, 128], strides = [1, 1]} : vector<8x384xf32> to vector<8x128xf32>
    %150 = vector.extract_strided_slice %140 {offsets = [0, 384], sizes = [8, 128], strides = [1, 1]} : vector<8x512xf32> to vector<8x128xf32>
    %151 = math.tanh %150 : vector<8x128xf32>
    %152 = arith.mulf %148, %129 : vector<8x128xf32>
    %153 = arith.mulf %147, %151 : vector<8x128xf32>
    %154 = arith.addf %152, %153 : vector<8x128xf32>
    %155 = math.tanh %154 : vector<8x128xf32>
    %156 = arith.mulf %149, %155 : vector<8x128xf32>
    %c5_62 = arith.constant 5 : index
    %c0_63 = arith.constant 0 : index
    %c0_64 = arith.constant 0 : index
    %157 = vector.load %arg8[%c5_62, %c0_63, %c0_64] : memref<8x8x128xf32, #tpu.memory_space<vmem>>, vector<1x8x128xf32>
    %158 = vector.shape_cast %157 : vector<1x8x128xf32> to vector<8x128xf32>
    %159 = vector.shape_cast %156 : vector<8x128xf32> to vector<1x8x128xf32>
    tpu.vector_store %arg8[%c5_62, %c0_63, %c0_64], %159 {strides = array<i32>} : memref<8x8x128xf32, #tpu.memory_space<vmem>>, vector<1x8x128xf32>,
    %c6 = arith.constant 6 : index
    %c0_65 = arith.constant 0 : index
    %c0_66 = arith.constant 0 : index
    %160 = vector.load %arg7[%c6, %c0_65, %c0_66] : memref<8x8x512xf32, #tpu.memory_space<vmem>>, vector<1x8x512xf32>
    %161 = vector.shape_cast %160 : vector<1x8x512xf32> to vector<8x512xf32>
    %162 = arith.truncf %156 : vector<8x128xf32> to vector<8x128xbf16>
    %c0_67 = arith.constant 0 : index
    %c0_68 = arith.constant 0 : index
    %163 = vector.load %arg2[%c0_67, %c0_68] : memref<128x512xbf16, #tpu.memory_space<vmem>>, vector<128x512xbf16>
    %cst_69 = arith.constant dense<0.000000e+00> : vector<8x512xf32>
    %164 = tpu.matmul %162, %163, %cst_69 {dimension_numbers = #tpu.dot_dimension_numbers<[1], [0], [0], [1], [0, 0, 1, 1], [], []>} : vector<8x128xbf16>, vector<128x512xbf16>, vector<8x512xf32> -> vector<8x512xf32>
    %165 = arith.addf %161, %164 : vector<8x512xf32>
    %166 = vector.extract_strided_slice %165 {offsets = [0, 0], sizes = [8, 384], strides = [1, 1]} : vector<8x512xf32> to vector<8x384xf32>
    %167 = arith.negf %166 : vector<8x384xf32>
    %168 = math.exp %167 : vector<8x384xf32>
    %cst_70 = arith.constant 1.000000e+00 : f32
    %169 = vector.broadcast %cst_70 : f32 to vector<8x384xf32>
    %170 = arith.addf %169, %168 : vector<8x384xf32>
    %171 = arith.divf %169, %170 : vector<8x384xf32>
    %172 = vector.extract_strided_slice %171 {offsets = [0, 0], sizes = [8, 128], strides = [1, 1]} : vector<8x384xf32> to vector<8x128xf32>
    %173 = vector.extract_strided_slice %171 {offsets = [0, 128], sizes = [8, 128], strides = [1, 1]} : vector<8x384xf32> to vector<8x128xf32>
    %174 = vector.extract_strided_slice %171 {offsets = [0, 256], sizes = [8, 128], strides = [1, 1]} : vector<8x384xf32> to vector<8x128xf32>
    %175 = vector.extract_strided_slice %165 {offsets = [0, 384], sizes = [8, 128], strides = [1, 1]} : vector<8x512xf32> to vector<8x128xf32>
    %176 = math.tanh %175 : vector<8x128xf32>
    %177 = arith.mulf %173, %154 : vector<8x128xf32>
    %178 = arith.mulf %172, %176 : vector<8x128xf32>
    %179 = arith.addf %177, %178 : vector<8x128xf32>
    %180 = math.tanh %179 : vector<8x128xf32>
    %181 = arith.mulf %174, %180 : vector<8x128xf32>
    %c6_71 = arith.constant 6 : index
    %c0_72 = arith.constant 0 : index
    %c0_73 = arith.constant 0 : index
    %182 = vector.load %arg8[%c6_71, %c0_72, %c0_73] : memref<8x8x128xf32, #tpu.memory_space<vmem>>, vector<1x8x128xf32>
    %183 = vector.shape_cast %182 : vector<1x8x128xf32> to vector<8x128xf32>
    %184 = vector.shape_cast %181 : vector<8x128xf32> to vector<1x8x128xf32>
    tpu.vector_store %arg8[%c6_71, %c0_72, %c0_73], %184 {strides = array<i32>} : memref<8x8x128xf32, #tpu.memory_space<vmem>>, vector<1x8x128xf32>,
    %c7 = arith.constant 7 : index
    %c0_74 = arith.constant 0 : index
    %c0_75 = arith.constant 0 : index
    %185 = vector.load %arg7[%c7, %c0_74, %c0_75] : memref<8x8x512xf32, #tpu.memory_space<vmem>>, vector<1x8x512xf32>
    %186 = vector.shape_cast %185 : vector<1x8x512xf32> to vector<8x512xf32>
    %187 = arith.truncf %181 : vector<8x128xf32> to vector<8x128xbf16>
    %c0_76 = arith.constant 0 : index
    %c0_77 = arith.constant 0 : index
    %188 = vector.load %arg2[%c0_76, %c0_77] : memref<128x512xbf16, #tpu.memory_space<vmem>>, vector<128x512xbf16>
    %cst_78 = arith.constant dense<0.000000e+00> : vector<8x512xf32>
    %189 = tpu.matmul %187, %188, %cst_78 {dimension_numbers = #tpu.dot_dimension_numbers<[1], [0], [0], [1], [0, 0, 1, 1], [], []>} : vector<8x128xbf16>, vector<128x512xbf16>, vector<8x512xf32> -> vector<8x512xf32>
    %190 = arith.addf %186, %189 : vector<8x512xf32>
    %191 = vector.extract_strided_slice %190 {offsets = [0, 0], sizes = [8, 384], strides = [1, 1]} : vector<8x512xf32> to vector<8x384xf32>
    %192 = arith.negf %191 : vector<8x384xf32>
    %193 = math.exp %192 : vector<8x384xf32>
    %cst_79 = arith.constant 1.000000e+00 : f32
    %194 = vector.broadcast %cst_79 : f32 to vector<8x384xf32>
    %195 = arith.addf %194, %193 : vector<8x384xf32>
    %196 = arith.divf %194, %195 : vector<8x384xf32>
    %197 = vector.extract_strided_slice %196 {offsets = [0, 0], sizes = [8, 128], strides = [1, 1]} : vector<8x384xf32> to vector<8x128xf32>
    %198 = vector.extract_strided_slice %196 {offsets = [0, 128], sizes = [8, 128], strides = [1, 1]} : vector<8x384xf32> to vector<8x128xf32>
    %199 = vector.extract_strided_slice %196 {offsets = [0, 256], sizes = [8, 128], strides = [1, 1]} : vector<8x384xf32> to vector<8x128xf32>
    %200 = vector.extract_strided_slice %190 {offsets = [0, 384], sizes = [8, 128], strides = [1, 1]} : vector<8x512xf32> to vector<8x128xf32>
    %201 = math.tanh %200 : vector<8x128xf32>
    %202 = arith.mulf %198, %179 : vector<8x128xf32>
    %203 = arith.mulf %197, %201 : vector<8x128xf32>
    %204 = arith.addf %202, %203 : vector<8x128xf32>
    %205 = math.tanh %204 : vector<8x128xf32>
    %206 = arith.mulf %199, %205 : vector<8x128xf32>
    %c7_80 = arith.constant 7 : index
    %c0_81 = arith.constant 0 : index
    %c0_82 = arith.constant 0 : index
    %207 = vector.load %arg8[%c7_80, %c0_81, %c0_82] : memref<8x8x128xf32, #tpu.memory_space<vmem>>, vector<1x8x128xf32>
    %208 = vector.shape_cast %207 : vector<1x8x128xf32> to vector<8x128xf32>
    %209 = vector.shape_cast %206 : vector<8x128xf32> to vector<1x8x128xf32>
    tpu.vector_store %arg8[%c7_80, %c0_81, %c0_82], %209 {strides = array<i32>} : memref<8x8x128xf32, #tpu.memory_space<vmem>>, vector<1x8x128xf32>,
    %c0_83 = arith.constant 0 : index
    %c0_84 = arith.constant 0 : index
    %c0_85 = arith.constant 0 : index
    %210 = vector.load %arg8[%c0_83, %c0_84, %c0_85] : memref<8x8x128xf32, #tpu.memory_space<vmem>>, vector<8x8x128xf32>
    %211 = vector.shape_cast %210 : vector<8x8x128xf32> to vector<64x128xf32>
    %cst_86 = arith.constant 0.000000e+00 : f32
    %212 = vector.broadcast %cst_86 : f32 to vector<64x128xf32>
    %213 = arith.maximumf %211, %212 : vector<64x128xf32>
    %214 = arith.truncf %213 : vector<64x128xf32> to vector<64x128xbf16>
    %c0_87 = arith.constant 0 : index
    %c0_88 = arith.constant 0 : index
    %215 = vector.load %arg4[%c0_87, %c0_88] : memref<128x128xbf16, #tpu.memory_space<vmem>>, vector<128x128xbf16>
    %cst_89 = arith.constant dense<0.000000e+00> : vector<64x128xf32>
    %216 = tpu.matmul %214, %215, %cst_89 {dimension_numbers = #tpu.dot_dimension_numbers<[1], [0], [0], [1], [0, 0, 1, 1], [], []>} : vector<64x128xbf16>, vector<128x128xbf16>, vector<64x128xf32> -> vector<64x128xf32>
    %c0_90 = arith.constant 0 : index
    %c0_91 = arith.constant 0 : index
    %217 = vector.load %arg5[%c0_90, %c0_91] : memref<1x128xf32, #tpu.memory_space<vmem>>, vector<1x128xf32>
    %218 = vector.broadcast %217 : vector<1x128xf32> to vector<64x128xf32>
    %219 = arith.addf %216, %218 : vector<64x128xf32>
    %c0_92 = arith.constant 0 : index
    %c0_93 = arith.constant 0 : index
    %220 = vector.load %arg6[%c0_92, %c0_93] : memref<64x128xf32, #tpu.memory_space<vmem>>, vector<64x128xf32>
    tpu.vector_store %arg6[%c0_92, %c0_93], %219 {strides = array<i32>} : memref<64x128xf32, #tpu.memory_space<vmem>>, vector<64x128xf32>,
    return
  }
}

</mosaic_0001>

<llo_original>
// kernel: tpu_custom_call.1
$region0: #{tpu_custom_call.1}
  #allocation0 [shape = 'u32[]', space=smem, size = 0x4, offset = 0x4, fixed_abs, tag = 'smem constant byte address 0x4 - core index']
  #allocation1 [shape = 'u32[144,128]{1,0:T(1,128)}', space=vmem, size = 0x12000, scoped, tag = 'internal scratch']
  #allocation2 [shape = 'f32[8,8,512]{2,1,0:T(8,128)}', space=vmem, size = 0x20000, scoped, tag = 'scratch operand']
  #allocation3 [shape = 'f32[8,8,128]{2,1,0:T(8,128)}', space=vmem, size = 0x8000, scoped, tag = 'scratch operand']
  %s0 = inlined_call_operand.vmem [shape: bf16[64,32], index: 0, kind: input, shape index: {}]
  %s1 = inlined_call_operand.hbm [shape: bf16[32,512], index: 1, kind: input, shape index: {}]
  %s2 = inlined_call_operand.hbm [shape: bf16[128,512], index: 2, kind: input, shape index: {}]
  %s3 = inlined_call_operand.vmem [shape: f32[1,512], index: 3, kind: input, shape index: {}]
  %s4 = inlined_call_operand.hbm [shape: bf16[128,128], index: 4, kind: input, shape index: {}]
  %s5 = inlined_call_operand.vmem [shape: f32[1,128], index: 5, kind: input, shape index: {}]
  %s6 = inlined_call_operand.hbm [shape: f32[64,128], index: 6, kind: output, shape index: {}]
  %s7 = sld [smem:[#allocation0]]
  $region46: #{tpu_custom_call.1} parent=0
    _
  %s9 = ssub.s32 1, %s7
  %s10 = scalar_select 0, %s9, %s7
  $region1: #{tpu_custom_call.1} parent=0
    #allocation4 [shape = 'u8[32768]{0}', space=vmem, size = 0x8000, scoped, tag = 'input window, operand 1, single buffered']
    #allocation5 [shape = 's32[1]{0}', space=sflag, size = 0x4, scoped, tag = 'scoped memory for tpu_custom_call.1']
    #allocation6 [shape = 's32[1]{0}', space=sflag, size = 0x4, scoped, tag = 'scoped memory for tpu_custom_call.1']
    #allocation7 [shape = 'u8[131072]{0}', space=vmem, size = 0x20000, scoped, tag = 'input window, operand 2, single buffered']
    #allocation8 [shape = 's32[1]{0}', space=sflag, size = 0x4, scoped, tag = 'scoped memory for tpu_custom_call.1']
    #allocation9 [shape = 'u8[32768]{0}', space=vmem, size = 0x8000, scoped, tag = 'input window, operand 4, single buffered']
    #allocation10 [shape = 'u8[32768]{0}', space=vmem, size = 0x8000, scoped, tag = 'output window, operand 0, single buffered']
    %11 = vsyncpa [#allocation5], 0
    %12 = vsyncpa [#allocation8], 0
    %13 = vsyncpa [#allocation6], 0
    // Predicated region
    $region2: #{tpu_custom_call.1} parent=1 // pred_check
      _
    $region3: #{tpu_custom_call.1} parent=1 // pred_check_branch
      %15 = sbr.rel (0) target = $region5
    $region4: #{tpu_custom_call.1} parent=1 // pred_region
      _
    $region5: #{tpu_custom_call.1} parent=1 // pred_fallthru
      _
    // Predicated region
    $region6: #{tpu_custom_call.1} parent=1 // pred_check
      _
    $region7: #{tpu_custom_call.1} parent=1 // pred_check_branch
      %17 = sbr.rel (0) target = $region9
    $region8: #{tpu_custom_call.1} parent=1 // pred_region
      %s19 = ssub.s32 1024, 1024
      %20 = vsyncadd [#allocation5], %s19
      %s21 = sshll.u32 [#allocation4], 4
      %s22 = int_to_ptr.vmem [resolvable:$true] %s21
      %27 = dma.hbm_to_vmem [thread:$0]  %s1, 1024, %s22, [#allocation5], 256, 256, 16
    $region9: #{tpu_custom_call.1} parent=1 // pred_fallthru
      _
    // Predicated region
    $region10: #{tpu_custom_call.1} parent=1 // pred_check
      _
    $region11: #{tpu_custom_call.1} parent=1 // pred_check_branch
      %29 = sbr.rel (0) target = $region13
    $region12: #{tpu_custom_call.1} parent=1 // pred_region
      %s31 = ssub.s32 4096, 4096
      %32 = vsyncadd [#allocation8], %s31
      %s33 = sshll.u32 [#allocation7], 4
      %s34 = int_to_ptr.vmem [resolvable:$true] %s33
      %39 = dma.hbm_to_vmem [thread:$0]  %s2, 4096, %s34, [#allocation8], 256, 256, 16
    $region13: #{tpu_custom_call.1} parent=1 // pred_fallthru
      _
    // Predicated region
    $region14: #{tpu_custom_call.1} parent=1 // pred_check
      _
    $region15: #{tpu_custom_call.1} parent=1 // pred_check_branch
      %41 = sbr.rel (0) target = $region17
    $region16: #{tpu_custom_call.1} parent=1 // pred_region
      _
    $region17: #{tpu_custom_call.1} parent=1 // pred_fallthru
      _
    // Predicated region
    $region18: #{tpu_custom_call.1} parent=1 // pred_check
      _
    $region19: #{tpu_custom_call.1} parent=1 // pred_check_branch
      %43 = sbr.rel (0) target = $region21
    $region20: #{tpu_custom_call.1} parent=1 // pred_region
      %s45 = ssub.s32 1024, 1024
      %46 = vsyncadd [#allocation8], %s45
      %s47 = sshll.u32 [#allocation9], 4
      %s48 = int_to_ptr.vmem [resolvable:$true] %s47
      %53 = dma.hbm_to_vmem [thread:$0]  %s4, 1024, %s48, [#allocation8], 64, 64, 4
    $region21: #{tpu_custom_call.1} parent=1 // pred_fallthru
      _
    // Predicated region
    $region22: #{tpu_custom_call.1} parent=1 // pred_check
      _
    $region23: #{tpu_custom_call.1} parent=1 // pred_check_branch
      %55 = sbr.rel (0) target = $region25
    $region24: #{tpu_custom_call.1} parent=1 // pred_region
      _
    $region25: #{tpu_custom_call.1} parent=1 // pred_fallthru
      _
    // Predicated region
    $region26: #{tpu_custom_call.1} parent=1 // pred_check
      _
    $region27: #{tpu_custom_call.1} parent=1 // pred_check_branch
      %57 = sbr.rel (0) target = $region29
    $region28: #{tpu_custom_call.1} parent=1 // pred_region
      %58 = dma.done [#allocation5], 1024
    $region29: #{tpu_custom_call.1} parent=1 // pred_fallthru
      _
    // Predicated region
    $region30: #{tpu_custom_call.1} parent=1 // pred_check
      _
    $region31: #{tpu_custom_call.1} parent=1 // pred_check_branch
      %60 = sbr.rel (0) target = $region33
    $region32: #{tpu_custom_call.1} parent=1 // pred_region
      %61 = dma.done [#allocation8], 4096
    $region33: #{tpu_custom_call.1} parent=1 // pred_fallthru
      _
    // Predicated region
    $region34: #{tpu_custom_call.1} parent=1 // pred_check
      _
    $region35: #{tpu_custom_call.1} parent=1 // pred_check_branch
      %63 = sbr.rel (0) target = $region37
    $region36: #{tpu_custom_call.1} parent=1 // pred_region
      %64 = dma.done [#allocation8], 1024
    $region37: #{tpu_custom_call.1} parent=1 // pred_fallthru
      _
    %v66 = vld [vmem:[%s0] sm:$0xf]
    %v67 = vld [vmem:[%s0 + $0x4] sm:$0xf]
    %v68 = vld [vmem:[%s0 + $0x8] sm:$0xf]
    %v69 = vld [vmem:[%s0 + $0xc] sm:$0xf]
    %v70 = vld [vmem:[%s0 + $0x10] sm:$0xf]
    %v71 = vld [vmem:[%s0 + $0x14] sm:$0xf]
    %v72 = vld [vmem:[%s0 + $0x18] sm:$0xf]
    %v73 = vld [vmem:[%s0 + $0x1c] sm:$0xf]
    %v74 = vld [vmem:[#allocation4] sm:$0xff]
    %v75 = vld [vmem:[#allocation4 + $0x8] sm:$0xff]
    %v76 = vld [vmem:[#allocation4 + $0x10] sm:$0xff]
    %v77 = vld [vmem:[#allocation4 + $0x18] sm:$0xff]
    %v78 = vld [vmem:[#allocation4 + $0x20] sm:$0xff]
    %v79 = vld [vmem:[#allocation4 + $0x28] sm:$0xff]
    %v80 = vld [vmem:[#allocation4 + $0x30] sm:$0xff]
    %v81 = vld [vmem:[#allocation4 + $0x38] sm:$0xff]
    %v82 = vld [vmem:[%s3] sm:$0xf]
    %v84 = vlaneseq
    %v85 = vshrl.u32 %v84, 7
    %v86 = vsub.s32 0, %v85
    %v87 = vrot.slane %v82, %v86
    %v88 = vlaneseq
    %v89 = vshrl.u32 %v88, 7
    %v90 = vsub.s32 1, %v89
    %v91 = vrot.slane %v82, %v90
    %v92 = vlaneseq
    %v93 = vshrl.u32 %v92, 7
    %v94 = vsub.s32 2, %v93
    %v95 = vrot.slane %v82, %v94
    %v96 = vlaneseq
    %v97 = vshrl.u32 %v96, 7
    %v98 = vsub.s32 3, %v97
    %v99 = vrot.slane %v82, %v98
    %v112 = vunpack.c.l.b16 %v66
    %v113 = vunpack.c.l.b16 %v67
    %v114 = vunpack.c.l.b16 %v68
    %v115 = vunpack.c.l.b16 %v69
    %v116 = vunpack.c.l.b16 %v70
    %v117 = vunpack.c.l.b16 %v71
    %v118 = vunpack.c.l.b16 %v72
    %v119 = vunpack.c.l.b16 %v73
    %v120 = vpack.c.b16 %v113, %v112
    %v121 = vpack.c.b16 %v115, %v114
    %v122 = vpack.c.b16 %v117, %v116
    %v123 = vpack.c.b16 %v119, %v118
    %v132 = vunpack.c.l.b16 %v74
    %v133 = vunpack.c.h.b16 %v74
    %v134 = vunpack.c.l.b16 %v75
    %v135 = vunpack.c.h.b16 %v75
    %v136 = vunpack.c.l.b16 %v76
    %v137 = vunpack.c.h.b16 %v76
    %v138 = vunpack.c.l.b16 %v77
    %v139 = vunpack.c.h.b16 %v77
    %v140 = vunpack.c.l.b16 %v78
    %v141 = vunpack.c.h.b16 %v78
    %v142 = vunpack.c.l.b16 %v79
    %v143 = vunpack.c.h.b16 %v79
    %v144 = vunpack.c.l.b16 %v80
    %v145 = vunpack.c.h.b16 %v80
    %v146 = vunpack.c.l.b16 %v81
    %v147 = vunpack.c.h.b16 %v81
    %v148 = vpack.c.b16 %v136, %v132
    %v149 = vpack.c.b16 %v137, %v133
    %v150 = vpack.c.b16 %v138, %v134
    %v151 = vpack.c.b16 %v139, %v135
    %v152 = vpack.c.b16 %v144, %v140
    %v153 = vpack.c.b16 %v145, %v141
    %v154 = vpack.c.b16 %v146, %v142
    %v155 = vpack.c.b16 %v147, %v143
    %vm164 = vcmask 261120
    %v166 = vsel %vm164, %v120, 0
    %v169 = vsel %vm164, %v121, 0
    %v172 = vsel %vm164, %v122, 0
    %v175 = vsel %vm164, %v123, 0
    %177 = vmatprep.subr.bf16.mxu0 %v149
    %178 = vmatpush1.bf16.msra.mxu0 %v148
    %179 = vmatprep.subr.bf16.mxu0 %v153
    %180 = vmatpush1.bf16.msra.mxu0 %v152
    %181 = vmatprep.subr.bf16.mxu0 0
    %182 = vmatpush1.bf16.msra.mxu0 0
    %183 = vmatprep.subr.bf16.mxu0 0
    %184 = vmatpush1.bf16.msra.mxu0 0
    %185 = vmatprep.subr.bf16.mxu0 0
    %186 = vmatpush1.bf16.msra.mxu0 0
    %187 = vmatprep.subr.bf16.mxu0 0
    %188 = vmatpush1.bf16.msra.mxu0 0
    %189 = vmatprep.subr.bf16.mxu0 0
    %190 = vmatpush1.bf16.msra.mxu0 0
    %191 = vmatprep.subr.bf16.mxu0 0
    %192 = vmatpush1.bf16.msra.mxu0 0
    %193 = vmatprep.subr.bf16.mxu0 0
    %194 = vmatpush1.bf16.msra.mxu0 0
    %195 = vmatprep.subr.bf16.mxu0 0
    %196 = vmatpush1.bf16.msra.mxu0 0
    %197 = vmatprep.subr.bf16.mxu0 0
    %198 = vmatpush1.bf16.msra.mxu0 0
    %199 = vmatprep.subr.bf16.mxu0 0
    %200 = vmatpush1.bf16.msra.mxu0 0
    %201 = vmatprep.subr.bf16.mxu0 0
    %202 = vmatpush1.bf16.msra.mxu0 0
    %203 = vmatprep.subr.bf16.mxu0 0
    %204 = vmatpush1.bf16.msra.mxu0 0
    %205 = vmatprep.subr.bf16.mxu0 0
    %206 = vmatpush1.bf16.msra.mxu0 0
    %207 = vmatprep.subr.bf16.mxu0 0
    %208 = vmatpush1.bf16.msra.mxu0 0
    %209 = vmatprep.mubr.bf16.mxu0 0
    %210 = vmatmul.mubr.bf16.gmra.mrb[0].mxu0 %v166
    %v211 = vpop.f32.mrb[0].mxu0
    %v212 = vadd.f32 %v87, %v211
    %v213 = vpop.f32.mrb[0].mxu0
    %v214 = vadd.f32 %v91, %v213
    %v215 = vpop.f32.mrb[0].mxu0
    %v216 = vadd.f32 %v87, %v215
    %v217 = vpop.f32.mrb[0].mxu0
    %v218 = vadd.f32 %v91, %v217
    %219 = vmatprep.mubr.bf16.mxu0 0
    %220 = vmatmul.mubr.bf16.gmra.mrb[0].mxu0 %v169
    %v221 = vpop.f32.mrb[0].mxu0
    %v222 = vadd.f32 %v87, %v221
    %v223 = vpop.f32.mrb[0].mxu0
    %v224 = vadd.f32 %v91, %v223
    %v225 = vpop.f32.mrb[0].mxu0
    %v226 = vadd.f32 %v87, %v225
    %v227 = vpop.f32.mrb[0].mxu0
    %v228 = vadd.f32 %v91, %v227
    %229 = vmatprep.mubr.bf16.mxu0 0
    %230 = vmatmul.mubr.bf16.gmra.mrb[0].mxu0 %v172
    %v231 = vpop.f32.mrb[0].mxu0
    %v232 = vadd.f32 %v87, %v231
    %v233 = vpop.f32.mrb[0].mxu0
    %v234 = vadd.f32 %v91, %v233
    %v235 = vpop.f32.mrb[0].mxu0
    %v236 = vadd.f32 %v87, %v235
    %v237 = vpop.f32.mrb[0].mxu0
    %v238 = vadd.f32 %v91, %v237
    %239 = vmatprep.mubr.bf16.mxu0 0
    %240 = vmatmul.mubr.bf16.gmra.mrb[0].mxu0 %v175
    %v241 = vpop.f32.mrb[0].mxu0
    %v242 = vadd.f32 %v87, %v241
    %v243 = vpop.f32.mrb[0].mxu0
    %v244 = vadd.f32 %v91, %v243
    %v245 = vpop.f32.mrb[0].mxu0
    %v246 = vadd.f32 %v87, %v245
    %v247 = vpop.f32.mrb[0].mxu0
    %v248 = vadd.f32 %v91, %v247
    %249 = vdwg.mxu0
    %250 = vmatprep.subr.bf16.mxu0 %v151
    %251 = vmatpush1.bf16.msra.mxu0 %v150
    %252 = vmatprep.subr.bf16.mxu0 %v155
    %253 = vmatpush1.bf16.msra.mxu0 %v154
    %254 = vmatprep.subr.bf16.mxu0 0
    %255 = vmatpush1.bf16.msra.mxu0 0
    %256 = vmatprep.subr.bf16.mxu0 0
    %257 = vmatpush1.bf16.msra.mxu0 0
    %258 = vmatprep.subr.bf16.mxu0 0
    %259 = vmatpush1.bf16.msra.mxu0 0
    %260 = vmatprep.subr.bf16.mxu0 0
    %261 = vmatpush1.bf16.msra.mxu0 0
    %262 = vmatprep.subr.bf16.mxu0 0
    %263 = vmatpush1.bf16.msra.mxu0 0
    %264 = vmatprep.subr.bf16.mxu0 0
    %265 = vmatpush1.bf16.msra.mxu0 0
    %266 = vmatprep.subr.bf16.mxu0 0
    %267 = vmatpush1.bf16.msra.mxu0 0
    %268 = vmatprep.subr.bf16.mxu0 0
    %269 = vmatpush1.bf16.msra.mxu0 0
    %270 = vmatprep.subr.bf16.mxu0 0
    %271 = vmatpush1.bf16.msra.mxu0 0
    %272 = vmatprep.subr.bf16.mxu0 0
    %273 = vmatpush1.bf16.msra.mxu0 0
    %274 = vmatprep.subr.bf16.mxu0 0
    %275 = vmatpush1.bf16.msra.mxu0 0
    %276 = vmatprep.subr.bf16.mxu0 0
    %277 = vmatpush1.bf16.msra.mxu0 0
    %278 = vmatprep.subr.bf16.mxu0 0
    %279 = vmatpush1.bf16.msra.mxu0 0
    %280 = vmatprep.subr.bf16.mxu0 0
    %281 = vmatpush1.bf16.msra.mxu0 0
    %282 = vmatprep.mubr.bf16.mxu0 0
    %283 = vmatmul.mubr.bf16.gmra.mrb[0].mxu0 %v166
    %v284 = vpop.f32.mrb[0].mxu0
    %v285 = vadd.f32 %v95, %v284
    %v286 = vpop.f32.mrb[0].mxu0
    %v287 = vadd.f32 %v99, %v286
    %v288 = vpop.f32.mrb[0].mxu0
    %v289 = vadd.f32 %v95, %v288
    %v290 = vpop.f32.mrb[0].mxu0
    %v291 = vadd.f32 %v99, %v290
    %292 = vmatprep.mubr.bf16.mxu0 0
    %293 = vmatmul.mubr.bf16.gmra.mrb[0].mxu0 %v169
    %v294 = vpop.f32.mrb[0].mxu0
    %v295 = vadd.f32 %v95, %v294
    %v296 = vpop.f32.mrb[0].mxu0
    %v297 = vadd.f32 %v99, %v296
    %v298 = vpop.f32.mrb[0].mxu0
    %v299 = vadd.f32 %v95, %v298
    %v300 = vpop.f32.mrb[0].mxu0
    %v301 = vadd.f32 %v99, %v300
    %302 = vmatprep.mubr.bf16.mxu0 0
    %303 = vmatmul.mubr.bf16.gmra.mrb[0].mxu0 %v172
    %v304 = vpop.f32.mrb[0].mxu0
    %v305 = vadd.f32 %v95, %v304
    %v306 = vpop.f32.mrb[0].mxu0
    %v307 = vadd.f32 %v99, %v306
    %v308 = vpop.f32.mrb[0].mxu0
    %v309 = vadd.f32 %v95, %v308
    %v310 = vpop.f32.mrb[0].mxu0
    %v311 = vadd.f32 %v99, %v310
    %312 = vmatprep.mubr.bf16.mxu0 0
    %313 = vmatmul.mubr.bf16.gmra.mrb[0].mxu0 %v175
    %v314 = vpop.f32.mrb[0].mxu0
    %v315 = vadd.f32 %v95, %v314
    %v316 = vpop.f32.mrb[0].mxu0
    %v317 = vadd.f32 %v99, %v316
    %v318 = vpop.f32.mrb[0].mxu0
    %v319 = vadd.f32 %v95, %v318
    %v320 = vpop.f32.mrb[0].mxu0
    %v321 = vadd.f32 %v99, %v320
    %322 = vdwg.mxu0
    %323 = vst [vmem:[#allocation2] sm:$0xff] %v212
    %324 = vst [vmem:[#allocation2 + $0x8] sm:$0xff] %v214
    %325 = vst [vmem:[#allocation2 + $0x10] sm:$0xff] %v285
    %326 = vst [vmem:[#allocation2 + $0x18] sm:$0xff] %v287
    %327 = vst [vmem:[#allocation2 + $0x20] sm:$0xff] %v216
    %328 = vst [vmem:[#allocation2 + $0x28] sm:$0xff] %v218
    %329 = vst [vmem:[#allocation2 + $0x30] sm:$0xff] %v289
    %330 = vst [vmem:[#allocation2 + $0x38] sm:$0xff] %v291
    %331 = vst [vmem:[#allocation2 + $0x40] sm:$0xff] %v222
    %332 = vst [vmem:[#allocation2 + $0x48] sm:$0xff] %v224
    %333 = vst [vmem:[#allocation2 + $0x50] sm:$0xff] %v295
    %334 = vst [vmem:[#allocation2 + $0x58] sm:$0xff] %v297
    %335 = vst [vmem:[#allocation2 + $0x60] sm:$0xff] %v226
    %336 = vst [vmem:[#allocation2 + $0x68] sm:$0xff] %v228
    %337 = vst [vmem:[#allocation2 + $0x70] sm:$0xff] %v299
    %338 = vst [vmem:[#allocation2 + $0x78] sm:$0xff] %v301
    %339 = vst [vmem:[#allocation2 + $0x80] sm:$0xff] %v232
    %340 = vst [vmem:[#allocation2 + $0x88] sm:$0xff] %v234
    %341 = vst [vmem:[#allocation2 + $0x90] sm:$0xff] %v305
    %342 = vst [vmem:[#allocation2 + $0x98] sm:$0xff] %v307
    %343 = vst [vmem:[#allocation2 + $0xa0] sm:$0xff] %v236
    %344 = vst [vmem:[#allocation2 + $0xa8] sm:$0xff] %v238
    %345 = vst [vmem:[#allocation2 + $0xb0] sm:$0xff] %v309
    %346 = vst [vmem:[#allocation2 + $0xb8] sm:$0xff] %v311
    %347 = vst [vmem:[#allocation2 + $0xc0] sm:$0xff] %v242
    %348 = vst [vmem:[#allocation2 + $0xc8] sm:$0xff] %v244
    %349 = vst [vmem:[#allocation2 + $0xd0] sm:$0xff] %v315
    %350 = vst [vmem:[#allocation2 + $0xd8] sm:$0xff] %v317
    %351 = vst [vmem:[#allocation2 + $0xe0] sm:$0xff] %v246
    %352 = vst [vmem:[#allocation2 + $0xe8] sm:$0xff] %v248
    %353 = vst [vmem:[#allocation2 + $0xf0] sm:$0xff] %v319
    %354 = vst [vmem:[#allocation2 + $0xf8] sm:$0xff] %v321
    %v355 = vld [vmem:[#allocation2] sm:$0xff]
    %v356 = vld [vmem:[#allocation2 + $0x8] sm:$0xff]
    %v357 = vld [vmem:[#allocation2 + $0x10] sm:$0xff]
    %v358 = vld [vmem:[#allocation2 + $0x18] sm:$0xff]
    %v359 = vld [vmem:[#allocation7] sm:$0xff]
    %v360 = vld [vmem:[#allocation7 + $0x8] sm:$0xff]
    %v361 = vld [vmem:[#allocation7 + $0x10] sm:$0xff]
    %v362 = vld [vmem:[#allocation7 + $0x18] sm:$0xff]
    %v363 = vld [vmem:[#allocation7 + $0x20] sm:$0xff]
    %v364 = vld [vmem:[#allocation7 + $0x28] sm:$0xff]
    %v365 = vld [vmem:[#allocation7 + $0x30] sm:$0xff]
    %v366 = vld [vmem:[#allocation7 + $0x38] sm:$0xff]
    %v367 = vld [vmem:[#allocation7 + $0x40] sm:$0xff]
    %v368 = vld [vmem:[#allocation7 + $0x48] sm:$0xff]
    %v369 = vld [vmem:[#allocation7 + $0x50] sm:$0xff]
    %v370 = vld [vmem:[#allocation7 + $0x58] sm:$0xff]
    %v371 = vld [vmem:[#allocation7 + $0x60] sm:$0xff]
    %v372 = vld [vmem:[#allocation7 + $0x68] sm:$0xff]
    %v373 = vld [vmem:[#allocation7 + $0x70] sm:$0xff]
    %v374 = vld [vmem:[#allocation7 + $0x78] sm:$0xff]
    %v375 = vld [vmem:[#allocation7 + $0x80] sm:$0xff]
    %v376 = vld [vmem:[#allocation7 + $0x88] sm:$0xff]
    %v377 = vld [vmem:[#allocation7 + $0x90] sm:$0xff]
    %v378 = vld [vmem:[#allocation7 + $0x98] sm:$0xff]
    %v379 = vld [vmem:[#allocation7 + $0xa0] sm:$0xff]
    %v380 = vld [vmem:[#allocation7 + $0xa8] sm:$0xff]
    %v381 = vld [vmem:[#allocation7 + $0xb0] sm:$0xff]
    %v382 = vld [vmem:[#allocation7 + $0xb8] sm:$0xff]
    %v383 = vld [vmem:[#allocation7 + $0xc0] sm:$0xff]
    %v384 = vld [vmem:[#allocation7 + $0xc8] sm:$0xff]
    %v385 = vld [vmem:[#allocation7 + $0xd0] sm:$0xff]
    %v386 = vld [vmem:[#allocation7 + $0xd8] sm:$0xff]
    %v387 = vld [vmem:[#allocation7 + $0xe0] sm:$0xff]
    %v388 = vld [vmem:[#allocation7 + $0xe8] sm:$0xff]
    %v389 = vld [vmem:[#allocation7 + $0xf0] sm:$0xff]
    %v390 = vld [vmem:[#allocation7 + $0xf8] sm:$0xff]
    %v423 = vunpack.c.l.b16 %v359
    %v424 = vunpack.c.h.b16 %v359
    %v425 = vunpack.c.l.b16 %v360
    %v426 = vunpack.c.h.b16 %v360
    %v427 = vunpack.c.l.b16 %v361
    %v428 = vunpack.c.h.b16 %v361
    %v429 = vunpack.c.l.b16 %v362
    %v430 = vunpack.c.h.b16 %v362
    %v431 = vunpack.c.l.b16 %v363
    %v432 = vunpack.c.h.b16 %v363
    %v433 = vunpack.c.l.b16 %v364
    %v434 = vunpack.c.h.b16 %v364
    %v435 = vunpack.c.l.b16 %v365
    %v436 = vunpack.c.h.b16 %v365
    %v437 = vunpack.c.l.b16 %v366
    %v438 = vunpack.c.h.b16 %v366
    %v439 = vunpack.c.l.b16 %v367
    %v440 = vunpack.c.h.b16 %v367
    %v441 = vunpack.c.l.b16 %v368
    %v442 = vunpack.c.h.b16 %v368
    %v443 = vunpack.c.l.b16 %v369
    %v444 = vunpack.c.h.b16 %v369
    %v445 = vunpack.c.l.b16 %v370
    %v446 = vunpack.c.h.b16 %v370
    %v447 = vunpack.c.l.b16 %v371
    %v448 = vunpack.c.h.b16 %v371
    %v449 = vunpack.c.l.b16 %v372
    %v450 = vunpack.c.h.b16 %v372
    %v451 = vunpack.c.l.b16 %v373
    %v452 = vunpack.c.h.b16 %v373
    %v453 = vunpack.c.l.b16 %v374
    %v454 = vunpack.c.h.b16 %v374
    %v455 = vunpack.c.l.b16 %v375
    %v456 = vunpack.c.h.b16 %v375
    %v457 = vunpack.c.l.b16 %v376
    %v458 = vunpack.c.h.b16 %v376
    %v459 = vunpack.c.l.b16 %v377
    %v460 = vunpack.c.h.b16 %v377
    %v461 = vunpack.c.l.b16 %v378
    %v462 = vunpack.c.h.b16 %v378
    %v463 = vunpack.c.l.b16 %v379
    %v464 = vunpack.c.h.b16 %v379
    %v465 = vunpack.c.l.b16 %v380
    %v466 = vunpack.c.h.b16 %v380
    %v467 = vunpack.c.l.b16 %v381
    %v468 = vunpack.c.h.b16 %v381
    %v469 = vunpack.c.l.b16 %v382
    %v470 = vunpack.c.h.b16 %v382
    %v471 = vunpack.c.l.b16 %v383
    %v472 = vunpack.c.h.b16 %v383
    %v473 = vunpack.c.l.b16 %v384
    %v474 = vunpack.c.h.b16 %v384
    %v475 = vunpack.c.l.b16 %v385
    %v476 = vunpack.c.h.b16 %v385
    %v477 = vunpack.c.l.b16 %v386
    %v478 = vunpack.c.h.b16 %v386
    %v479 = vunpack.c.l.b16 %v387
    %v480 = vunpack.c.h.b16 %v387
    %v481 = vunpack.c.l.b16 %v388
    %v482 = vunpack.c.h.b16 %v388
    %v483 = vunpack.c.l.b16 %v389
    %v484 = vunpack.c.h.b16 %v389
    %v485 = vunpack.c.l.b16 %v390
    %v486 = vunpack.c.h.b16 %v390
    %v487 = vpack.c.b16 %v427, %v423
    %v488 = vpack.c.b16 %v428, %v424
    %v489 = vpack.c.b16 %v429, %v425
    %v490 = vpack.c.b16 %v430, %v426
    %v491 = vpack.c.b16 %v435, %v431
    %v492 = vpack.c.b16 %v436, %v432
    %v493 = vpack.c.b16 %v437, %v433
    %v494 = vpack.c.b16 %v438, %v434
    %v495 = vpack.c.b16 %v443, %v439
    %v496 = vpack.c.b16 %v444, %v440
    %v497 = vpack.c.b16 %v445, %v441
    %v498 = vpack.c.b16 %v446, %v442
    %v499 = vpack.c.b16 %v451, %v447
    %v500 = vpack.c.b16 %v452, %v448
    %v501 = vpack.c.b16 %v453, %v449
    %v502 = vpack.c.b16 %v454, %v450
    %v503 = vpack.c.b16 %v459, %v455
    %v504 = vpack.c.b16 %v460, %v456
    %v505 = vpack.c.b16 %v461, %v457
    %v506 = vpack.c.b16 %v462, %v458
    %v507 = vpack.c.b16 %v467, %v463
    %v508 = vpack.c.b16 %v468, %v464
    %v509 = vpack.c.b16 %v469, %v465
    %v510 = vpack.c.b16 %v470, %v466
    %v511 = vpack.c.b16 %v475, %v471
    %v512 = vpack.c.b16 %v476, %v472
    %v513 = vpack.c.b16 %v477, %v473
    %v514 = vpack.c.b16 %v478, %v474
    %v515 = vpack.c.b16 %v483, %v479
    %v516 = vpack.c.b16 %v484, %v480
    %v517 = vpack.c.b16 %v485, %v481
    %v518 = vpack.c.b16 %v486, %v482
    %551 = vmatprep.subr.bf16.mxu0 %v488
    %552 = vmatpush1.bf16.msra.mxu0 %v487
    %553 = vmatprep.subr.bf16.mxu0 %v492
    %554 = vmatpush1.bf16.msra.mxu0 %v491
    %555 = vmatprep.subr.bf16.mxu0 %v496
    %556 = vmatpush1.bf16.msra.mxu0 %v495
    %557 = vmatprep.subr.bf16.mxu0 %v500
    %558 = vmatpush1.bf16.msra.mxu0 %v499
    %559 = vmatprep.subr.bf16.mxu0 %v504
    %560 = vmatpush1.bf16.msra.mxu0 %v503
    %561 = vmatprep.subr.bf16.mxu0 %v508
    %562 = vmatpush1.bf16.msra.mxu0 %v507
    %563 = vmatprep.subr.bf16.mxu0 %v512
    %564 = vmatpush1.bf16.msra.mxu0 %v511
    %565 = vmatprep.subr.bf16.mxu0 %v516
    %566 = vmatpush1.bf16.msra.mxu0 %v515
    %567 = vmatprep.subr.bf16.mxu0 0
    %568 = vmatpush1.bf16.msra.mxu0 0
    %569 = vmatprep.subr.bf16.mxu0 0
    %570 = vmatpush1.bf16.msra.mxu0 0
    %571 = vmatprep.subr.bf16.mxu0 0
    %572 = vmatpush1.bf16.msra.mxu0 0
    %573 = vmatprep.subr.bf16.mxu0 0
    %574 = vmatpush1.bf16.msra.mxu0 0
    %575 = vmatprep.subr.bf16.mxu0 0
    %576 = vmatpush1.bf16.msra.mxu0 0
    %577 = vmatprep.subr.bf16.mxu0 0
    %578 = vmatpush1.bf16.msra.mxu0 0
    %579 = vmatprep.subr.bf16.mxu0 0
    %580 = vmatpush1.bf16.msra.mxu0 0
    %581 = vmatprep.subr.bf16.mxu0 0
    %582 = vmatpush1.bf16.msra.mxu0 0
    %583 = vmatprep.mubr.bf16.mxu0 0
    %584 = vmatmul.mubr.bf16.gmra.mrb[0].mxu0 0
    %v585 = vpop.f32.mrb[0].mxu0
    %v586 = vadd.f32 0.0, %v585
    %v587 = vpop.f32.mrb[0].mxu0
    %v588 = vadd.f32 0.0, %v587
    %v589 = vpop.f32.mrb[0].mxu0
    %v590 = vpop.f32.mrb[0].mxu0
    %591 = vdwg.mxu0
    %592 = vmatprep.subr.bf16.mxu0 %v490
    %593 = vmatpush1.bf16.msra.mxu0 %v489
    %594 = vmatprep.subr.bf16.mxu0 %v494
    %595 = vmatpush1.bf16.msra.mxu0 %v493
    %596 = vmatprep.subr.bf16.mxu0 %v498
    %597 = vmatpush1.bf16.msra.mxu0 %v497
    %598 = vmatprep.subr.bf16.mxu0 %v502
    %599 = vmatpush1.bf16.msra.mxu0 %v501
    %600 = vmatprep.subr.bf16.mxu0 %v506
    %601 = vmatpush1.bf16.msra.mxu0 %v505
    %602 = vmatprep.subr.bf16.mxu0 %v510
    %603 = vmatpush1.bf16.msra.mxu0 %v509
    %604 = vmatprep.subr.bf16.mxu0 %v514
    %605 = vmatpush1.bf16.msra.mxu0 %v513
    %606 = vmatprep.subr.bf16.mxu0 %v518
    %607 = vmatpush1.bf16.msra.mxu0 %v517
    %608 = vmatprep.subr.bf16.mxu0 0
    %609 = vmatpush1.bf16.msra.mxu0 0
    %610 = vmatprep.subr.bf16.mxu0 0
    %611 = vmatpush1.bf16.msra.mxu0 0
    %612 = vmatprep.subr.bf16.mxu0 0
    %613 = vmatpush1.bf16.msra.mxu0 0
    %614 = vmatprep.subr.bf16.mxu0 0
    %615 = vmatpush1.bf16.msra.mxu0 0
    %616 = vmatprep.subr.bf16.mxu0 0
    %617 = vmatpush1.bf16.msra.mxu0 0
    %618 = vmatprep.subr.bf16.mxu0 0
    %619 = vmatpush1.bf16.msra.mxu0 0
    %620 = vmatprep.subr.bf16.mxu0 0
    %621 = vmatpush1.bf16.msra.mxu0 0
    %622 = vmatprep.subr.bf16.mxu0 0
    %623 = vmatpush1.bf16.msra.mxu0 0
    %624 = vmatprep.mubr.bf16.mxu0 0
    %625 = vmatmul.mubr.bf16.gmra.mrb[0].mxu0 0
    %v626 = vpop.f32.mrb[0].mxu0
    %v627 = vadd.f32 0.0, %v626
    %v628 = vpop.f32.mrb[0].mxu0
    %v629 = vadd.f32 0.0, %v628
    %v630 = vpop.f32.mrb[0].mxu0
    %v631 = vpop.f32.mrb[0].mxu0
    %632 = vdwg.mxu0
    %v633 = vadd.f32 %v355, %v586
    %v634 = vadd.f32 %v356, %v588
    %v635 = vadd.f32 %v357, %v627
    %v636 = vadd.f32 %v358, %v629
    %v637 = vxor.u32 %v633, 2147483648
    %v638 = vxor.u32 %v634, 2147483648
    %v639 = vxor.u32 %v635, 2147483648
    %v640 = vmul.f32 %v637, 1.442695
    %v641 = vpow.pop %v640
    %v642 = vmul.f32 %v638, 1.442695
    %v643 = vpow.pop %v642
    %v644 = vmul.f32 %v639, 1.442695
    %v645 = vpow.pop %v644
    %v646 = vadd.f32 %v641, 1.0
    %v647 = vadd.f32 %v643, 1.0
    %v648 = vadd.f32 %v645, 1.0
    %v649 = vrcp.pop %v646
    %v650 = vmul.f32 1.0, %v649
    %v651 = vrcp.pop %v647
    %v652 = vmul.f32 1.0, %v651
    %v653 = vrcp.pop %v648
    %v654 = vmul.f32 1.0, %v653
    %v655 = vtanh.pop %v636
    %v656 = vmul.f32 %v652, 0.0
    %v657 = vmul.f32 %v650, %v655
    %v658 = vadd.f32 %v656, %v657
    %v659 = vtanh.pop %v658
    %v660 = vmul.f32 %v654, %v659
    %661 = vst [vmem:[#allocation3] sm:$0xff] %v660
    %s662 = scalar_lea.vmem [#allocation2], 32
    %v663 = vld [vmem:[%s662] sm:$0xff]
    %v664 = vld [vmem:[%s662 + $0x8] sm:$0xff]
    %v665 = vld [vmem:[%s662 + $0x10] sm:$0xff]
    %v666 = vld [vmem:[%s662 + $0x18] sm:$0xff]
    %v667 = vpack.c.bf16 %v660, %v660
    %v668 = vld [vmem:[#allocation7] sm:$0xff]
    %v669 = vld [vmem:[#allocation7 + $0x8] sm:$0xff]
    %v670 = vld [vmem:[#allocation7 + $0x10] sm:$0xff]
    %v671 = vld [vmem:[#allocation7 + $0x18] sm:$0xff]
    %v672 = vld [vmem:[#allocation7 + $0x20] sm:$0xff]
    %v673 = vld [vmem:[#allocation7 + $0x28] sm:$0xff]
    %v674 = vld [vmem:[#allocation7 + $0x30] sm:$0xff]
    %v675 = vld [vmem:[#allocation7 + $0x38] sm:$0xff]
    %v676 = vld [vmem:[#allocation7 + $0x40] sm:$0xff]
    %v677 = vld [vmem:[#allocation7 + $0x48] sm:$0xff]
    %v678 = vld [vmem:[#allocation7 + $0x50] sm:$0xff]
    %v679 = vld [vmem:[#allocation7 + $0x58] sm:$0xff]
    %v680 = vld [vmem:[#allocation7 + $0x60] sm:$0xff]
    %v681 = vld [vmem:[#allocation7 + $0x68] sm:$0xff]
    %v682 = vld [vmem:[#allocation7 + $0x70] sm:$0xff]
    %v683 = vld [vmem:[#allocation7 + $0x78] sm:$0xff]
    %v684 = vld [vmem:[#allocation7 + $0x80] sm:$0xff]
    %v685 = vld [vmem:[#allocation7 + $0x88] sm:$0xff]
    %v686 = vld [vmem:[#allocation7 + $0x90] sm:$0xff]
    %v687 = vld [vmem:[#allocation7 + $0x98] sm:$0xff]
    %v688 = vld [vmem:[#allocation7 + $0xa0] sm:$0xff]
    %v689 = vld [vmem:[#allocation7 + $0xa8] sm:$0xff]
    %v690 = vld [vmem:[#allocation7 + $0xb0] sm:$0xff]
    %v691 = vld [vmem:[#allocation7 + $0xb8] sm:$0xff]
    %v692 = vld [vmem:[#allocation7 + $0xc0] sm:$0xff]
    %v693 = vld [vmem:[#allocation7 + $0xc8] sm:$0xff]
    %v694 = vld [vmem:[#allocation7 + $0xd0] sm:$0xff]
    %v695 = vld [vmem:[#allocation7 + $0xd8] sm:$0xff]
    %v696 = vld [vmem:[#allocation7 + $0xe0] sm:$0xff]
    %v697 = vld [vmem:[#allocation7 + $0xe8] sm:$0xff]
    %v698 = vld [vmem:[#allocation7 + $0xf0] sm:$0xff]
    %v699 = vld [vmem:[#allocation7 + $0xf8] sm:$0xff]
    %v732 = vunpack.c.l.b16 %v668
    %v733 = vunpack.c.h.b16 %v668
    %v734 = vunpack.c.l.b16 %v669
    %v735 = vunpack.c.h.b16 %v669
    %v736 = vunpack.c.l.b16 %v670
    %v737 = vunpack.c.h.b16 %v670
    %v738 = vunpack.c.l.b16 %v671
    %v739 = vunpack.c.h.b16 %v671
    %v740 = vunpack.c.l.b16 %v672
    %v741 = vunpack.c.h.b16 %v672
    %v742 = vunpack.c.l.b16 %v673
    %v743 = vunpack.c.h.b16 %v673
    %v744 = vunpack.c.l.b16 %v674
    %v745 = vunpack.c.h.b16 %v674
    %v746 = vunpack.c.l.b16 %v675
    %v747 = vunpack.c.h.b16 %v675
    %v748 = vunpack.c.l.b16 %v676
    %v749 = vunpack.c.h.b16 %v676
    %v750 = vunpack.c.l.b16 %v677
    %v751 = vunpack.c.h.b16 %v677
    %v752 = vunpack.c.l.b16 %v678
    %v753 = vunpack.c.h.b16 %v678
    %v754 = vunpack.c.l.b16 %v679
    %v755 = vunpack.c.h.b16 %v679
    %v756 = vunpack.c.l.b16 %v680
    %v757 = vunpack.c.h.b16 %v680
    %v758 = vunpack.c.l.b16 %v681
    %v759 = vunpack.c.h.b16 %v681
    %v760 = vunpack.c.l.b16 %v682
    %v761 = vunpack.c.h.b16 %v682
    %v762 = vunpack.c.l.b16 %v683
    %v763 = vunpack.c.h.b16 %v683
    %v764 = vunpack.c.l.b16 %v684
    %v765 = vunpack.c.h.b16 %v684
    %v766 = vunpack.c.l.b16 %v685
    %v767 = vunpack.c.h.b16 %v685
    %v768 = vunpack.c.l.b16 %v686
    %v769 = vunpack.c.h.b16 %v686
    %v770 = vunpack.c.l.b16 %v687
    %v771 = vunpack.c.h.b16 %v687
    %v772 = vunpack.c.l.b16 %v688
    %v773 = vunpack.c.h.b16 %v688
    %v774 = vunpack.c.l.b16 %v689
    %v775 = vunpack.c.h.b16 %v689
    %v776 = vunpack.c.l.b16 %v690
    %v777 = vunpack.c.h.b16 %v690
    %v778 = vunpack.c.l.b16 %v691
    %v779 = vunpack.c.h.b16 %v691
    %v780 = vunpack.c.l.b16 %v692
    %v781 = vunpack.c.h.b16 %v692
    %v782 = vunpack.c.l.b16 %v693
    %v783 = vunpack.c.h.b16 %v693
    %v784 = vunpack.c.l.b16 %v694
    %v785 = vunpack.c.h.b16 %v694
    %v786 = vunpack.c.l.b16 %v695
    %v787 = vunpack.c.h.b16 %v695
    %v788 = vunpack.c.l.b16 %v696
    %v789 = vunpack.c.h.b16 %v696
    %v790 = vunpack.c.l.b16 %v697
    %v791 = vunpack.c.h.b16 %v697
    %v792 = vunpack.c.l.b16 %v698
    %v793 = vunpack.c.h.b16 %v698
    %v794 = vunpack.c.l.b16 %v699
    %v795 = vunpack.c.h.b16 %v699
    %v796 = vpack.c.b16 %v736, %v732
    %v797 = vpack.c.b16 %v737, %v733
    %v798 = vpack.c.b16 %v738, %v734
    %v799 = vpack.c.b16 %v739, %v735
    %v800 = vpack.c.b16 %v744, %v740
    %v801 = vpack.c.b16 %v745, %v741
    %v802 = vpack.c.b16 %v746, %v742
    %v803 = vpack.c.b16 %v747, %v743
    %v804 = vpack.c.b16 %v752, %v748
    %v805 = vpack.c.b16 %v753, %v749
    %v806 = vpack.c.b16 %v754, %v750
    %v807 = vpack.c.b16 %v755, %v751
    %v808 = vpack.c.b16 %v760, %v756
    %v809 = vpack.c.b16 %v761, %v757
    %v810 = vpack.c.b16 %v762, %v758
    %v811 = vpack.c.b16 %v763, %v759
    %v812 = vpack.c.b16 %v768, %v764
    %v813 = vpack.c.b16 %v769, %v765
    %v814 = vpack.c.b16 %v770, %v766
    %v815 = vpack.c.b16 %v771, %v767
    %v816 = vpack.c.b16 %v776, %v772
    %v817 = vpack.c.b16 %v777, %v773
    %v818 = vpack.c.b16 %v778, %v774
    %v819 = vpack.c.b16 %v779, %v775
    %v820 = vpack.c.b16 %v784, %v780
    %v821 = vpack.c.b16 %v785, %v781
    %v822 = vpack.c.b16 %v786, %v782
    %v823 = vpack.c.b16 %v787, %v783
    %v824 = vpack.c.b16 %v792, %v788
    %v825 = vpack.c.b16 %v793, %v789
    %v826 = vpack.c.b16 %v794, %v790
    %v827 = vpack.c.b16 %v795, %v791
    %860 = vmatprep.subr.bf16.mxu0 %v797
    %861 = vmatpush1.bf16.msra.mxu0 %v796
    %862 = vmatprep.subr.bf16.mxu0 %v801
    %863 = vmatpush1.bf16.msra.mxu0 %v800
    %864 = vmatprep.subr.bf16.mxu0 %v805
    %865 = vmatpush1.bf16.msra.mxu0 %v804
    %866 = vmatprep.subr.bf16.mxu0 %v809
    %867 = vmatpush1.bf16.msra.mxu0 %v808
    %868 = vmatprep.subr.bf16.mxu0 %v813
    %869 = vmatpush1.bf16.msra.mxu0 %v812
    %870 = vmatprep.subr.bf16.mxu0 %v817
    %871 = vmatpush1.bf16.msra.mxu0 %v816
    %872 = vmatprep.subr.bf16.mxu0 %v821
    %873 = vmatpush1.bf16.msra.mxu0 %v820
    %874 = vmatprep.subr.bf16.mxu0 %v825
    %875 = vmatpush1.bf16.msra.mxu0 %v824
    %876 = vmatprep.subr.bf16.mxu0 0
    %877 = vmatpush1.bf16.msra.mxu0 0
    %878 = vmatprep.subr.bf16.mxu0 0
    %879 = vmatpush1.bf16.msra.mxu0 0
    %880 = vmatprep.subr.bf16.mxu0 0
    %881 = vmatpush1.bf16.msra.mxu0 0
    %882 = vmatprep.subr.bf16.mxu0 0
    %883 = vmatpush1.bf16.msra.mxu0 0
    %884 = vmatprep.subr.bf16.mxu0 0
    %885 = vmatpush1.bf16.msra.mxu0 0
    %886 = vmatprep.subr.bf16.mxu0 0
    %887 = vmatpush1.bf16.msra.mxu0 0
    %888 = vmatprep.subr.bf16.mxu0 0
    %889 = vmatpush1.bf16.msra.mxu0 0
    %890 = vmatprep.subr.bf16.mxu0 0
    %891 = vmatpush1.bf16.msra.mxu0 0
    %892 = vmatprep.mubr.bf16.mxu0 0
    %893 = vmatmul.mubr.bf16.gmra.mrb[0].mxu0 %v667
    %v894 = vpop.f32.mrb[0].mxu0
    %v895 = vadd.f32 0.0, %v894
    %v896 = vpop.f32.mrb[0].mxu0
    %v897 = vadd.f32 0.0, %v896
    %v898 = vpop.f32.mrb[0].mxu0
    %v899 = vpop.f32.mrb[0].mxu0
    %900 = vdwg.mxu0
    %901 = vmatprep.subr.bf16.mxu0 %v799
    %902 = vmatpush1.bf16.msra.mxu0 %v798
    %903 = vmatprep.subr.bf16.mxu0 %v803
    %904 = vmatpush1.bf16.msra.mxu0 %v802
    %905 = vmatprep.subr.bf16.mxu0 %v807
    %906 = vmatpush1.bf16.msra.mxu0 %v806
    %907 = vmatprep.subr.bf16.mxu0 %v811
    %908 = vmatpush1.bf16.msra.mxu0 %v810
    %909 = vmatprep.subr.bf16.mxu0 %v815
    %910 = vmatpush1.bf16.msra.mxu0 %v814
    %911 = vmatprep.subr.bf16.mxu0 %v819
    %912 = vmatpush1.bf16.msra.mxu0 %v818
    %913 = vmatprep.subr.bf16.mxu0 %v823
    %914 = vmatpush1.bf16.msra.mxu0 %v822
    %915 = vmatprep.subr.bf16.mxu0 %v827
    %916 = vmatpush1.bf16.msra.mxu0 %v826
    %917 = vmatprep.subr.bf16.mxu0 0
    %918 = vmatpush1.bf16.msra.mxu0 0
    %919 = vmatprep.subr.bf16.mxu0 0
    %920 = vmatpush1.bf16.msra.mxu0 0
    %921 = vmatprep.subr.bf16.mxu0 0
    %922 = vmatpush1.bf16.msra.mxu0 0
    %923 = vmatprep.subr.bf16.mxu0 0
    %924 = vmatpush1.bf16.msra.mxu0 0
    %925 = vmatprep.subr.bf16.mxu0 0
    %926 = vmatpush1.bf16.msra.mxu0 0
    %927 = vmatprep.subr.bf16.mxu0 0
    %928 = vmatpush1.bf16.msra.mxu0 0
    %929 = vmatprep.subr.bf16.mxu0 0
    %930 = vmatpush1.bf16.msra.mxu0 0
    %931 = vmatprep.subr.bf16.mxu0 0
    %932 = vmatpush1.bf16.msra.mxu0 0
    %933 = vmatprep.mubr.bf16.mxu0 0
    %934 = vmatmul.mubr.bf16.gmra.mrb[0].mxu0 %v667
    %v935 = vpop.f32.mrb[0].mxu0
    %v936 = vadd.f32 0.0, %v935
    %v937 = vpop.f32.mrb[0].mxu0
    %v938 = vadd.f32 0.0, %v937
    %v939 = vpop.f32.mrb[0].mxu0
    %v940 = vpop.f32.mrb[0].mxu0
    %941 = vdwg.mxu0
    %v942 = vadd.f32 %v663, %v895
    %v943 = vadd.f32 %v664, %v897
    %v944 = vadd.f32 %v665, %v936
    %v945 = vadd.f32 %v666, %v938
    %v946 = vxor.u32 %v942, 2147483648
    %v947 = vxor.u32 %v943, 2147483648
    %v948 = vxor.u32 %v944, 2147483648
    %v949 = vmul.f32 %v946, 1.442695
    %v950 = vpow.pop %v949
    %v951 = vmul.f32 %v947, 1.442695
    %v952 = vpow.pop %v951
    %v953 = vmul.f32 %v948, 1.442695
    %v954 = vpow.pop %v953
    %v955 = vadd.f32 %v950, 1.0
    %v956 = vadd.f32 %v952, 1.0
    %v957 = vadd.f32 %v954, 1.0
    %v958 = vrcp.pop %v955
    %v959 = vmul.f32 1.0, %v958
    %v960 = vrcp.pop %v956
    %v961 = vmul.f32 1.0, %v960
    %v962 = vrcp.pop %v957
    %v963 = vmul.f32 1.0, %v962
    %v964 = vtanh.pop %v945
    %v965 = vmul.f32 %v961, %v658
    %v966 = vmul.f32 %v959, %v964
    %v967 = vadd.f32 %v965, %v966
    %v968 = vtanh.pop %v967
    %v969 = vmul.f32 %v963, %v968
    %s970 = scalar_lea.vmem [#allocation3], 8
    %971 = vst [vmem:[%s970] sm:$0xff] %v969
    %s972 = scalar_lea.vmem [#allocation2], 64
    %v973 = vld [vmem:[%s972] sm:$0xff]
    %v974 = vld [vmem:[%s972 + $0x8] sm:$0xff]
    %v975 = vld [vmem:[%s972 + $0x10] sm:$0xff]
    %v976 = vld [vmem:[%s972 + $0x18] sm:$0xff]
    %v977 = vpack.c.bf16 %v969, %v969
    %v978 = vld [vmem:[#allocation7] sm:$0xff]
    %v979 = vld [vmem:[#allocation7 + $0x8] sm:$0xff]
    %v980 = vld [vmem:[#allocation7 + $0x10] sm:$0xff]
    %v981 = vld [vmem:[#allocation7 + $0x18] sm:$0xff]
    %v982 = vld [vmem:[#allocation7 + $0x20] sm:$0xff]
    %v983 = vld [vmem:[#allocation7 + $0x28] sm:$0xff]
    %v984 = vld [vmem:[#allocation7 + $0x30] sm:$0xff]
    %v985 = vld [vmem:[#allocation7 + $0x38] sm:$0xff]
    %v986 = vld [vmem:[#allocation7 + $0x40] sm:$0xff]
    %v987 = vld [vmem:[#allocation7 + $0x48] sm:$0xff]
    %v988 = vld [vmem:[#allocation7 + $0x50] sm:$0xff]
    %v989 = vld [vmem:[#allocation7 + $0x58] sm:$0xff]
    %v990 = vld [vmem:[#allocation7 + $0x60] sm:$0xff]
    %v991 = vld [vmem:[#allocation7 + $0x68] sm:$0xff]
    %v992 = vld [vmem:[#allocation7 + $0x70] sm:$0xff]
    %v993 = vld [vmem:[#allocation7 + $0x78] sm:$0xff]
    %v994 = vld [vmem:[#allocation7 + $0x80] sm:$0xff]
    %v995 = vld [vmem:[#allocation7 + $0x88] sm:$0xff]
    %v996 = vld [vmem:[#allocation7 + $0x90] sm:$0xff]
    %v997 = vld [vmem:[#allocation7 + $0x98] sm:$0xff]
    %v998 = vld [vmem:[#allocation7 + $0xa0] sm:$0xff]
    %v999 = vld [vmem:[#allocation7 + $0xa8] sm:$0xff]
    %v1000 = vld [vmem:[#allocation7 + $0xb0] sm:$0xff]
    %v1001 = vld [vmem:[#allocation7 + $0xb8] sm:$0xff]
    %v1002 = vld [vmem:[#allocation7 + $0xc0] sm:$0xff]
    %v1003 = vld [vmem:[#allocation7 + $0xc8] sm:$0xff]
    %v1004 = vld [vmem:[#allocation7 + $0xd0] sm:$0xff]
    %v1005 = vld [vmem:[#allocation7 + $0xd8] sm:$0xff]
    %v1006 = vld [vmem:[#allocation7 + $0xe0] sm:$0xff]
    %v1007 = vld [vmem:[#allocation7 + $0xe8] sm:$0xff]
    %v1008 = vld [vmem:[#allocation7 + $0xf0] sm:$0xff]
    %v1009 = vld [vmem:[#allocation7 + $0xf8] sm:$0xff]
    %v1042 = vunpack.c.l.b16 %v978
    %v1043 = vunpack.c.h.b16 %v978
    %v1044 = vunpack.c.l.b16 %v979
    %v1045 = vunpack.c.h.b16 %v979
    %v1046 = vunpack.c.l.b16 %v980
    %v1047 = vunpack.c.h.b16 %v980
    %v1048 = vunpack.c.l.b16 %v981
    %v1049 = vunpack.c.h.b16 %v981
    %v1050 = vunpack.c.l.b16 %v982
    %v1051 = vunpack.c.h.b16 %v982
    %v1052 = vunpack.c.l.b16 %v983
    %v1053 = vunpack.c.h.b16 %v983
    %v1054 = vunpack.c.l.b16 %v984
    %v1055 = vunpack.c.h.b16 %v984
    %v1056 = vunpack.c.l.b16 %v985
    %v1057 = vunpack.c.h.b16 %v985
    %v1058 = vunpack.c.l.b16 %v986
    %v1059 = vunpack.c.h.b16 %v986
    %v1060 = vunpack.c.l.b16 %v987
    %v1061 = vunpack.c.h.b16 %v987
    %v1062 = vunpack.c.l.b16 %v988
    %v1063 = vunpack.c.h.b16 %v988
    %v1064 = vunpack.c.l.b16 %v989
    %v1065 = vunpack.c.h.b16 %v989
    %v1066 = vunpack.c.l.b16 %v990
    %v1067 = vunpack.c.h.b16 %v990
    %v1068 = vunpack.c.l.b16 %v991
    %v1069 = vunpack.c.h.b16 %v991
    %v1070 = vunpack.c.l.b16 %v992
    %v1071 = vunpack.c.h.b16 %v992
    %v1072 = vunpack.c.l.b16 %v993
    %v1073 = vunpack.c.h.b16 %v993
    %v1074 = vunpack.c.l.b16 %v994
    %v1075 = vunpack.c.h.b16 %v994
    %v1076 = vunpack.c.l.b16 %v995
    %v1077 = vunpack.c.h.b16 %v995
    %v1078 = vunpack.c.l.b16 %v996
    %v1079 = vunpack.c.h.b16 %v996
    %v1080 = vunpack.c.l.b16 %v997
    %v1081 = vunpack.c.h.b16 %v997
    %v1082 = vunpack.c.l.b16 %v998
    %v1083 = vunpack.c.h.b16 %v998
    %v1084 = vunpack.c.l.b16 %v999
    %v1085 = vunpack.c.h.b16 %v999
    %v1086 = vunpack.c.l.b16 %v1000
    %v1087 = vunpack.c.h.b16 %v1000
    %v1088 = vunpack.c.l.b16 %v1001
    %v1089 = vunpack.c.h.b16 %v1001
    %v1090 = vunpack.c.l.b16 %v1002
    %v1091 = vunpack.c.h.b16 %v1002
    %v1092 = vunpack.c.l.b16 %v1003
    %v1093 = vunpack.c.h.b16 %v1003
    %v1094 = vunpack.c.l.b16 %v1004
    %v1095 = vunpack.c.h.b16 %v1004
    %v1096 = vunpack.c.l.b16 %v1005
    %v1097 = vunpack.c.h.b16 %v1005
    %v1098 = vunpack.c.l.b16 %v1006
    %v1099 = vunpack.c.h.b16 %v1006
    %v1100 = vunpack.c.l.b16 %v1007
    %v1101 = vunpack.c.h.b16 %v1007
    %v1102 = vunpack.c.l.b16 %v1008
    %v1103 = vunpack.c.h.b16 %v1008
    %v1104 = vunpack.c.l.b16 %v1009
    %v1105 = vunpack.c.h.b16 %v1009
    %v1106 = vpack.c.b16 %v1046, %v1042
    %v1107 = vpack.c.b16 %v1047, %v1043
    %v1108 = vpack.c.b16 %v1048, %v1044
    %v1109 = vpack.c.b16 %v1049, %v1045
    %v1110 = vpack.c.b16 %v1054, %v1050
    %v1111 = vpack.c.b16 %v1055, %v1051
    %v1112 = vpack.c.b16 %v1056, %v1052
    %v1113 = vpack.c.b16 %v1057, %v1053
    %v1114 = vpack.c.b16 %v1062, %v1058
    %v1115 = vpack.c.b16 %v1063, %v1059
    %v1116 = vpack.c.b16 %v1064, %v1060
    %v1117 = vpack.c.b16 %v1065, %v1061
    %v1118 = vpack.c.b16 %v1070, %v1066
    %v1119 = vpack.c.b16 %v1071, %v1067
    %v1120 = vpack.c.b16 %v1072, %v1068
    %v1121 = vpack.c.b16 %v1073, %v1069
    %v1122 = vpack.c.b16 %v1078, %v1074
    %v1123 = vpack.c.b16 %v1079, %v1075
    %v1124 = vpack.c.b16 %v1080, %v1076
    %v1125 = vpack.c.b16 %v1081, %v1077
    %v1126 = vpack.c.b16 %v1086, %v1082
    %v1127 = vpack.c.b16 %v1087, %v1083
    %v1128 = vpack.c.b16 %v1088, %v1084
    %v1129 = vpack.c.b16 %v1089, %v1085
    %v1130 = vpack.c.b16 %v1094, %v1090
    %v1131 = vpack.c.b16 %v1095, %v1091
    %v1132 = vpack.c.b16 %v1096, %v1092
    %v1133 = vpack.c.b16 %v1097, %v1093
    %v1134 = vpack.c.b16 %v1102, %v1098
    %v1135 = vpack.c.b16 %v1103, %v1099
    %v1136 = vpack.c.b16 %v1104, %v1100
    %v1137 = vpack.c.b16 %v1105, %v1101
    %1170 = vmatprep.subr.bf16.mxu0 %v1107
    %1171 = vmatpush1.bf16.msra.mxu0 %v1106
    %1172 = vmatprep.subr.bf16.mxu0 %v1111
    %1173 = vmatpush1.bf16.msra.mxu0 %v1110
    %1174 = vmatprep.subr.bf16.mxu0 %v1115
    %1175 = vmatpush1.bf16.msra.mxu0 %v1114
    %1176 = vmatprep.subr.bf16.mxu0 %v1119
    %1177 = vmatpush1.bf16.msra.mxu0 %v1118
    %1178 = vmatprep.subr.bf16.mxu0 %v1123
    %1179 = vmatpush1.bf16.msra.mxu0 %v1122
    %1180 = vmatprep.subr.bf16.mxu0 %v1127
    %1181 = vmatpush1.bf16.msra.mxu0 %v1126
    %1182 = vmatprep.subr.bf16.mxu0 %v1131
    %1183 = vmatpush1.bf16.msra.mxu0 %v1130
    %1184 = vmatprep.subr.bf16.mxu0 %v1135
    %1185 = vmatpush1.bf16.msra.mxu0 %v1134
    %1186 = vmatprep.subr.bf16.mxu0 0
    %1187 = vmatpush1.bf16.msra.mxu0 0
    %1188 = vmatprep.subr.bf16.mxu0 0
    %1189 = vmatpush1.bf16.msra.mxu0 0
    %1190 = vmatprep.subr.bf16.mxu0 0
    %1191 = vmatpush1.bf16.msra.mxu0 0
    %1192 = vmatprep.subr.bf16.mxu0 0
    %1193 = vmatpush1.bf16.msra.mxu0 0
    %1194 = vmatprep.subr.bf16.mxu0 0
    %1195 = vmatpush1.bf16.msra.mxu0 0
    %1196 = vmatprep.subr.bf16.mxu0 0
    %1197 = vmatpush1.bf16.msra.mxu0 0
    %1198 = vmatprep.subr.bf16.mxu0 0
    %1199 = vmatpush1.bf16.msra.mxu0 0
    %1200 = vmatprep.subr.bf16.mxu0 0
    %1201 = vmatpush1.bf16.msra.mxu0 0
    %1202 = vmatprep.mubr.bf16.mxu0 0
    %1203 = vmatmul.mubr.bf16.gmra.mrb[0].mxu0 %v977
    %v1204 = vpop.f32.mrb[0].mxu0
    %v1205 = vadd.f32 0.0, %v1204
    %v1206 = vpop.f32.mrb[0].mxu0
    %v1207 = vadd.f32 0.0, %v1206
    %v1208 = vpop.f32.mrb[0].mxu0
    %v1209 = vpop.f32.mrb[0].mxu0
    %1210 = vdwg.mxu0
    %1211 = vmatprep.subr.bf16.mxu0 %v1109
    %1212 = vmatpush1.bf16.msra.mxu0 %v1108
    %1213 = vmatprep.subr.bf16.mxu0 %v1113
    %1214 = vmatpush1.bf16.msra.mxu0 %v1112
    %1215 = vmatprep.subr.bf16.mxu0 %v1117
    %1216 = vmatpush1.bf16.msra.mxu0 %v1116
    %1217 = vmatprep.subr.bf16.mxu0 %v1121
    %1218 = vmatpush1.bf16.msra.mxu0 %v1120
    %1219 = vmatprep.subr.bf16.mxu0 %v1125
    %1220 = vmatpush1.bf16.msra.mxu0 %v1124
    %1221 = vmatprep.subr.bf16.mxu0 %v1129
    %1222 = vmatpush1.bf16.msra.mxu0 %v1128
    %1223 = vmatprep.subr.bf16.mxu0 %v1133
    %1224 = vmatpush1.bf16.msra.mxu0 %v1132
    %1225 = vmatprep.subr.bf16.mxu0 %v1137
    %1226 = vmatpush1.bf16.msra.mxu0 %v1136
    %1227 = vmatprep.subr.bf16.mxu0 0
    %1228 = vmatpush1.bf16.msra.mxu0 0
    %1229 = vmatprep.subr.bf16.mxu0 0
    %1230 = vmatpush1.bf16.msra.mxu0 0
    %1231 = vmatprep.subr.bf16.mxu0 0
    %1232 = vmatpush1.bf16.msra.mxu0 0
    %1233 = vmatprep.subr.bf16.mxu0 0
    %1234 = vmatpush1.bf16.msra.mxu0 0
    %1235 = vmatprep.subr.bf16.mxu0 0
    %1236 = vmatpush1.bf16.msra.mxu0 0
    %1237 = vmatprep.subr.bf16.mxu0 0
    %1238 = vmatpush1.bf16.msra.mxu0 0
    %1239 = vmatprep.subr.bf16.mxu0 0
    %1240 = vmatpush1.bf16.msra.mxu0 0
    %1241 = vmatprep.subr.bf16.mxu0 0
    %1242 = vmatpush1.bf16.msra.mxu0 0
    %1243 = vmatprep.mubr.bf16.mxu0 0
    %1244 = vmatmul.mubr.bf16.gmra.mrb[0].mxu0 %v977
    %v1245 = vpop.f32.mrb[0].mxu0
    %v1246 = vadd.f32 0.0, %v1245
    %v1247 = vpop.f32.mrb[0].mxu0
    %v1248 = vadd.f32 0.0, %v1247
    %v1249 = vpop.f32.mrb[0].mxu0
    %v1250 = vpop.f32.mrb[0].mxu0
    %1251 = vdwg.mxu0
    %v1252 = vadd.f32 %v973, %v1205
    %v1253 = vadd.f32 %v974, %v1207
    %v1254 = vadd.f32 %v975, %v1246
    %v1255 = vadd.f32 %v976, %v1248
    %v1256 = vxor.u32 %v1252, 2147483648
    %v1257 = vxor.u32 %v1253, 2147483648
    %v1258 = vxor.u32 %v1254, 2147483648
    %v1259 = vmul.f32 %v1256, 1.442695
    %v1260 = vpow.pop %v1259
    %v1261 = vmul.f32 %v1257, 1.442695
    %v1262 = vpow.pop %v1261
    %v1263 = vmul.f32 %v1258, 1.442695
    %v1264 = vpow.pop %v1263
    %v1265 = vadd.f32 %v1260, 1.0
    %v1266 = vadd.f32 %v1262, 1.0
    %v1267 = vadd.f32 %v1264, 1.0
    %v1268 = vrcp.pop %v1265
    %v1269 = vmul.f32 1.0, %v1268
    %v1270 = vrcp.pop %v1266
    %v1271 = vmul.f32 1.0, %v1270
    %v1272 = vrcp.pop %v1267
    %v1273 = vmul.f32 1.0, %v1272
    %v1274 = vtanh.pop %v1255
    %v1275 = vmul.f32 %v1271, %v967
    %v1276 = vmul.f32 %v1269, %v1274
    %v1277 = vadd.f32 %v1275, %v1276
    %v1278 = vtanh.pop %v1277
    %v1279 = vmul.f32 %v1273, %v1278
    %s1280 = scalar_lea.vmem [#allocation3], 16
    %1281 = vst [vmem:[%s1280] sm:$0xff] %v1279
    %s1282 = scalar_lea.vmem [#allocation2], 96
    %v1283 = vld [vmem:[%s1282] sm:$0xff]
    %v1284 = vld [vmem:[%s1282 + $0x8] sm:$0xff]
    %v1285 = vld [vmem:[%s1282 + $0x10] sm:$0xff]
    %v1286 = vld [vmem:[%s1282 + $0x18] sm:$0xff]
    %v1287 = vpack.c.bf16 %v1279, %v1279
    %v1288 = vld [vmem:[#allocation7] sm:$0xff]
    %v1289 = vld [vmem:[#allocation7 + $0x8] sm:$0xff]
    %v1290 = vld [vmem:[#allocation7 + $0x10] sm:$0xff]
    %v1291 = vld [vmem:[#allocation7 + $0x18] sm:$0xff]
    %v1292 = vld [vmem:[#allocation7 + $0x20] sm:$0xff]
    %v1293 = vld [vmem:[#allocation7 + $0x28] sm:$0xff]
    %v1294 = vld [vmem:[#allocation7 + $0x30] sm:$0xff]
    %v1295 = vld [vmem:[#allocation7 + $0x38] sm:$0xff]
    %v1296 = vld [vmem:[#allocation7 + $0x40] sm:$0xff]
    %v1297 = vld [vmem:[#allocation7 + $0x48] sm:$0xff]
    %v1298 = vld [vmem:[#allocation7 + $0x50] sm:$0xff]
    %v1299 = vld [vmem:[#allocation7 + $0x58] sm:$0xff]
    %v1300 = vld [vmem:[#allocation7 + $0x60] sm:$0xff]
    %v1301 = vld [vmem:[#allocation7 + $0x68] sm:$0xff]
    %v1302 = vld [vmem:[#allocation7 + $0x70] sm:$0xff]
    %v1303 = vld [vmem:[#allocation7 + $0x78] sm:$0xff]
    %v1304 = vld [vmem:[#allocation7 + $0x80] sm:$0xff]
    %v1305 = vld [vmem:[#allocation7 + $0x88] sm:$0xff]
    %v1306 = vld [vmem:[#allocation7 + $0x90] sm:$0xff]
    %v1307 = vld [vmem:[#allocation7 + $0x98] sm:$0xff]
    %v1308 = vld [vmem:[#allocation7 + $0xa0] sm:$0xff]
    %v1309 = vld [vmem:[#allocation7 + $0xa8] sm:$0xff]
    %v1310 = vld [vmem:[#allocation7 + $0xb0] sm:$0xff]
    %v1311 = vld [vmem:[#allocation7 + $0xb8] sm:$0xff]
    %v1312 = vld [vmem:[#allocation7 + $0xc0] sm:$0xff]
    %v1313 = vld [vmem:[#allocation7 + $0xc8] sm:$0xff]
    %v1314 = vld [vmem:[#allocation7 + $0xd0] sm:$0xff]
    %v1315 = vld [vmem:[#allocation7 + $0xd8] sm:$0xff]
    %v1316 = vld [vmem:[#allocation7 + $0xe0] sm:$0xff]
    %v1317 = vld [vmem:[#allocation7 + $0xe8] sm:$0xff]
    %v1318 = vld [vmem:[#allocation7 + $0xf0] sm:$0xff]
    %v1319 = vld [vmem:[#allocation7 + $0xf8] sm:$0xff]
    %v1352 = vunpack.c.l.b16 %v1288
    %v1353 = vunpack.c.h.b16 %v1288
    %v1354 = vunpack.c.l.b16 %v1289
    %v1355 = vunpack.c.h.b16 %v1289
    %v1356 = vunpack.c.l.b16 %v1290
    %v1357 = vunpack.c.h.b16 %v1290
    %v1358 = vunpack.c.l.b16 %v1291
    %v1359 = vunpack.c.h.b16 %v1291
    %v1360 = vunpack.c.l.b16 %v1292
    %v1361 = vunpack.c.h.b16 %v1292
    %v1362 = vunpack.c.l.b16 %v1293
    %v1363 = vunpack.c.h.b16 %v1293
    %v1364 = vunpack.c.l.b16 %v1294
    %v1365 = vunpack.c.h.b16 %v1294
    %v1366 = vunpack.c.l.b16 %v1295
    %v1367 = vunpack.c.h.b16 %v1295
    %v1368 = vunpack.c.l.b16 %v1296
    %v1369 = vunpack.c.h.b16 %v1296
    %v1370 = vunpack.c.l.b16 %v1297
    %v1371 = vunpack.c.h.b16 %v1297
    %v1372 = vunpack.c.l.b16 %v1298
    %v1373 = vunpack.c.h.b16 %v1298
    %v1374 = vunpack.c.l.b16 %v1299
    %v1375 = vunpack.c.h.b16 %v1299
    %v1376 = vunpack.c.l.b16 %v1300
    %v1377 = vunpack.c.h.b16 %v1300
    %v1378 = vunpack.c.l.b16 %v1301
    %v1379 = vunpack.c.h.b16 %v1301
    %v1380 = vunpack.c.l.b16 %v1302
    %v1381 = vunpack.c.h.b16 %v1302
    %v1382 = vunpack.c.l.b16 %v1303
    %v1383 = vunpack.c.h.b16 %v1303
    %v1384 = vunpack.c.l.b16 %v1304
    %v1385 = vunpack.c.h.b16 %v1304
    %v1386 = vunpack.c.l.b16 %v1305
    %v1387 = vunpack.c.h.b16 %v1305
    %v1388 = vunpack.c.l.b16 %v1306
    %v1389 = vunpack.c.h.b16 %v1306
    %v1390 = vunpack.c.l.b16 %v1307
    %v1391 = vunpack.c.h.b16 %v1307
    %v1392 = vunpack.c.l.b16 %v1308
    %v1393 = vunpack.c.h.b16 %v1308
    %v1394 = vunpack.c.l.b16 %v1309
    %v1395 = vunpack.c.h.b16 %v1309
    %v1396 = vunpack.c.l.b16 %v1310
    %v1397 = vunpack.c.h.b16 %v1310
    %v1398 = vunpack.c.l.b16 %v1311
    %v1399 = vunpack.c.h.b16 %v1311
    %v1400 = vunpack.c.l.b16 %v1312
    %v1401 = vunpack.c.h.b16 %v1312
    %v1402 = vunpack.c.l.b16 %v1313
    %v1403 = vunpack.c.h.b16 %v1313
    %v1404 = vunpack.c.l.b16 %v1314
    %v1405 = vunpack.c.h.b16 %v1314
    %v1406 = vunpack.c.l.b16 %v1315
    %v1407 = vunpack.c.h.b16 %v1315
    %v1408 = vunpack.c.l.b16 %v1316
    %v1409 = vunpack.c.h.b16 %v1316
    %v1410 = vunpack.c.l.b16 %v1317
    %v1411 = vunpack.c.h.b16 %v1317
    %v1412 = vunpack.c.l.b16 %v1318
    %v1413 = vunpack.c.h.b16 %v1318
    %v1414 = vunpack.c.l.b16 %v1319
    %v1415 = vunpack.c.h.b16 %v1319
    %v1416 = vpack.c.b16 %v1356, %v1352
    %v1417 = vpack.c.b16 %v1357, %v1353
    %v1418 = vpack.c.b16 %v1358, %v1354
    %v1419 = vpack.c.b16 %v1359, %v1355
    %v1420 = vpack.c.b16 %v1364, %v1360
    %v1421 = vpack.c.b16 %v1365, %v1361
    %v1422 = vpack.c.b16 %v1366, %v1362
    %v1423 = vpack.c.b16 %v1367, %v1363
    %v1424 = vpack.c.b16 %v1372, %v1368
    %v1425 = vpack.c.b16 %v1373, %v1369
    %v1426 = vpack.c.b16 %v1374, %v1370
    %v1427 = vpack.c.b16 %v1375, %v1371
    %v1428 = vpack.c.b16 %v1380, %v1376
    %v1429 = vpack.c.b16 %v1381, %v1377
    %v1430 = vpack.c.b16 %v1382, %v1378
    %v1431 = vpack.c.b16 %v1383, %v1379
    %v1432 = vpack.c.b16 %v1388, %v1384
    %v1433 = vpack.c.b16 %v1389, %v1385
    %v1434 = vpack.c.b16 %v1390, %v1386
    %v1435 = vpack.c.b16 %v1391, %v1387
    %v1436 = vpack.c.b16 %v1396, %v1392
    %v1437 = vpack.c.b16 %v1397, %v1393
    %v1438 = vpack.c.b16 %v1398, %v1394
    %v1439 = vpack.c.b16 %v1399, %v1395
    %v1440 = vpack.c.b16 %v1404, %v1400
    %v1441 = vpack.c.b16 %v1405, %v1401
    %v1442 = vpack.c.b16 %v1406, %v1402
    %v1443 = vpack.c.b16 %v1407, %v1403
    %v1444 = vpack.c.b16 %v1412, %v1408
    %v1445 = vpack.c.b16 %v1413, %v1409
    %v1446 = vpack.c.b16 %v1414, %v1410
    %v1447 = vpack.c.b16 %v1415, %v1411
    %1480 = vmatprep.subr.bf16.mxu0 %v1417
    %1481 = vmatpush1.bf16.msra.mxu0 %v1416
    %1482 = vmatprep.subr.bf16.mxu0 %v1421
    %1483 = vmatpush1.bf16.msra.mxu0 %v1420
    %1484 = vmatprep.subr.bf16.mxu0 %v1425
    %1485 = vmatpush1.bf16.msra.mxu0 %v1424
    %1486 = vmatprep.subr.bf16.mxu0 %v1429
    %1487 = vmatpush1.bf16.msra.mxu0 %v1428
    %1488 = vmatprep.subr.bf16.mxu0 %v1433
    %1489 = vmatpush1.bf16.msra.mxu0 %v1432
    %1490 = vmatprep.subr.bf16.mxu0 %v1437
    %1491 = vmatpush1.bf16.msra.mxu0 %v1436
    %1492 = vmatprep.subr.bf16.mxu0 %v1441
    %1493 = vmatpush1.bf16.msra.mxu0 %v1440
    %1494 = vmatprep.subr.bf16.mxu0 %v1445
    %1495 = vmatpush1.bf16.msra.mxu0 %v1444
    %1496 = vmatprep.subr.bf16.mxu0 0
    %1497 = vmatpush1.bf16.msra.mxu0 0
    %1498 = vmatprep.subr.bf16.mxu0 0
    %1499 = vmatpush1.bf16.msra.mxu0 0
    %1500 = vmatprep.subr.bf16.mxu0 0
    %1501 = vmatpush1.bf16.msra.mxu0 0
    %1502 = vmatprep.subr.bf16.mxu0 0
    %1503 = vmatpush1.bf16.msra.mxu0 0
    %1504 = vmatprep.subr.bf16.mxu0 0
    %1505 = vmatpush1.bf16.msra.mxu0 0
    %1506 = vmatprep.subr.bf16.mxu0 0
    %1507 = vmatpush1.bf16.msra.mxu0 0
    %1508 = vmatprep.subr.bf16.mxu0 0
    %1509 = vmatpush1.bf16.msra.mxu0 0
    %1510 = vmatprep.subr.bf16.mxu0 0
    %1511 = vmatpush1.bf16.msra.mxu0 0
    %1512 = vmatprep.mubr.bf16.mxu0 0
    %1513 = vmatmul.mubr.bf16.gmra.mrb[0].mxu0 %v1287
    %v1514 = vpop.f32.mrb[0].mxu0
    %v1515 = vadd.f32 0.0, %v1514
    %v1516 = vpop.f32.mrb[0].mxu0
    %v1517 = vadd.f32 0.0, %v1516
    %v1518 = vpop.f32.mrb[0].mxu0
    %v1519 = vpop.f32.mrb[0].mxu0
    %1520 = vdwg.mxu0
    %1521 = vmatprep.subr.bf16.mxu0 %v1419
    %1522 = vmatpush1.bf16.msra.mxu0 %v1418
    %1523 = vmatprep.subr.bf16.mxu0 %v1423
    %1524 = vmatpush1.bf16.msra.mxu0 %v1422
    %1525 = vmatprep.subr.bf16.mxu0 %v1427
    %1526 = vmatpush1.bf16.msra.mxu0 %v1426
    %1527 = vmatprep.subr.bf16.mxu0 %v1431
    %1528 = vmatpush1.bf16.msra.mxu0 %v1430
    %1529 = vmatprep.subr.bf16.mxu0 %v1435
    %1530 = vmatpush1.bf16.msra.mxu0 %v1434
    %1531 = vmatprep.subr.bf16.mxu0 %v1439
    %1532 = vmatpush1.bf16.msra.mxu0 %v1438
    %1533 = vmatprep.subr.bf16.mxu0 %v1443
    %1534 = vmatpush1.bf16.msra.mxu0 %v1442
    %1535 = vmatprep.subr.bf16.mxu0 %v1447
    %1536 = vmatpush1.bf16.msra.mxu0 %v1446
    %1537 = vmatprep.subr.bf16.mxu0 0
    %1538 = vmatpush1.bf16.msra.mxu0 0
    %1539 = vmatprep.subr.bf16.mxu0 0
    %1540 = vmatpush1.bf16.msra.mxu0 0
    %1541 = vmatprep.subr.bf16.mxu0 0
    %1542 = vmatpush1.bf16.msra.mxu0 0
    %1543 = vmatprep.subr.bf16.mxu0 0
    %1544 = vmatpush1.bf16.msra.mxu0 0
    %1545 = vmatprep.subr.bf16.mxu0 0
    %1546 = vmatpush1.bf16.msra.mxu0 0
    %1547 = vmatprep.subr.bf16.mxu0 0
    %1548 = vmatpush1.bf16.msra.mxu0 0
    %1549 = vmatprep.subr.bf16.mxu0 0
    %1550 = vmatpush1.bf16.msra.mxu0 0
    %1551 = vmatprep.subr.bf16.mxu0 0
    %1552 = vmatpush1.bf16.msra.mxu0 0
    %1553 = vmatprep.mubr.bf16.mxu0 0
    %1554 = vmatmul.mubr.bf16.gmra.mrb[0].mxu0 %v1287
    %v1555 = vpop.f32.mrb[0].mxu0
    %v1556 = vadd.f32 0.0, %v1555
    %v1557 = vpop.f32.mrb[0].mxu0
    %v1558 = vadd.f32 0.0, %v1557
    %v1559 = vpop.f32.mrb[0].mxu0
    %v1560 = vpop.f32.mrb[0].mxu0
    %1561 = vdwg.mxu0
    %v1562 = vadd.f32 %v1283, %v1515
    %v1563 = vadd.f32 %v1284, %v1517
    %v1564 = vadd.f32 %v1285, %v1556
    %v1565 = vadd.f32 %v1286, %v1558
    %v1566 = vxor.u32 %v1562, 2147483648
    %v1567 = vxor.u32 %v1563, 2147483648
    %v1568 = vxor.u32 %v1564, 2147483648
    %v1569 = vmul.f32 %v1566, 1.442695
    %v1570 = vpow.pop %v1569
    %v1571 = vmul.f32 %v1567, 1.442695
    %v1572 = vpow.pop %v1571
    %v1573 = vmul.f32 %v1568, 1.442695
    %v1574 = vpow.pop %v1573
    %v1575 = vadd.f32 %v1570, 1.0
    %v1576 = vadd.f32 %v1572, 1.0
    %v1577 = vadd.f32 %v1574, 1.0
    %v1578 = vrcp.pop %v1575
    %v1579 = vmul.f32 1.0, %v1578
    %v1580 = vrcp.pop %v1576
    %v1581 = vmul.f32 1.0, %v1580
    %v1582 = vrcp.pop %v1577
    %v1583 = vmul.f32 1.0, %v1582
    %v1584 = vtanh.pop %v1565
    %v1585 = vmul.f32 %v1581, %v1277
    %v1586 = vmul.f32 %v1579, %v1584
    %v1587 = vadd.f32 %v1585, %v1586
    %v1588 = vtanh.pop %v1587
    %v1589 = vmul.f32 %v1583, %v1588
    %s1590 = scalar_lea.vmem [#allocation3], 24
    %1591 = vst [vmem:[%s1590] sm:$0xff] %v1589
    %s1592 = scalar_lea.vmem [#allocation2], 128
    %v1593 = vld [vmem:[%s1592] sm:$0xff]
    %v1594 = vld [vmem:[%s1592 + $0x8] sm:$0xff]
    %v1595 = vld [vmem:[%s1592 + $0x10] sm:$0xff]
    %v1596 = vld [vmem:[%s1592 + $0x18] sm:$0xff]
    %v1597 = vpack.c.bf16 %v1589, %v1589
    %v1598 = vld [vmem:[#allocation7] sm:$0xff]
    %v1599 = vld [vmem:[#allocation7 + $0x8] sm:$0xff]
    %v1600 = vld [vmem:[#allocation7 + $0x10] sm:$0xff]
    %v1601 = vld [vmem:[#allocation7 + $0x18] sm:$0xff]
    %v1602 = vld [vmem:[#allocation7 + $0x20] sm:$0xff]
    %v1603 = vld [vmem:[#allocation7 + $0x28] sm:$0xff]
    %v1604 = vld [vmem:[#allocation7 + $0x30] sm:$0xff]
    %v1605 = vld [vmem:[#allocation7 + $0x38] sm:$0xff]
    %v1606 = vld [vmem:[#allocation7 + $0x40] sm:$0xff]
    %v1607 = vld [vmem:[#allocation7 + $0x48] sm:$0xff]
    %v1608 = vld [vmem:[#allocation7 + $0x50] sm:$0xff]
    %v1609 = vld [vmem:[#allocation7 + $0x58] sm:$0xff]
    %v1610 = vld [vmem:[#allocation7 + $0x60] sm:$0xff]
    %v1611 = vld [vmem:[#allocation7 + $0x68] sm:$0xff]
    %v1612 = vld [vmem:[#allocation7 + $0x70] sm:$0xff]
    %v1613 = vld [vmem:[#allocation7 + $0x78] sm:$0xff]
    %v1614 = vld [vmem:[#allocation7 + $0x80] sm:$0xff]
    %v1615 = vld [vmem:[#allocation7 + $0x88] sm:$0xff]
    %v1616 = vld [vmem:[#allocation7 + $0x90] sm:$0xff]
    %v1617 = vld [vmem:[#allocation7 + $0x98] sm:$0xff]
    %v1618 = vld [vmem:[#allocation7 + $0xa0] sm:$0xff]
    %v1619 = vld [vmem:[#allocation7 + $0xa8] sm:$0xff]
    %v1620 = vld [vmem:[#allocation7 + $0xb0] sm:$0xff]
    %v1621 = vld [vmem:[#allocation7 + $0xb8] sm:$0xff]
    %v1622 = vld [vmem:[#allocation7 + $0xc0] sm:$0xff]
    %v1623 = vld [vmem:[#allocation7 + $0xc8] sm:$0xff]
    %v1624 = vld [vmem:[#allocation7 + $0xd0] sm:$0xff]
    %v1625 = vld [vmem:[#allocation7 + $0xd8] sm:$0xff]
    %v1626 = vld [vmem:[#allocation7 + $0xe0] sm:$0xff]
    %v1627 = vld [vmem:[#allocation7 + $0xe8] sm:$0xff]
    %v1628 = vld [vmem:[#allocation7 + $0xf0] sm:$0xff]
    %v1629 = vld [vmem:[#allocation7 + $0xf8] sm:$0xff]
    %v1662 = vunpack.c.l.b16 %v1598
    %v1663 = vunpack.c.h.b16 %v1598
    %v1664 = vunpack.c.l.b16 %v1599
    %v1665 = vunpack.c.h.b16 %v1599
    %v1666 = vunpack.c.l.b16 %v1600
    %v1667 = vunpack.c.h.b16 %v1600
    %v1668 = vunpack.c.l.b16 %v1601
    %v1669 = vunpack.c.h.b16 %v1601
    %v1670 = vunpack.c.l.b16 %v1602
    %v1671 = vunpack.c.h.b16 %v1602
    %v1672 = vunpack.c.l.b16 %v1603
    %v1673 = vunpack.c.h.b16 %v1603
    %v1674 = vunpack.c.l.b16 %v1604
    %v1675 = vunpack.c.h.b16 %v1604
    %v1676 = vunpack.c.l.b16 %v1605
    %v1677 = vunpack.c.h.b16 %v1605
    %v1678 = vunpack.c.l.b16 %v1606
    %v1679 = vunpack.c.h.b16 %v1606
    %v1680 = vunpack.c.l.b16 %v1607
    %v1681 = vunpack.c.h.b16 %v1607
    %v1682 = vunpack.c.l.b16 %v1608
    %v1683 = vunpack.c.h.b16 %v1608
    %v1684 = vunpack.c.l.b16 %v1609
    %v1685 = vunpack.c.h.b16 %v1609
    %v1686 = vunpack.c.l.b16 %v1610
    %v1687 = vunpack.c.h.b16 %v1610
    %v1688 = vunpack.c.l.b16 %v1611
    %v1689 = vunpack.c.h.b16 %v1611
    %v1690 = vunpack.c.l.b16 %v1612
    %v1691 = vunpack.c.h.b16 %v1612
    %v1692 = vunpack.c.l.b16 %v1613
    %v1693 = vunpack.c.h.b16 %v1613
    %v1694 = vunpack.c.l.b16 %v1614
    %v1695 = vunpack.c.h.b16 %v1614
    %v1696 = vunpack.c.l.b16 %v1615
    %v1697 = vunpack.c.h.b16 %v1615
    %v1698 = vunpack.c.l.b16 %v1616
    %v1699 = vunpack.c.h.b16 %v1616
    %v1700 = vunpack.c.l.b16 %v1617
    %v1701 = vunpack.c.h.b16 %v1617
    %v1702 = vunpack.c.l.b16 %v1618
    %v1703 = vunpack.c.h.b16 %v1618
    %v1704 = vunpack.c.l.b16 %v1619
    %v1705 = vunpack.c.h.b16 %v1619
    %v1706 = vunpack.c.l.b16 %v1620
    %v1707 = vunpack.c.h.b16 %v1620
    %v1708 = vunpack.c.l.b16 %v1621
    %v1709 = vunpack.c.h.b16 %v1621
    %v1710 = vunpack.c.l.b16 %v1622
    %v1711 = vunpack.c.h.b16 %v1622
    %v1712 = vunpack.c.l.b16 %v1623
    %v1713 = vunpack.c.h.b16 %v1623
    %v1714 = vunpack.c.l.b16 %v1624
    %v1715 = vunpack.c.h.b16 %v1624
    %v1716 = vunpack.c.l.b16 %v1625
    %v1717 = vunpack.c.h.b16 %v1625
    %v1718 = vunpack.c.l.b16 %v1626
    %v1719 = vunpack.c.h.b16 %v1626
    %v1720 = vunpack.c.l.b16 %v1627
    %v1721 = vunpack.c.h.b16 %v1627
    %v1722 = vunpack.c.l.b16 %v1628
    %v1723 = vunpack.c.h.b16 %v1628
    %v1724 = vunpack.c.l.b16 %v1629
    %v1725 = vunpack.c.h.b16 %v1629
    %v1726 = vpack.c.b16 %v1666, %v1662
    %v1727 = vpack.c.b16 %v1667, %v1663
    %v1728 = vpack.c.b16 %v1668, %v1664
    %v1729 = vpack.c.b16 %v1669, %v1665
    %v1730 = vpack.c.b16 %v1674, %v1670
    %v1731 = vpack.c.b16 %v1675, %v1671
    %v1732 = vpack.c.b16 %v1676, %v1672
    %v1733 = vpack.c.b16 %v1677, %v1673
    %v1734 = vpack.c.b16 %v1682, %v1678
    %v1735 = vpack.c.b16 %v1683, %v1679
    %v1736 = vpack.c.b16 %v1684, %v1680
    %v1737 = vpack.c.b16 %v1685, %v1681
    %v1738 = vpack.c.b16 %v1690, %v1686
    %v1739 = vpack.c.b16 %v1691, %v1687
    %v1740 = vpack.c.b16 %v1692, %v1688
    %v1741 = vpack.c.b16 %v1693, %v1689
    %v1742 = vpack.c.b16 %v1698, %v1694
    %v1743 = vpack.c.b16 %v1699, %v1695
    %v1744 = vpack.c.b16 %v1700, %v1696
    %v1745 = vpack.c.b16 %v1701, %v1697
    %v1746 = vpack.c.b16 %v1706, %v1702
    %v1747 = vpack.c.b16 %v1707, %v1703
    %v1748 = vpack.c.b16 %v1708, %v1704
    %v1749 = vpack.c.b16 %v1709, %v1705
    %v1750 = vpack.c.b16 %v1714, %v1710
    %v1751 = vpack.c.b16 %v1715, %v1711
    %v1752 = vpack.c.b16 %v1716, %v1712
    %v1753 = vpack.c.b16 %v1717, %v1713
    %v1754 = vpack.c.b16 %v1722, %v1718
    %v1755 = vpack.c.b16 %v1723, %v1719
    %v1756 = vpack.c.b16 %v1724, %v1720
    %v1757 = vpack.c.b16 %v1725, %v1721
    %1790 = vmatprep.subr.bf16.mxu0 %v1727
    %1791 = vmatpush1.bf16.msra.mxu0 %v1726
    %1792 = vmatprep.subr.bf16.mxu0 %v1731
    %1793 = vmatpush1.bf16.msra.mxu0 %v1730
    %1794 = vmatprep.subr.bf16.mxu0 %v1735
    %1795 = vmatpush1.bf16.msra.mxu0 %v1734
    %1796 = vmatprep.subr.bf16.mxu0 %v1739
    %1797 = vmatpush1.bf16.msra.mxu0 %v1738
    %1798 = vmatprep.subr.bf16.mxu0 %v1743
    %1799 = vmatpush1.bf16.msra.mxu0 %v1742
    %1800 = vmatprep.subr.bf16.mxu0 %v1747
    %1801 = vmatpush1.bf16.msra.mxu0 %v1746
    %1802 = vmatprep.subr.bf16.mxu0 %v1751
    %1803 = vmatpush1.bf16.msra.mxu0 %v1750
    %1804 = vmatprep.subr.bf16.mxu0 %v1755
    %1805 = vmatpush1.bf16.msra.mxu0 %v1754
    %1806 = vmatprep.subr.bf16.mxu0 0
    %1807 = vmatpush1.bf16.msra.mxu0 0
    %1808 = vmatprep.subr.bf16.mxu0 0
    %1809 = vmatpush1.bf16.msra.mxu0 0
    %1810 = vmatprep.subr.bf16.mxu0 0
    %1811 = vmatpush1.bf16.msra.mxu0 0
    %1812 = vmatprep.subr.bf16.mxu0 0
    %1813 = vmatpush1.bf16.msra.mxu0 0
    %1814 = vmatprep.subr.bf16.mxu0 0
    %1815 = vmatpush1.bf16.msra.mxu0 0
    %1816 = vmatprep.subr.bf16.mxu0 0
    %1817 = vmatpush1.bf16.msra.mxu0 0
    %1818 = vmatprep.subr.bf16.mxu0 0
    %1819 = vmatpush1.bf16.msra.mxu0 0
    %1820 = vmatprep.subr.bf16.mxu0 0
    %1821 = vmatpush1.bf16.msra.mxu0 0
    %1822 = vmatprep.mubr.bf16.mxu0 0
    %1823 = vmatmul.mubr.bf16.gmra.mrb[0].mxu0 %v1597
    %v1824 = vpop.f32.mrb[0].mxu0
    %v1825 = vadd.f32 0.0, %v1824
    %v1826 = vpop.f32.mrb[0].mxu0
    %v1827 = vadd.f32 0.0, %v1826
    %v1828 = vpop.f32.mrb[0].mxu0
    %v1829 = vpop.f32.mrb[0].mxu0
    %1830 = vdwg.mxu0
    %1831 = vmatprep.subr.bf16.mxu0 %v1729
    %1832 = vmatpush1.bf16.msra.mxu0 %v1728
    %1833 = vmatprep.subr.bf16.mxu0 %v1733
    %1834 = vmatpush1.bf16.msra.mxu0 %v1732
    %1835 = vmatprep.subr.bf16.mxu0 %v1737
    %1836 = vmatpush1.bf16.msra.mxu0 %v1736
    %1837 = vmatprep.subr.bf16.mxu0 %v1741
    %1838 = vmatpush1.bf16.msra.mxu0 %v1740
    %1839 = vmatprep.subr.bf16.mxu0 %v1745
    %1840 = vmatpush1.bf16.msra.mxu0 %v1744
    %1841 = vmatprep.subr.bf16.mxu0 %v1749
    %1842 = vmatpush1.bf16.msra.mxu0 %v1748
    %1843 = vmatprep.subr.bf16.mxu0 %v1753
    %1844 = vmatpush1.bf16.msra.mxu0 %v1752
    %1845 = vmatprep.subr.bf16.mxu0 %v1757
    %1846 = vmatpush1.bf16.msra.mxu0 %v1756
    %1847 = vmatprep.subr.bf16.mxu0 0
    %1848 = vmatpush1.bf16.msra.mxu0 0
    %1849 = vmatprep.subr.bf16.mxu0 0
    %1850 = vmatpush1.bf16.msra.mxu0 0
    %1851 = vmatprep.subr.bf16.mxu0 0
    %1852 = vmatpush1.bf16.msra.mxu0 0
    %1853 = vmatprep.subr.bf16.mxu0 0
    %1854 = vmatpush1.bf16.msra.mxu0 0
    %1855 = vmatprep.subr.bf16.mxu0 0
    %1856 = vmatpush1.bf16.msra.mxu0 0
    %1857 = vmatprep.subr.bf16.mxu0 0
    %1858 = vmatpush1.bf16.msra.mxu0 0
    %1859 = vmatprep.subr.bf16.mxu0 0
    %1860 = vmatpush1.bf16.msra.mxu0 0
    %1861 = vmatprep.subr.bf16.mxu0 0
    %1862 = vmatpush1.bf16.msra.mxu0 0
    %1863 = vmatprep.mubr.bf16.mxu0 0
    %1864 = vmatmul.mubr.bf16.gmra.mrb[0].mxu0 %v1597
    %v1865 = vpop.f32.mrb[0].mxu0
    %v1866 = vadd.f32 0.0, %v1865
    %v1867 = vpop.f32.mrb[0].mxu0
    %v1868 = vadd.f32 0.0, %v1867
    %v1869 = vpop.f32.mrb[0].mxu0
    %v1870 = vpop.f32.mrb[0].mxu0
    %1871 = vdwg.mxu0
    %v1872 = vadd.f32 %v1593, %v1825
    %v1873 = vadd.f32 %v1594, %v1827
    %v1874 = vadd.f32 %v1595, %v1866
    %v1875 = vadd.f32 %v1596, %v1868
    %v1876 = vxor.u32 %v1872, 2147483648
    %v1877 = vxor.u32 %v1873, 2147483648
    %v1878 = vxor.u32 %v1874, 2147483648
    %v1879 = vmul.f32 %v1876, 1.442695
    %v1880 = vpow.pop %v1879
    %v1881 = vmul.f32 %v1877, 1.442695
    %v1882 = vpow.pop %v1881
    %v1883 = vmul.f32 %v1878, 1.442695
    %v1884 = vpow.pop %v1883
    %v1885 = vadd.f32 %v1880, 1.0
    %v1886 = vadd.f32 %v1882, 1.0
    %v1887 = vadd.f32 %v1884, 1.0
    %v1888 = vrcp.pop %v1885
    %v1889 = vmul.f32 1.0, %v1888
    %v1890 = vrcp.pop %v1886
    %v1891 = vmul.f32 1.0, %v1890
    %v1892 = vrcp.pop %v1887
    %v1893 = vmul.f32 1.0, %v1892
    %v1894 = vtanh.pop %v1875
    %v1895 = vmul.f32 %v1891, %v1587
    %v1896 = vmul.f32 %v1889, %v1894
    %v1897 = vadd.f32 %v1895, %v1896
    %v1898 = vtanh.pop %v1897
    %v1899 = vmul.f32 %v1893, %v1898
    %s1900 = scalar_lea.vmem [#allocation3], 32
    %1901 = vst [vmem:[%s1900] sm:$0xff] %v1899
    %s1902 = scalar_lea.vmem [#allocation2], 160
    %v1903 = vld [vmem:[%s1902] sm:$0xff]
    %v1904 = vld [vmem:[%s1902 + $0x8] sm:$0xff]
    %v1905 = vld [vmem:[%s1902 + $0x10] sm:$0xff]
    %v1906 = vld [vmem:[%s1902 + $0x18] sm:$0xff]
    %v1907 = vpack.c.bf16 %v1899, %v1899
    %v1908 = vld [vmem:[#allocation7] sm:$0xff]
    %v1909 = vld [vmem:[#allocation7 + $0x8] sm:$0xff]
    %v1910 = vld [vmem:[#allocation7 + $0x10] sm:$0xff]
    %v1911 = vld [vmem:[#allocation7 + $0x18] sm:$0xff]
    %v1912 = vld [vmem:[#allocation7 + $0x20] sm:$0xff]
    %v1913 = vld [vmem:[#allocation7 + $0x28] sm:$0xff]
    %v1914 = vld [vmem:[#allocation7 + $0x30] sm:$0xff]
    %v1915 = vld [vmem:[#allocation7 + $0x38] sm:$0xff]
    %v1916 = vld [vmem:[#allocation7 + $0x40] sm:$0xff]
    %v1917 = vld [vmem:[#allocation7 + $0x48] sm:$0xff]
    %v1918 = vld [vmem:[#allocation7 + $0x50] sm:$0xff]
    %v1919 = vld [vmem:[#allocation7 + $0x58] sm:$0xff]
    %v1920 = vld [vmem:[#allocation7 + $0x60] sm:$0xff]
    %v1921 = vld [vmem:[#allocation7 + $0x68] sm:$0xff]
    %v1922 = vld [vmem:[#allocation7 + $0x70] sm:$0xff]
    %v1923 = vld [vmem:[#allocation7 + $0x78] sm:$0xff]
    %v1924 = vld [vmem:[#allocation7 + $0x80] sm:$0xff]
    %v1925 = vld [vmem:[#allocation7 + $0x88] sm:$0xff]
    %v1926 = vld [vmem:[#allocation7 + $0x90] sm:$0xff]
    %v1927 = vld [vmem:[#allocation7 + $0x98] sm:$0xff]
    %v1928 = vld [vmem:[#allocation7 + $0xa0] sm:$0xff]
    %v1929 = vld [vmem:[#allocation7 + $0xa8] sm:$0xff]
    %v1930 = vld [vmem:[#allocation7 + $0xb0] sm:$0xff]
    %v1931 = vld [vmem:[#allocation7 + $0xb8] sm:$0xff]
    %v1932 = vld [vmem:[#allocation7 + $0xc0] sm:$0xff]
    %v1933 = vld [vmem:[#allocation7 + $0xc8] sm:$0xff]
    %v1934 = vld [vmem:[#allocation7 + $0xd0] sm:$0xff]
    %v1935 = vld [vmem:[#allocation7 + $0xd8] sm:$0xff]
    %v1936 = vld [vmem:[#allocation7 + $0xe0] sm:$0xff]
    %v1937 = vld [vmem:[#allocation7 + $0xe8] sm:$0xff]
    %v1938 = vld [vmem:[#allocation7 + $0xf0] sm:$0xff]
    %v1939 = vld [vmem:[#allocation7 + $0xf8] sm:$0xff]
    %v1972 = vunpack.c.l.b16 %v1908
    %v1973 = vunpack.c.h.b16 %v1908
    %v1974 = vunpack.c.l.b16 %v1909
    %v1975 = vunpack.c.h.b16 %v1909
    %v1976 = vunpack.c.l.b16 %v1910
    %v1977 = vunpack.c.h.b16 %v1910
    %v1978 = vunpack.c.l.b16 %v1911
    %v1979 = vunpack.c.h.b16 %v1911
    %v1980 = vunpack.c.l.b16 %v1912
    %v1981 = vunpack.c.h.b16 %v1912
    %v1982 = vunpack.c.l.b16 %v1913
    %v1983 = vunpack.c.h.b16 %v1913
    %v1984 = vunpack.c.l.b16 %v1914
    %v1985 = vunpack.c.h.b16 %v1914
    %v1986 = vunpack.c.l.b16 %v1915
    %v1987 = vunpack.c.h.b16 %v1915
    %v1988 = vunpack.c.l.b16 %v1916
    %v1989 = vunpack.c.h.b16 %v1916
    %v1990 = vunpack.c.l.b16 %v1917
    %v1991 = vunpack.c.h.b16 %v1917
    %v1992 = vunpack.c.l.b16 %v1918
    %v1993 = vunpack.c.h.b16 %v1918
    %v1994 = vunpack.c.l.b16 %v1919
    %v1995 = vunpack.c.h.b16 %v1919
    %v1996 = vunpack.c.l.b16 %v1920
    %v1997 = vunpack.c.h.b16 %v1920
    %v1998 = vunpack.c.l.b16 %v1921
    %v1999 = vunpack.c.h.b16 %v1921
    %v2000 = vunpack.c.l.b16 %v1922
    %v2001 = vunpack.c.h.b16 %v1922
    %v2002 = vunpack.c.l.b16 %v1923
    %v2003 = vunpack.c.h.b16 %v1923
    %v2004 = vunpack.c.l.b16 %v1924
    %v2005 = vunpack.c.h.b16 %v1924
    %v2006 = vunpack.c.l.b16 %v1925
    %v2007 = vunpack.c.h.b16 %v1925
    %v2008 = vunpack.c.l.b16 %v1926
    %v2009 = vunpack.c.h.b16 %v1926
    %v2010 = vunpack.c.l.b16 %v1927
    %v2011 = vunpack.c.h.b16 %v1927
    %v2012 = vunpack.c.l.b16 %v1928
    %v2013 = vunpack.c.h.b16 %v1928
    %v2014 = vunpack.c.l.b16 %v1929
    %v2015 = vunpack.c.h.b16 %v1929
    %v2016 = vunpack.c.l.b16 %v1930
    %v2017 = vunpack.c.h.b16 %v1930
    %v2018 = vunpack.c.l.b16 %v1931
    %v2019 = vunpack.c.h.b16 %v1931
    %v2020 = vunpack.c.l.b16 %v1932
    %v2021 = vunpack.c.h.b16 %v1932
    %v2022 = vunpack.c.l.b16 %v1933
    %v2023 = vunpack.c.h.b16 %v1933
    %v2024 = vunpack.c.l.b16 %v1934
    %v2025 = vunpack.c.h.b16 %v1934
    %v2026 = vunpack.c.l.b16 %v1935
    %v2027 = vunpack.c.h.b16 %v1935
    %v2028 = vunpack.c.l.b16 %v1936
    %v2029 = vunpack.c.h.b16 %v1936
    %v2030 = vunpack.c.l.b16 %v1937
    %v2031 = vunpack.c.h.b16 %v1937
    %v2032 = vunpack.c.l.b16 %v1938
    %v2033 = vunpack.c.h.b16 %v1938
    %v2034 = vunpack.c.l.b16 %v1939
    %v2035 = vunpack.c.h.b16 %v1939
    %v2036 = vpack.c.b16 %v1976, %v1972
    %v2037 = vpack.c.b16 %v1977, %v1973
    %v2038 = vpack.c.b16 %v1978, %v1974
    %v2039 = vpack.c.b16 %v1979, %v1975
    %v2040 = vpack.c.b16 %v1984, %v1980
    %v2041 = vpack.c.b16 %v1985, %v1981
    %v2042 = vpack.c.b16 %v1986, %v1982
    %v2043 = vpack.c.b16 %v1987, %v1983
    %v2044 = vpack.c.b16 %v1992, %v1988
    %v2045 = vpack.c.b16 %v1993, %v1989
    %v2046 = vpack.c.b16 %v1994, %v1990
    %v2047 = vpack.c.b16 %v1995, %v1991
    %v2048 = vpack.c.b16 %v2000, %v1996
    %v2049 = vpack.c.b16 %v2001, %v1997
    %v2050 = vpack.c.b16 %v2002, %v1998
    %v2051 = vpack.c.b16 %v2003, %v1999
    %v2052 = vpack.c.b16 %v2008, %v2004
    %v2053 = vpack.c.b16 %v2009, %v2005
    %v2054 = vpack.c.b16 %v2010, %v2006
    %v2055 = vpack.c.b16 %v2011, %v2007
    %v2056 = vpack.c.b16 %v2016, %v2012
    %v2057 = vpack.c.b16 %v2017, %v2013
    %v2058 = vpack.c.b16 %v2018, %v2014
    %v2059 = vpack.c.b16 %v2019, %v2015
    %v2060 = vpack.c.b16 %v2024, %v2020
    %v2061 = vpack.c.b16 %v2025, %v2021
    %v2062 = vpack.c.b16 %v2026, %v2022
    %v2063 = vpack.c.b16 %v2027, %v2023
    %v2064 = vpack.c.b16 %v2032, %v2028
    %v2065 = vpack.c.b16 %v2033, %v2029
    %v2066 = vpack.c.b16 %v2034, %v2030
    %v2067 = vpack.c.b16 %v2035, %v2031
    %2100 = vmatprep.subr.bf16.mxu0 %v2037
    %2101 = vmatpush1.bf16.msra.mxu0 %v2036
    %2102 = vmatprep.subr.bf16.mxu0 %v2041
    %2103 = vmatpush1.bf16.msra.mxu0 %v2040
    %2104 = vmatprep.subr.bf16.mxu0 %v2045
    %2105 = vmatpush1.bf16.msra.mxu0 %v2044
    %2106 = vmatprep.subr.bf16.mxu0 %v2049
    %2107 = vmatpush1.bf16.msra.mxu0 %v2048
    %2108 = vmatprep.subr.bf16.mxu0 %v2053
    %2109 = vmatpush1.bf16.msra.mxu0 %v2052
    %2110 = vmatprep.subr.bf16.mxu0 %v2057
    %2111 = vmatpush1.bf16.msra.mxu0 %v2056
    %2112 = vmatprep.subr.bf16.mxu0 %v2061
    %2113 = vmatpush1.bf16.msra.mxu0 %v2060
    %2114 = vmatprep.subr.bf16.mxu0 %v2065
    %2115 = vmatpush1.bf16.msra.mxu0 %v2064
    %2116 = vmatprep.subr.bf16.mxu0 0
    %2117 = vmatpush1.bf16.msra.mxu0 0
    %2118 = vmatprep.subr.bf16.mxu0 0
    %2119 = vmatpush1.bf16.msra.mxu0 0
    %2120 = vmatprep.subr.bf16.mxu0 0
    %2121 = vmatpush1.bf16.msra.mxu0 0
    %2122 = vmatprep.subr.bf16.mxu0 0
    %2123 = vmatpush1.bf16.msra.mxu0 0
    %2124 = vmatprep.subr.bf16.mxu0 0
    %2125 = vmatpush1.bf16.msra.mxu0 0
    %2126 = vmatprep.subr.bf16.mxu0 0
    %2127 = vmatpush1.bf16.msra.mxu0 0
    %2128 = vmatprep.subr.bf16.mxu0 0
    %2129 = vmatpush1.bf16.msra.mxu0 0
    %2130 = vmatprep.subr.bf16.mxu0 0
    %2131 = vmatpush1.bf16.msra.mxu0 0
    %2132 = vmatprep.mubr.bf16.mxu0 0
    %2133 = vmatmul.mubr.bf16.gmra.mrb[0].mxu0 %v1907
    %v2134 = vpop.f32.mrb[0].mxu0
    %v2135 = vadd.f32 0.0, %v2134
    %v2136 = vpop.f32.mrb[0].mxu0
    %v2137 = vadd.f32 0.0, %v2136
    %v2138 = vpop.f32.mrb[0].mxu0
    %v2139 = vpop.f32.mrb[0].mxu0
    %2140 = vdwg.mxu0
    %2141 = vmatprep.subr.bf16.mxu0 %v2039
    %2142 = vmatpush1.bf16.msra.mxu0 %v2038
    %2143 = vmatprep.subr.bf16.mxu0 %v2043
    %2144 = vmatpush1.bf16.msra.mxu0 %v2042
    %2145 = vmatprep.subr.bf16.mxu0 %v2047
    %2146 = vmatpush1.bf16.msra.mxu0 %v2046
    %2147 = vmatprep.subr.bf16.mxu0 %v2051
    %2148 = vmatpush1.bf16.msra.mxu0 %v2050
    %2149 = vmatprep.subr.bf16.mxu0 %v2055
    %2150 = vmatpush1.bf16.msra.mxu0 %v2054
    %2151 = vmatprep.subr.bf16.mxu0 %v2059
    %2152 = vmatpush1.bf16.msra.mxu0 %v2058
    %2153 = vmatprep.subr.bf16.mxu0 %v2063
    %2154 = vmatpush1.bf16.msra.mxu0 %v2062
    %2155 = vmatprep.subr.bf16.mxu0 %v2067
    %2156 = vmatpush1.bf16.msra.mxu0 %v2066
    %2157 = vmatprep.subr.bf16.mxu0 0
    %2158 = vmatpush1.bf16.msra.mxu0 0
    %2159 = vmatprep.subr.bf16.mxu0 0
    %2160 = vmatpush1.bf16.msra.mxu0 0
    %2161 = vmatprep.subr.bf16.mxu0 0
    %2162 = vmatpush1.bf16.msra.mxu0 0
    %2163 = vmatprep.subr.bf16.mxu0 0
    %2164 = vmatpush1.bf16.msra.mxu0 0
    %2165 = vmatprep.subr.bf16.mxu0 0
    %2166 = vmatpush1.bf16.msra.mxu0 0
    %2167 = vmatprep.subr.bf16.mxu0 0
    %2168 = vmatpush1.bf16.msra.mxu0 0
    %2169 = vmatprep.subr.bf16.mxu0 0
    %2170 = vmatpush1.bf16.msra.mxu0 0
    %2171 = vmatprep.subr.bf16.mxu0 0
    %2172 = vmatpush1.bf16.msra.mxu0 0
    %2173 = vmatprep.mubr.bf16.mxu0 0
    %2174 = vmatmul.mubr.bf16.gmra.mrb[0].mxu0 %v1907
    %v2175 = vpop.f32.mrb[0].mxu0
    %v2176 = vadd.f32 0.0, %v2175
    %v2177 = vpop.f32.mrb[0].mxu0
    %v2178 = vadd.f32 0.0, %v2177
    %v2179 = vpop.f32.mrb[0].mxu0
    %v2180 = vpop.f32.mrb[0].mxu0
    %2181 = vdwg.mxu0
    %v2182 = vadd.f32 %v1903, %v2135
    %v2183 = vadd.f32 %v1904, %v2137
    %v2184 = vadd.f32 %v1905, %v2176
    %v2185 = vadd.f32 %v1906, %v2178
    %v2186 = vxor.u32 %v2182, 2147483648
    %v2187 = vxor.u32 %v2183, 2147483648
    %v2188 = vxor.u32 %v2184, 2147483648
    %v2189 = vmul.f32 %v2186, 1.442695
    %v2190 = vpow.pop %v2189
    %v2191 = vmul.f32 %v2187, 1.442695
    %v2192 = vpow.pop %v2191
    %v2193 = vmul.f32 %v2188, 1.442695
    %v2194 = vpow.pop %v2193
    %v2195 = vadd.f32 %v2190, 1.0
    %v2196 = vadd.f32 %v2192, 1.0
    %v2197 = vadd.f32 %v2194, 1.0
    %v2198 = vrcp.pop %v2195
    %v2199 = vmul.f32 1.0, %v2198
    %v2200 = vrcp.pop %v2196
    %v2201 = vmul.f32 1.0, %v2200
    %v2202 = vrcp.pop %v2197
    %v2203 = vmul.f32 1.0, %v2202
    %v2204 = vtanh.pop %v2185
    %v2205 = vmul.f32 %v2201, %v1897
    %v2206 = vmul.f32 %v2199, %v2204
    %v2207 = vadd.f32 %v2205, %v2206
    %v2208 = vtanh.pop %v2207
    %v2209 = vmul.f32 %v2203, %v2208
    %s2210 = scalar_lea.vmem [#allocation3], 40
    %2211 = vst [vmem:[%s2210] sm:$0xff] %v2209
    %s2212 = scalar_lea.vmem [#allocation2], 192
    %v2213 = vld [vmem:[%s2212] sm:$0xff]
    %v2214 = vld [vmem:[%s2212 + $0x8] sm:$0xff]
    %v2215 = vld [vmem:[%s2212 + $0x10] sm:$0xff]
    %v2216 = vld [vmem:[%s2212 + $0x18] sm:$0xff]
    %v2217 = vpack.c.bf16 %v2209, %v2209
    %v2218 = vld [vmem:[#allocation7] sm:$0xff]
    %v2219 = vld [vmem:[#allocation7 + $0x8] sm:$0xff]
    %v2220 = vld [vmem:[#allocation7 + $0x10] sm:$0xff]
    %v2221 = vld [vmem:[#allocation7 + $0x18] sm:$0xff]
    %v2222 = vld [vmem:[#allocation7 + $0x20] sm:$0xff]
    %v2223 = vld [vmem:[#allocation7 + $0x28] sm:$0xff]
    %v2224 = vld [vmem:[#allocation7 + $0x30] sm:$0xff]
    %v2225 = vld [vmem:[#allocation7 + $0x38] sm:$0xff]
    %v2226 = vld [vmem:[#allocation7 + $0x40] sm:$0xff]
    %v2227 = vld [vmem:[#allocation7 + $0x48] sm:$0xff]
    %v2228 = vld [vmem:[#allocation7 + $0x50] sm:$0xff]
    %v2229 = vld [vmem:[#allocation7 + $0x58] sm:$0xff]
    %v2230 = vld [vmem:[#allocation7 + $0x60] sm:$0xff]
    %v2231 = vld [vmem:[#allocation7 + $0x68] sm:$0xff]
    %v2232 = vld [vmem:[#allocation7 + $0x70] sm:$0xff]
    %v2233 = vld [vmem:[#allocation7 + $0x78] sm:$0xff]
    %v2234 = vld [vmem:[#allocation7 + $0x80] sm:$0xff]
    %v2235 = vld [vmem:[#allocation7 + $0x88] sm:$0xff]
    %v2236 = vld [vmem:[#allocation7 + $0x90] sm:$0xff]
    %v2237 = vld [vmem:[#allocation7 + $0x98] sm:$0xff]
    %v2238 = vld [vmem:[#allocation7 + $0xa0] sm:$0xff]
    %v2239 = vld [vmem:[#allocation7 + $0xa8] sm:$0xff]
    %v2240 = vld [vmem:[#allocation7 + $0xb0] sm:$0xff]
    %v2241 = vld [vmem:[#allocation7 + $0xb8] sm:$0xff]
    %v2242 = vld [vmem:[#allocation7 + $0xc0] sm:$0xff]
    %v2243 = vld [vmem:[#allocation7 + $0xc8] sm:$0xff]
    %v2244 = vld [vmem:[#allocation7 + $0xd0] sm:$0xff]
    %v2245 = vld [vmem:[#allocation7 + $0xd8] sm:$0xff]
    %v2246 = vld [vmem:[#allocation7 + $0xe0] sm:$0xff]
    %v2247 = vld [vmem:[#allocation7 + $0xe8] sm:$0xff]
    %v2248 = vld [vmem:[#allocation7 + $0xf0] sm:$0xff]
    %v2249 = vld [vmem:[#allocation7 + $0xf8] sm:$0xff]
    %v2282 = vunpack.c.l.b16 %v2218
    %v2283 = vunpack.c.h.b16 %v2218
    %v2284 = vunpack.c.l.b16 %v2219
    %v2285 = vunpack.c.h.b16 %v2219
    %v2286 = vunpack.c.l.b16 %v2220
    %v2287 = vunpack.c.h.b16 %v2220
    %v2288 = vunpack.c.l.b16 %v2221
    %v2289 = vunpack.c.h.b16 %v2221
    %v2290 = vunpack.c.l.b16 %v2222
    %v2291 = vunpack.c.h.b16 %v2222
    %v2292 = vunpack.c.l.b16 %v2223
    %v2293 = vunpack.c.h.b16 %v2223
    %v2294 = vunpack.c.l.b16 %v2224
    %v2295 = vunpack.c.h.b16 %v2224
    %v2296 = vunpack.c.l.b16 %v2225
    %v2297 = vunpack.c.h.b16 %v2225
    %v2298 = vunpack.c.l.b16 %v2226
    %v2299 = vunpack.c.h.b16 %v2226
    %v2300 = vunpack.c.l.b16 %v2227
    %v2301 = vunpack.c.h.b16 %v2227
    %v2302 = vunpack.c.l.b16 %v2228
    %v2303 = vunpack.c.h.b16 %v2228
    %v2304 = vunpack.c.l.b16 %v2229
    %v2305 = vunpack.c.h.b16 %v2229
    %v2306 = vunpack.c.l.b16 %v2230
    %v2307 = vunpack.c.h.b16 %v2230
    %v2308 = vunpack.c.l.b16 %v2231
    %v2309 = vunpack.c.h.b16 %v2231
    %v2310 = vunpack.c.l.b16 %v2232
    %v2311 = vunpack.c.h.b16 %v2232
    %v2312 = vunpack.c.l.b16 %v2233
    %v2313 = vunpack.c.h.b16 %v2233
    %v2314 = vunpack.c.l.b16 %v2234
    %v2315 = vunpack.c.h.b16 %v2234
    %v2316 = vunpack.c.l.b16 %v2235
    %v2317 = vunpack.c.h.b16 %v2235
    %v2318 = vunpack.c.l.b16 %v2236
    %v2319 = vunpack.c.h.b16 %v2236
    %v2320 = vunpack.c.l.b16 %v2237
    %v2321 = vunpack.c.h.b16 %v2237
    %v2322 = vunpack.c.l.b16 %v2238
    %v2323 = vunpack.c.h.b16 %v2238
    %v2324 = vunpack.c.l.b16 %v2239
    %v2325 = vunpack.c.h.b16 %v2239
    %v2326 = vunpack.c.l.b16 %v2240
    %v2327 = vunpack.c.h.b16 %v2240
    %v2328 = vunpack.c.l.b16 %v2241
    %v2329 = vunpack.c.h.b16 %v2241
    %v2330 = vunpack.c.l.b16 %v2242
    %v2331 = vunpack.c.h.b16 %v2242
    %v2332 = vunpack.c.l.b16 %v2243
    %v2333 = vunpack.c.h.b16 %v2243
    %v2334 = vunpack.c.l.b16 %v2244
    %v2335 = vunpack.c.h.b16 %v2244
    %v2336 = vunpack.c.l.b16 %v2245
    %v2337 = vunpack.c.h.b16 %v2245
    %v2338 = vunpack.c.l.b16 %v2246
    %v2339 = vunpack.c.h.b16 %v2246
    %v2340 = vunpack.c.l.b16 %v2247
    %v2341 = vunpack.c.h.b16 %v2247
    %v2342 = vunpack.c.l.b16 %v2248
    %v2343 = vunpack.c.h.b16 %v2248
    %v2344 = vunpack.c.l.b16 %v2249
    %v2345 = vunpack.c.h.b16 %v2249
    %v2346 = vpack.c.b16 %v2286, %v2282
    %v2347 = vpack.c.b16 %v2287, %v2283
    %v2348 = vpack.c.b16 %v2288, %v2284
    %v2349 = vpack.c.b16 %v2289, %v2285
    %v2350 = vpack.c.b16 %v2294, %v2290
    %v2351 = vpack.c.b16 %v2295, %v2291
    %v2352 = vpack.c.b16 %v2296, %v2292
    %v2353 = vpack.c.b16 %v2297, %v2293
    %v2354 = vpack.c.b16 %v2302, %v2298
    %v2355 = vpack.c.b16 %v2303, %v2299
    %v2356 = vpack.c.b16 %v2304, %v2300
    %v2357 = vpack.c.b16 %v2305, %v2301
    %v2358 = vpack.c.b16 %v2310, %v2306
    %v2359 = vpack.c.b16 %v2311, %v2307
    %v2360 = vpack.c.b16 %v2312, %v2308
    %v2361 = vpack.c.b16 %v2313, %v2309
    %v2362 = vpack.c.b16 %v2318, %v2314
    %v2363 = vpack.c.b16 %v2319, %v2315
    %v2364 = vpack.c.b16 %v2320, %v2316
    %v2365 = vpack.c.b16 %v2321, %v2317
    %v2366 = vpack.c.b16 %v2326, %v2322
    %v2367 = vpack.c.b16 %v2327, %v2323
    %v2368 = vpack.c.b16 %v2328, %v2324
    %v2369 = vpack.c.b16 %v2329, %v2325
    %v2370 = vpack.c.b16 %v2334, %v2330
    %v2371 = vpack.c.b16 %v2335, %v2331
    %v2372 = vpack.c.b16 %v2336, %v2332
    %v2373 = vpack.c.b16 %v2337, %v2333
    %v2374 = vpack.c.b16 %v2342, %v2338
    %v2375 = vpack.c.b16 %v2343, %v2339
    %v2376 = vpack.c.b16 %v2344, %v2340
    %v2377 = vpack.c.b16 %v2345, %v2341
    %2410 = vmatprep.subr.bf16.mxu0 %v2347
    %2411 = vmatpush1.bf16.msra.mxu0 %v2346
    %2412 = vmatprep.subr.bf16.mxu0 %v2351
    %2413 = vmatpush1.bf16.msra.mxu0 %v2350
    %2414 = vmatprep.subr.bf16.mxu0 %v2355
    %2415 = vmatpush1.bf16.msra.mxu0 %v2354
    %2416 = vmatprep.subr.bf16.mxu0 %v2359
    %2417 = vmatpush1.bf16.msra.mxu0 %v2358
    %2418 = vmatprep.subr.bf16.mxu0 %v2363
    %2419 = vmatpush1.bf16.msra.mxu0 %v2362
    %2420 = vmatprep.subr.bf16.mxu0 %v2367
    %2421 = vmatpush1.bf16.msra.mxu0 %v2366
    %2422 = vmatprep.subr.bf16.mxu0 %v2371
    %2423 = vmatpush1.bf16.msra.mxu0 %v2370
    %2424 = vmatprep.subr.bf16.mxu0 %v2375
    %2425 = vmatpush1.bf16.msra.mxu0 %v2374
    %2426 = vmatprep.subr.bf16.mxu0 0
    %2427 = vmatpush1.bf16.msra.mxu0 0
    %2428 = vmatprep.subr.bf16.mxu0 0
    %2429 = vmatpush1.bf16.msra.mxu0 0
    %2430 = vmatprep.subr.bf16.mxu0 0
    %2431 = vmatpush1.bf16.msra.mxu0 0
    %2432 = vmatprep.subr.bf16.mxu0 0
    %2433 = vmatpush1.bf16.msra.mxu0 0
    %2434 = vmatprep.subr.bf16.mxu0 0
    %2435 = vmatpush1.bf16.msra.mxu0 0
    %2436 = vmatprep.subr.bf16.mxu0 0
    %2437 = vmatpush1.bf16.msra.mxu0 0
    %2438 = vmatprep.subr.bf16.mxu0 0
    %2439 = vmatpush1.bf16.msra.mxu0 0
    %2440 = vmatprep.subr.bf16.mxu0 0
    %2441 = vmatpush1.bf16.msra.mxu0 0
    %2442 = vmatprep.mubr.bf16.mxu0 0
    %2443 = vmatmul.mubr.bf16.gmra.mrb[0].mxu0 %v2217
    %v2444 = vpop.f32.mrb[0].mxu0
    %v2445 = vadd.f32 0.0, %v2444
    %v2446 = vpop.f32.mrb[0].mxu0
    %v2447 = vadd.f32 0.0, %v2446
    %v2448 = vpop.f32.mrb[0].mxu0
    %v2449 = vpop.f32.mrb[0].mxu0
    %2450 = vdwg.mxu0
    %2451 = vmatprep.subr.bf16.mxu0 %v2349
    %2452 = vmatpush1.bf16.msra.mxu0 %v2348
    %2453 = vmatprep.subr.bf16.mxu0 %v2353
    %2454 = vmatpush1.bf16.msra.mxu0 %v2352
    %2455 = vmatprep.subr.bf16.mxu0 %v2357
    %2456 = vmatpush1.bf16.msra.mxu0 %v2356
    %2457 = vmatprep.subr.bf16.mxu0 %v2361
    %2458 = vmatpush1.bf16.msra.mxu0 %v2360
    %2459 = vmatprep.subr.bf16.mxu0 %v2365
    %2460 = vmatpush1.bf16.msra.mxu0 %v2364
    %2461 = vmatprep.subr.bf16.mxu0 %v2369
    %2462 = vmatpush1.bf16.msra.mxu0 %v2368
    %2463 = vmatprep.subr.bf16.mxu0 %v2373
    %2464 = vmatpush1.bf16.msra.mxu0 %v2372
    %2465 = vmatprep.subr.bf16.mxu0 %v2377
    %2466 = vmatpush1.bf16.msra.mxu0 %v2376
    %2467 = vmatprep.subr.bf16.mxu0 0
    %2468 = vmatpush1.bf16.msra.mxu0 0
    %2469 = vmatprep.subr.bf16.mxu0 0
    %2470 = vmatpush1.bf16.msra.mxu0 0
    %2471 = vmatprep.subr.bf16.mxu0 0
    %2472 = vmatpush1.bf16.msra.mxu0 0
    %2473 = vmatprep.subr.bf16.mxu0 0
    %2474 = vmatpush1.bf16.msra.mxu0 0
    %2475 = vmatprep.subr.bf16.mxu0 0
    %2476 = vmatpush1.bf16.msra.mxu0 0
    %2477 = vmatprep.subr.bf16.mxu0 0
    %2478 = vmatpush1.bf16.msra.mxu0 0
    %2479 = vmatprep.subr.bf16.mxu0 0
    %2480 = vmatpush1.bf16.msra.mxu0 0
    %2481 = vmatprep.subr.bf16.mxu0 0
    %2482 = vmatpush1.bf16.msra.mxu0 0
    %2483 = vmatprep.mubr.bf16.mxu0 0
    %2484 = vmatmul.mubr.bf16.gmra.mrb[0].mxu0 %v2217
    %v2485 = vpop.f32.mrb[0].mxu0
    %v2486 = vadd.f32 0.0, %v2485
    %v2487 = vpop.f32.mrb[0].mxu0
    %v2488 = vadd.f32 0.0, %v2487
    %v2489 = vpop.f32.mrb[0].mxu0
    %v2490 = vpop.f32.mrb[0].mxu0
    %2491 = vdwg.mxu0
    %v2492 = vadd.f32 %v2213, %v2445
    %v2493 = vadd.f32 %v2214, %v2447
    %v2494 = vadd.f32 %v2215, %v2486
    %v2495 = vadd.f32 %v2216, %v2488
    %v2496 = vxor.u32 %v2492, 2147483648
    %v2497 = vxor.u32 %v2493, 2147483648
    %v2498 = vxor.u32 %v2494, 2147483648
    %v2499 = vmul.f32 %v2496, 1.442695
    %v2500 = vpow.pop %v2499
    %v2501 = vmul.f32 %v2497, 1.442695
    %v2502 = vpow.pop %v2501
    %v2503 = vmul.f32 %v2498, 1.442695
    %v2504 = vpow.pop %v2503
    %v2505 = vadd.f32 %v2500, 1.0
    %v2506 = vadd.f32 %v2502, 1.0
    %v2507 = vadd.f32 %v2504, 1.0
    %v2508 = vrcp.pop %v2505
    %v2509 = vmul.f32 1.0, %v2508
    %v2510 = vrcp.pop %v2506
    %v2511 = vmul.f32 1.0, %v2510
    %v2512 = vrcp.pop %v2507
    %v2513 = vmul.f32 1.0, %v2512
    %v2514 = vtanh.pop %v2495
    %v2515 = vmul.f32 %v2511, %v2207
    %v2516 = vmul.f32 %v2509, %v2514
    %v2517 = vadd.f32 %v2515, %v2516
    %v2518 = vtanh.pop %v2517
    %v2519 = vmul.f32 %v2513, %v2518
    %s2520 = scalar_lea.vmem [#allocation3], 48
    %2521 = vst [vmem:[%s2520] sm:$0xff] %v2519
    %s2522 = scalar_lea.vmem [#allocation2], 224
    %v2523 = vld [vmem:[%s2522] sm:$0xff]
    %v2524 = vld [vmem:[%s2522 + $0x8] sm:$0xff]
    %v2525 = vld [vmem:[%s2522 + $0x10] sm:$0xff]
    %v2526 = vld [vmem:[%s2522 + $0x18] sm:$0xff]
    %v2527 = vpack.c.bf16 %v2519, %v2519
    %v2528 = vld [vmem:[#allocation7] sm:$0xff]
    %v2529 = vld [vmem:[#allocation7 + $0x8] sm:$0xff]
    %v2530 = vld [vmem:[#allocation7 + $0x10] sm:$0xff]
    %v2531 = vld [vmem:[#allocation7 + $0x18] sm:$0xff]
    %v2532 = vld [vmem:[#allocation7 + $0x20] sm:$0xff]
    %v2533 = vld [vmem:[#allocation7 + $0x28] sm:$0xff]
    %v2534 = vld [vmem:[#allocation7 + $0x30] sm:$0xff]
    %v2535 = vld [vmem:[#allocation7 + $0x38] sm:$0xff]
    %v2536 = vld [vmem:[#allocation7 + $0x40] sm:$0xff]
    %v2537 = vld [vmem:[#allocation7 + $0x48] sm:$0xff]
    %v2538 = vld [vmem:[#allocation7 + $0x50] sm:$0xff]
    %v2539 = vld [vmem:[#allocation7 + $0x58] sm:$0xff]
    %v2540 = vld [vmem:[#allocation7 + $0x60] sm:$0xff]
    %v2541 = vld [vmem:[#allocation7 + $0x68] sm:$0xff]
    %v2542 = vld [vmem:[#allocation7 + $0x70] sm:$0xff]
    %v2543 = vld [vmem:[#allocation7 + $0x78] sm:$0xff]
    %v2544 = vld [vmem:[#allocation7 + $0x80] sm:$0xff]
    %v2545 = vld [vmem:[#allocation7 + $0x88] sm:$0xff]
    %v2546 = vld [vmem:[#allocation7 + $0x90] sm:$0xff]
    %v2547 = vld [vmem:[#allocation7 + $0x98] sm:$0xff]
    %v2548 = vld [vmem:[#allocation7 + $0xa0] sm:$0xff]
    %v2549 = vld [vmem:[#allocation7 + $0xa8] sm:$0xff]
    %v2550 = vld [vmem:[#allocation7 + $0xb0] sm:$0xff]
    %v2551 = vld [vmem:[#allocation7 + $0xb8] sm:$0xff]
    %v2552 = vld [vmem:[#allocation7 + $0xc0] sm:$0xff]
    %v2553 = vld [vmem:[#allocation7 + $0xc8] sm:$0xff]
    %v2554 = vld [vmem:[#allocation7 + $0xd0] sm:$0xff]
    %v2555 = vld [vmem:[#allocation7 + $0xd8] sm:$0xff]
    %v2556 = vld [vmem:[#allocation7 + $0xe0] sm:$0xff]
    %v2557 = vld [vmem:[#allocation7 + $0xe8] sm:$0xff]
    %v2558 = vld [vmem:[#allocation7 + $0xf0] sm:$0xff]
    %v2559 = vld [vmem:[#allocation7 + $0xf8] sm:$0xff]
    %v2592 = vunpack.c.l.b16 %v2528
    %v2593 = vunpack.c.h.b16 %v2528
    %v2594 = vunpack.c.l.b16 %v2529
    %v2595 = vunpack.c.h.b16 %v2529
    %v2596 = vunpack.c.l.b16 %v2530
    %v2597 = vunpack.c.h.b16 %v2530
    %v2598 = vunpack.c.l.b16 %v2531
    %v2599 = vunpack.c.h.b16 %v2531
    %v2600 = vunpack.c.l.b16 %v2532
    %v2601 = vunpack.c.h.b16 %v2532
    %v2602 = vunpack.c.l.b16 %v2533
    %v2603 = vunpack.c.h.b16 %v2533
    %v2604 = vunpack.c.l.b16 %v2534
    %v2605 = vunpack.c.h.b16 %v2534
    %v2606 = vunpack.c.l.b16 %v2535
    %v2607 = vunpack.c.h.b16 %v2535
    %v2608 = vunpack.c.l.b16 %v2536
    %v2609 = vunpack.c.h.b16 %v2536
    %v2610 = vunpack.c.l.b16 %v2537
    %v2611 = vunpack.c.h.b16 %v2537
    %v2612 = vunpack.c.l.b16 %v2538
    %v2613 = vunpack.c.h.b16 %v2538
    %v2614 = vunpack.c.l.b16 %v2539
    %v2615 = vunpack.c.h.b16 %v2539
    %v2616 = vunpack.c.l.b16 %v2540
    %v2617 = vunpack.c.h.b16 %v2540
    %v2618 = vunpack.c.l.b16 %v2541
    %v2619 = vunpack.c.h.b16 %v2541
    %v2620 = vunpack.c.l.b16 %v2542
    %v2621 = vunpack.c.h.b16 %v2542
    %v2622 = vunpack.c.l.b16 %v2543
    %v2623 = vunpack.c.h.b16 %v2543
    %v2624 = vunpack.c.l.b16 %v2544
    %v2625 = vunpack.c.h.b16 %v2544
    %v2626 = vunpack.c.l.b16 %v2545
    %v2627 = vunpack.c.h.b16 %v2545
    %v2628 = vunpack.c.l.b16 %v2546
    %v2629 = vunpack.c.h.b16 %v2546
    %v2630 = vunpack.c.l.b16 %v2547
    %v2631 = vunpack.c.h.b16 %v2547
    %v2632 = vunpack.c.l.b16 %v2548
    %v2633 = vunpack.c.h.b16 %v2548
    %v2634 = vunpack.c.l.b16 %v2549
    %v2635 = vunpack.c.h.b16 %v2549
    %v2636 = vunpack.c.l.b16 %v2550
    %v2637 = vunpack.c.h.b16 %v2550
    %v2638 = vunpack.c.l.b16 %v2551
    %v2639 = vunpack.c.h.b16 %v2551
    %v2640 = vunpack.c.l.b16 %v2552
    %v2641 = vunpack.c.h.b16 %v2552
    %v2642 = vunpack.c.l.b16 %v2553
    %v2643 = vunpack.c.h.b16 %v2553
    %v2644 = vunpack.c.l.b16 %v2554
    %v2645 = vunpack.c.h.b16 %v2554
    %v2646 = vunpack.c.l.b16 %v2555
    %v2647 = vunpack.c.h.b16 %v2555
    %v2648 = vunpack.c.l.b16 %v2556
    %v2649 = vunpack.c.h.b16 %v2556
    %v2650 = vunpack.c.l.b16 %v2557
    %v2651 = vunpack.c.h.b16 %v2557
    %v2652 = vunpack.c.l.b16 %v2558
    %v2653 = vunpack.c.h.b16 %v2558
    %v2654 = vunpack.c.l.b16 %v2559
    %v2655 = vunpack.c.h.b16 %v2559
    %v2656 = vpack.c.b16 %v2596, %v2592
    %v2657 = vpack.c.b16 %v2597, %v2593
    %v2658 = vpack.c.b16 %v2598, %v2594
    %v2659 = vpack.c.b16 %v2599, %v2595
    %v2660 = vpack.c.b16 %v2604, %v2600
    %v2661 = vpack.c.b16 %v2605, %v2601
    %v2662 = vpack.c.b16 %v2606, %v2602
    %v2663 = vpack.c.b16 %v2607, %v2603
    %v2664 = vpack.c.b16 %v2612, %v2608
    %v2665 = vpack.c.b16 %v2613, %v2609
    %v2666 = vpack.c.b16 %v2614, %v2610
    %v2667 = vpack.c.b16 %v2615, %v2611
    %v2668 = vpack.c.b16 %v2620, %v2616
    %v2669 = vpack.c.b16 %v2621, %v2617
    %v2670 = vpack.c.b16 %v2622, %v2618
    %v2671 = vpack.c.b16 %v2623, %v2619
    %v2672 = vpack.c.b16 %v2628, %v2624
    %v2673 = vpack.c.b16 %v2629, %v2625
    %v2674 = vpack.c.b16 %v2630, %v2626
    %v2675 = vpack.c.b16 %v2631, %v2627
    %v2676 = vpack.c.b16 %v2636, %v2632
    %v2677 = vpack.c.b16 %v2637, %v2633
    %v2678 = vpack.c.b16 %v2638, %v2634
    %v2679 = vpack.c.b16 %v2639, %v2635
    %v2680 = vpack.c.b16 %v2644, %v2640
    %v2681 = vpack.c.b16 %v2645, %v2641
    %v2682 = vpack.c.b16 %v2646, %v2642
    %v2683 = vpack.c.b16 %v2647, %v2643
    %v2684 = vpack.c.b16 %v2652, %v2648
    %v2685 = vpack.c.b16 %v2653, %v2649
    %v2686 = vpack.c.b16 %v2654, %v2650
    %v2687 = vpack.c.b16 %v2655, %v2651
    %2720 = vmatprep.subr.bf16.mxu0 %v2657
    %2721 = vmatpush1.bf16.msra.mxu0 %v2656
    %2722 = vmatprep.subr.bf16.mxu0 %v2661
    %2723 = vmatpush1.bf16.msra.mxu0 %v2660
    %2724 = vmatprep.subr.bf16.mxu0 %v2665
    %2725 = vmatpush1.bf16.msra.mxu0 %v2664
    %2726 = vmatprep.subr.bf16.mxu0 %v2669
    %2727 = vmatpush1.bf16.msra.mxu0 %v2668
    %2728 = vmatprep.subr.bf16.mxu0 %v2673
    %2729 = vmatpush1.bf16.msra.mxu0 %v2672
    %2730 = vmatprep.subr.bf16.mxu0 %v2677
    %2731 = vmatpush1.bf16.msra.mxu0 %v2676
    %2732 = vmatprep.subr.bf16.mxu0 %v2681
    %2733 = vmatpush1.bf16.msra.mxu0 %v2680
    %2734 = vmatprep.subr.bf16.mxu0 %v2685
    %2735 = vmatpush1.bf16.msra.mxu0 %v2684
    %2736 = vmatprep.subr.bf16.mxu0 0
    %2737 = vmatpush1.bf16.msra.mxu0 0
    %2738 = vmatprep.subr.bf16.mxu0 0
    %2739 = vmatpush1.bf16.msra.mxu0 0
    %2740 = vmatprep.subr.bf16.mxu0 0
    %2741 = vmatpush1.bf16.msra.mxu0 0
    %2742 = vmatprep.subr.bf16.mxu0 0
    %2743 = vmatpush1.bf16.msra.mxu0 0
    %2744 = vmatprep.subr.bf16.mxu0 0
    %2745 = vmatpush1.bf16.msra.mxu0 0
    %2746 = vmatprep.subr.bf16.mxu0 0
    %2747 = vmatpush1.bf16.msra.mxu0 0
    %2748 = vmatprep.subr.bf16.mxu0 0
    %2749 = vmatpush1.bf16.msra.mxu0 0
    %2750 = vmatprep.subr.bf16.mxu0 0
    %2751 = vmatpush1.bf16.msra.mxu0 0
    %2752 = vmatprep.mubr.bf16.mxu0 0
    %2753 = vmatmul.mubr.bf16.gmra.mrb[0].mxu0 %v2527
    %v2754 = vpop.f32.mrb[0].mxu0
    %v2755 = vadd.f32 0.0, %v2754
    %v2756 = vpop.f32.mrb[0].mxu0
    %v2757 = vadd.f32 0.0, %v2756
    %v2758 = vpop.f32.mrb[0].mxu0
    %v2759 = vpop.f32.mrb[0].mxu0
    %2760 = vdwg.mxu0
    %2761 = vmatprep.subr.bf16.mxu0 %v2659
    %2762 = vmatpush1.bf16.msra.mxu0 %v2658
    %2763 = vmatprep.subr.bf16.mxu0 %v2663
    %2764 = vmatpush1.bf16.msra.mxu0 %v2662
    %2765 = vmatprep.subr.bf16.mxu0 %v2667
    %2766 = vmatpush1.bf16.msra.mxu0 %v2666
    %2767 = vmatprep.subr.bf16.mxu0 %v2671
    %2768 = vmatpush1.bf16.msra.mxu0 %v2670
    %2769 = vmatprep.subr.bf16.mxu0 %v2675
    %2770 = vmatpush1.bf16.msra.mxu0 %v2674
    %2771 = vmatprep.subr.bf16.mxu0 %v2679
    %2772 = vmatpush1.bf16.msra.mxu0 %v2678
    %2773 = vmatprep.subr.bf16.mxu0 %v2683
    %2774 = vmatpush1.bf16.msra.mxu0 %v2682
    %2775 = vmatprep.subr.bf16.mxu0 %v2687
    %2776 = vmatpush1.bf16.msra.mxu0 %v2686
    %2777 = vmatprep.subr.bf16.mxu0 0
    %2778 = vmatpush1.bf16.msra.mxu0 0
    %2779 = vmatprep.subr.bf16.mxu0 0
    %2780 = vmatpush1.bf16.msra.mxu0 0
    %2781 = vmatprep.subr.bf16.mxu0 0
    %2782 = vmatpush1.bf16.msra.mxu0 0
    %2783 = vmatprep.subr.bf16.mxu0 0
    %2784 = vmatpush1.bf16.msra.mxu0 0
    %2785 = vmatprep.subr.bf16.mxu0 0
    %2786 = vmatpush1.bf16.msra.mxu0 0
    %2787 = vmatprep.subr.bf16.mxu0 0
    %2788 = vmatpush1.bf16.msra.mxu0 0
    %2789 = vmatprep.subr.bf16.mxu0 0
    %2790 = vmatpush1.bf16.msra.mxu0 0
    %2791 = vmatprep.subr.bf16.mxu0 0
    %2792 = vmatpush1.bf16.msra.mxu0 0
    %2793 = vmatprep.mubr.bf16.mxu0 0
    %2794 = vmatmul.mubr.bf16.gmra.mrb[0].mxu0 %v2527
    %v2795 = vpop.f32.mrb[0].mxu0
    %v2796 = vadd.f32 0.0, %v2795
    %v2797 = vpop.f32.mrb[0].mxu0
    %v2798 = vadd.f32 0.0, %v2797
    %v2799 = vpop.f32.mrb[0].mxu0
    %v2800 = vpop.f32.mrb[0].mxu0
    %2801 = vdwg.mxu0
    %v2802 = vadd.f32 %v2523, %v2755
    %v2803 = vadd.f32 %v2524, %v2757
    %v2804 = vadd.f32 %v2525, %v2796
    %v2805 = vadd.f32 %v2526, %v2798
    %v2806 = vxor.u32 %v2802, 2147483648
    %v2807 = vxor.u32 %v2803, 2147483648
    %v2808 = vxor.u32 %v2804, 2147483648
    %v2809 = vmul.f32 %v2806, 1.442695
    %v2810 = vpow.pop %v2809
    %v2811 = vmul.f32 %v2807, 1.442695
    %v2812 = vpow.pop %v2811
    %v2813 = vmul.f32 %v2808, 1.442695
    %v2814 = vpow.pop %v2813
    %v2815 = vadd.f32 %v2810, 1.0
    %v2816 = vadd.f32 %v2812, 1.0
    %v2817 = vadd.f32 %v2814, 1.0
    %v2818 = vrcp.pop %v2815
    %v2819 = vmul.f32 1.0, %v2818
    %v2820 = vrcp.pop %v2816
    %v2821 = vmul.f32 1.0, %v2820
    %v2822 = vrcp.pop %v2817
    %v2823 = vmul.f32 1.0, %v2822
    %v2824 = vtanh.pop %v2805
    %v2825 = vmul.f32 %v2821, %v2517
    %v2826 = vmul.f32 %v2819, %v2824
    %v2827 = vadd.f32 %v2825, %v2826
    %v2828 = vtanh.pop %v2827
    %v2829 = vmul.f32 %v2823, %v2828
    %s2830 = scalar_lea.vmem [#allocation3], 56
    %2831 = vst [vmem:[%s2830] sm:$0xff] %v2829
    %v2832 = vld [vmem:[#allocation3] sm:$0xff]
    %v2833 = vld [vmem:[#allocation3 + $0x8] sm:$0xff]
    %v2834 = vld [vmem:[#allocation3 + $0x10] sm:$0xff]
    %v2835 = vld [vmem:[#allocation3 + $0x18] sm:$0xff]
    %v2836 = vld [vmem:[#allocation3 + $0x20] sm:$0xff]
    %v2837 = vld [vmem:[#allocation3 + $0x28] sm:$0xff]
    %v2838 = vld [vmem:[#allocation3 + $0x30] sm:$0xff]
    %v2839 = vld [vmem:[#allocation3 + $0x38] sm:$0xff]
    %v2840 = vmax.f32 %v2832, 0.0
    %v2841 = vmax.f32 %v2833, 0.0
    %v2842 = vmax.f32 %v2834, 0.0
    %v2843 = vmax.f32 %v2835, 0.0
    %v2844 = vmax.f32 %v2836, 0.0
    %v2845 = vmax.f32 %v2837, 0.0
    %v2846 = vmax.f32 %v2838, 0.0
    %v2847 = vmax.f32 %v2839, 0.0
    %v2848 = vpack.c.bf16 %v2841, %v2840
    %v2849 = vpack.c.bf16 %v2843, %v2842
    %v2850 = vpack.c.bf16 %v2845, %v2844
    %v2851 = vpack.c.bf16 %v2847, %v2846
    %v2852 = vld [vmem:[#allocation9] sm:$0xf]
    %v2853 = vld [vmem:[#allocation9 + $0x4] sm:$0xf]
    %v2854 = vld [vmem:[#allocation9 + $0x8] sm:$0xf]
    %v2855 = vld [vmem:[#allocation9 + $0xc] sm:$0xf]
    %v2856 = vld [vmem:[#allocation9 + $0x10] sm:$0xf]
    %v2857 = vld [vmem:[#allocation9 + $0x14] sm:$0xf]
    %v2858 = vld [vmem:[#allocation9 + $0x18] sm:$0xf]
    %v2859 = vld [vmem:[#allocation9 + $0x1c] sm:$0xf]
    %v2860 = vld [vmem:[#allocation9 + $0x20] sm:$0xf]
    %v2861 = vld [vmem:[#allocation9 + $0x24] sm:$0xf]
    %v2862 = vld [vmem:[#allocation9 + $0x28] sm:$0xf]
    %v2863 = vld [vmem:[#allocation9 + $0x2c] sm:$0xf]
    %v2864 = vld [vmem:[#allocation9 + $0x30] sm:$0xf]
    %v2865 = vld [vmem:[#allocation9 + $0x34] sm:$0xf]
    %v2866 = vld [vmem:[#allocation9 + $0x38] sm:$0xf]
    %v2867 = vld [vmem:[#allocation9 + $0x3c] sm:$0xf]
    %v2868 = vld [vmem:[%s5] sm:$0x1]
    %v2870 = vlaneseq
    %v2871 = vshrl.u32 %v2870, 7
    %v2872 = vsub.s32 0, %v2871
    %v2873 = vrot.slane %v2868, %v2872
    %v2891 = vunpack.c.l.b16 %v2852
    %v2892 = vunpack.c.l.b16 %v2853
    %v2893 = vunpack.c.l.b16 %v2854
    %v2894 = vunpack.c.l.b16 %v2855
    %v2895 = vunpack.c.l.b16 %v2856
    %v2896 = vunpack.c.l.b16 %v2857
    %v2897 = vunpack.c.l.b16 %v2858
    %v2898 = vunpack.c.l.b16 %v2859
    %v2899 = vunpack.c.l.b16 %v2860
    %v2900 = vunpack.c.l.b16 %v2861
    %v2901 = vunpack.c.l.b16 %v2862
    %v2902 = vunpack.c.l.b16 %v2863
    %v2903 = vunpack.c.l.b16 %v2864
    %v2904 = vunpack.c.l.b16 %v2865
    %v2905 = vunpack.c.l.b16 %v2866
    %v2906 = vunpack.c.l.b16 %v2867
    %v2907 = vpack.c.b16 %v2892, %v2891
    %v2908 = vpack.c.b16 %v2894, %v2893
    %v2909 = vpack.c.b16 %v2896, %v2895
    %v2910 = vpack.c.b16 %v2898, %v2897
    %v2911 = vpack.c.b16 %v2900, %v2899
    %v2912 = vpack.c.b16 %v2902, %v2901
    %v2913 = vpack.c.b16 %v2904, %v2903
    %v2914 = vpack.c.b16 %v2906, %v2905
    %2923 = vmatprep.subr.bf16.mxu0 0
    %2924 = vmatpush1.bf16.msra.mxu0 %v2907
    %2925 = vmatprep.subr.bf16.mxu0 0
    %2926 = vmatpush1.bf16.msra.mxu0 %v2908
    %2927 = vmatprep.subr.bf16.mxu0 0
    %2928 = vmatpush1.bf16.msra.mxu0 %v2909
    %2929 = vmatprep.subr.bf16.mxu0 0
    %2930 = vmatpush1.bf16.msra.mxu0 %v2910
    %2931 = vmatprep.subr.bf16.mxu0 0
    %2932 = vmatpush1.bf16.msra.mxu0 %v2911
    %2933 = vmatprep.subr.bf16.mxu0 0
    %2934 = vmatpush1.bf16.msra.mxu0 %v2912
    %2935 = vmatprep.subr.bf16.mxu0 0
    %2936 = vmatpush1.bf16.msra.mxu0 %v2913
    %2937 = vmatprep.subr.bf16.mxu0 0
    %2938 = vmatpush1.bf16.msra.mxu0 %v2914
    %2939 = vmatprep.subr.bf16.mxu0 0
    %2940 = vmatpush1.bf16.msra.mxu0 0
    %2941 = vmatprep.subr.bf16.mxu0 0
    %2942 = vmatpush1.bf16.msra.mxu0 0
    %2943 = vmatprep.subr.bf16.mxu0 0
    %2944 = vmatpush1.bf16.msra.mxu0 0
    %2945 = vmatprep.subr.bf16.mxu0 0
    %2946 = vmatpush1.bf16.msra.mxu0 0
    %2947 = vmatprep.subr.bf16.mxu0 0
    %2948 = vmatpush1.bf16.msra.mxu0 0
    %2949 = vmatprep.subr.bf16.mxu0 0
    %2950 = vmatpush1.bf16.msra.mxu0 0
    %2951 = vmatprep.subr.bf16.mxu0 0
    %2952 = vmatpush1.bf16.msra.mxu0 0
    %2953 = vmatprep.subr.bf16.mxu0 0
    %2954 = vmatpush1.bf16.msra.mxu0 0
    %2955 = vmatprep.mubr.bf16.mxu0 0
    %2956 = vmatmul.mubr.bf16.gmra.mrb[0].mxu0 %v2848
    %v2957 = vpop.f32.mrb[0].mxu0
    %v2958 = vadd.f32 %v2873, %v2957
    %v2959 = vpop.f32.mrb[0].mxu0
    %v2960 = vpop.f32.mrb[0].mxu0
    %v2961 = vadd.f32 %v2873, %v2960
    %v2962 = vpop.f32.mrb[0].mxu0
    %2963 = vmatprep.mubr.bf16.mxu0 0
    %2964 = vmatmul.mubr.bf16.gmra.mrb[0].mxu0 %v2849
    %v2965 = vpop.f32.mrb[0].mxu0
    %v2966 = vadd.f32 %v2873, %v2965
    %v2967 = vpop.f32.mrb[0].mxu0
    %v2968 = vpop.f32.mrb[0].mxu0
    %v2969 = vadd.f32 %v2873, %v2968
    %v2970 = vpop.f32.mrb[0].mxu0
    %2971 = vmatprep.mubr.bf16.mxu0 0
    %2972 = vmatmul.mubr.bf16.gmra.mrb[0].mxu0 %v2850
    %v2973 = vpop.f32.mrb[0].mxu0
    %v2974 = vadd.f32 %v2873, %v2973
    %v2975 = vpop.f32.mrb[0].mxu0
    %v2976 = vpop.f32.mrb[0].mxu0
    %v2977 = vadd.f32 %v2873, %v2976
    %v2978 = vpop.f32.mrb[0].mxu0
    %2979 = vmatprep.mubr.bf16.mxu0 0
    %2980 = vmatmul.mubr.bf16.gmra.mrb[0].mxu0 %v2851
    %v2981 = vpop.f32.mrb[0].mxu0
    %v2982 = vadd.f32 %v2873, %v2981
    %v2983 = vpop.f32.mrb[0].mxu0
    %v2984 = vpop.f32.mrb[0].mxu0
    %v2985 = vadd.f32 %v2873, %v2984
    %v2986 = vpop.f32.mrb[0].mxu0
    %2987 = vdwg.mxu0
    %2988 = vst [vmem:[#allocation10] sm:$0xff] %v2958
    %2989 = vst [vmem:[#allocation10 + $0x8] sm:$0xff] %v2961
    %2990 = vst [vmem:[#allocation10 + $0x10] sm:$0xff] %v2966
    %2991 = vst [vmem:[#allocation10 + $0x18] sm:$0xff] %v2969
    %2992 = vst [vmem:[#allocation10 + $0x20] sm:$0xff] %v2974
    %2993 = vst [vmem:[#allocation10 + $0x28] sm:$0xff] %v2977
    %2994 = vst [vmem:[#allocation10 + $0x30] sm:$0xff] %v2982
    %2995 = vst [vmem:[#allocation10 + $0x38] sm:$0xff] %v2985
    // Predicated region
    $region38: #{tpu_custom_call.1} parent=1 // pred_check
      _
    $region39: #{tpu_custom_call.1} parent=1 // pred_check_branch
      %2997 = sbr.rel (0) target = $region41
    $region40: #{tpu_custom_call.1} parent=1 // pred_region
      %s2999 = ssub.s32 1024, 1024
      %3000 = vsyncadd [#allocation6], %s2999
      %s3001 = sshll.u32 [#allocation10], 4
      %s3002 = int_to_ptr.vmem [resolvable:$true] %s3001
      %3007 = dma.vmem_to_hbm [thread:$0]  %s3002, 1024, %s6, [#allocation6], 128, 128, 8
    $region41: #{tpu_custom_call.1} parent=1 // pred_fallthru
      _
    // Predicated region
    $region42: #{tpu_custom_call.1} parent=1 // pred_check
      _
    $region43: #{tpu_custom_call.1} parent=1 // pred_check_branch
      %3009 = sbr.rel (0) target = $region45
    $region44: #{tpu_custom_call.1} parent=1 // pred_region
      %3010 = dma.done [#allocation6], 1024
    $region45: #{tpu_custom_call.1} parent=1 // pred_fallthru
      _
    %3011 = vsyncpa [#allocation5], 1
    %3012 = vsyncpa [#allocation8], 1
    %3013 = vsyncpa [#allocation6], 1

</llo_original>
